<compile_context>
chip_gen: v5e
topology: v5e:2x2
jax: 0.10.0
libtpu: 0.0.40
codegen_flags: <defaults>
</compile_context>

<pallas_src>
import functools

import jax
import jax.numpy as jnp
from jax import lax
from jax.experimental import pallas as pl
from jax.experimental.pallas import tpu as pltpu


# -----------------------------------------------------------------------------
# Kernel: one sequence-group per grid step.
# -----------------------------------------------------------------------------
def retain_kernel(
    # inputs
    x_ref,        # (T*Sg, C)    float32 multi-hot codes, row = t*Sg + s
    wemb_ref,     # (C, E)       emb.weight^T (no bias)
    wih_ref,      # (E, 3H)      gate-interleaved [alpha|beta] weight_ih^T
    bih_ref,      # (1, 3H)      gate-interleaved bias_ih
    whh_ref,      # (H, 3H)      block-diag, gate-interleaved weight_hh^T
    bhh_ref,      # (1, 3H)      gate-interleaved bias_hh
    adw_ref,      # (1, A)       alpha_dense.weight (row layout)
    adb_ref,      # (1, 1)
    bdw_ref,      # (B, E)       beta_dense.weight^T
    bdb_ref,      # (1, E)
    ow_ref,       # (1, E)       output.weight (row layout)
    ob_ref,       # (1, 1)
    # output
    o_ref,        # (T*Sg, 1)    preY, row = t*Sg + s
    *, T, S, A,
):
  H = whh_ref.shape[0]                      # A + beta_dim (fused hidden width)

  # --- embedding + hoisted input projections: two big batched MXU matmuls ---
  xemb = jnp.dot(x_ref[...], wemb_ref[...],
                 preferred_element_type=jnp.float32)               # (T*S, E)
  gi_all = jnp.dot(xemb, wih_ref[...],
                   preferred_element_type=jnp.float32) + bih_ref[...]  # (T*S,3H)

  whh = whh_ref[...]
  bhh = bhh_ref[...]

  # --- fused alpha+beta GRU recurrence, sublane-batched over S sequences ----
  # Block-diagonal whh + gate-interleaved columns: one (S,H)@(H,3H) dot and
  # one sigmoid over r_a|r_b, one over z_a|z_b, one tanh over n_a|n_b / step.
  # re_emb[s'] = x_emb[T-1-s']; after torch.flip the hidden kept for original
  # time t is the state after consuming x_emb[T-1 .. t].
  h = jnp.zeros((S, H), jnp.float32)
  rows = [None] * T
  for step in range(T):                  # static unroll: T small, compile-time
    t = T - 1 - step
    gi = gi_all[t * S:(t + 1) * S, :]    # static sublane-aligned row slice
    gh = jnp.dot(h, whh, preferred_element_type=jnp.float32) + bhh
    r = jax.nn.sigmoid(gi[:, :H] + gh[:, :H])
    z = jax.nn.sigmoid(gi[:, H:2 * H] + gh[:, H:2 * H])
    n = jnp.tanh(gi[:, 2 * H:] + r * gh[:, 2 * H:])
    h = n + z * (h - n)                  # == (1-z)*n + z*h, one fewer VPU op
    rows[t] = h

  hs = jnp.concatenate(rows, axis=0)     # (T*S, H) time-major
  aout = hs[:, :A]                       # (T*S, A)  alpha GRU outputs
  bout = hs[:, A:]                       # (T*S, B)  beta  GRU outputs

  # --- alpha attention: N=1 dense folded into a lane reduce, per-sequence
  #     softmax over time done with static Sg-row slices (no reshapes) -------
  a_logits = jnp.sum(aout * adw_ref[...], axis=-1,
                     keepdims=True) + adb_ref[...]                  # (T*S, 1)
  lg = [a_logits[t * S:(t + 1) * S, :] for t in range(T)]           # (S,1) each
  m = lg[0]
  for t in range(1, T):
    m = jnp.maximum(m, lg[t])
  es = [jnp.exp(l - m) for l in lg]
  den = es[0]
  for t in range(1, T):
    den = den + es[t]
  inv = pl.reciprocal(den)               # exact: approx would break 1e-5 check
  alpha = jnp.concatenate([e * inv for e in es], axis=0)            # (T*S, 1)

  # --- beta attention -------------------------------------------------------
  beta = jnp.tanh(jnp.dot(bout, bdw_ref[...],
                          preferred_element_type=jnp.float32)
                  + bdb_ref[...])                                   # (T*S, E)

  # --- context + output: for batch==1 per sequence the torch broadcast is
  #   logit[t,s] = alpha[t,s] * sum_j beta[t,s,j] * xsum[s,j] * ow[j] + ob
  # fold xsum*ow into one per-sequence vector v instead of a (T*S,E) context.
  xsum = xemb[0:S, :]
  for t in range(1, T):
    xsum = xsum + xemb[t * S:(t + 1) * S, :]                        # (S, E)
  v = xsum * ow_ref[...]                                            # (S, E)
  w_rows = [jnp.sum(beta[t * S:(t + 1) * S, :] * v, axis=-1, keepdims=True)
            for t in range(T)]
  w = jnp.concatenate(w_rows, axis=0)                               # (T*S, 1)
  o_ref[...] = jax.nn.sigmoid(alpha * w + ob_ref[...])


# -----------------------------------------------------------------------------
# Wrapper-side weight fusion helpers (plain JAX, runs once under jit).
# -----------------------------------------------------------------------------
def _interleave_gates(a_m, b_m, A, Bd):
  """Columns [r_a|z_a|n_a], [r_b|z_b|n_b] -> [r_a|r_b|z_a|z_b|n_a|n_b]."""
  parts = []
  for g in range(3):
    parts.append(a_m[:, g * A:(g + 1) * A])
    parts.append(b_m[:, g * Bd:(g + 1) * Bd])
  return jnp.concatenate(parts, axis=1)


def _blockdiag_gates(a_whh, b_whh):
  """blockdiag(a_whh, b_whh) per gate, gate-interleaved: (A+B, 3*(A+B))."""
  A, Bd = a_whh.shape[0], b_whh.shape[0]
  zab = jnp.zeros((A, Bd), a_whh.dtype)
  zba = jnp.zeros((Bd, A), a_whh.dtype)
  cols = []
  for g in range(3):
    ag = a_whh[:, g * A:(g + 1) * A]
    bg = b_whh[:, g * Bd:(g + 1) * Bd]
    top = jnp.concatenate([ag, zab], axis=1)
    bot = jnp.concatenate([zba, bg], axis=1)
    cols.append(jnp.concatenate([top, bot], axis=0))
  return jnp.concatenate(cols, axis=1)


# -----------------------------------------------------------------------------
# Wrapper
# -----------------------------------------------------------------------------
@functools.partial(jax.jit, static_argnames=("seqs_per_block",))
def retain_forward(x, lengths, params, *, seqs_per_block=8):
  """x: (S, T, C) -- S independent batch-1 sequences.  Returns (S, T, 1)."""
  del lengths  # unused by the reference forward as well
  S_total, T, C = x.shape
  Sg = seqs_per_block
  assert S_total % Sg == 0, "pad the sequence batch to a multiple of Sg"
  G = S_total // Sg

  A = params["a_whh"].shape[0]
  Bd = params["b_whh"].shape[0]
  E = params["wemb"].shape[1]
  H = A + Bd
  # Gate slicing in-kernel assumes lane-aligned hidden dims.
  assert A % 128 == 0 and Bd % 128 == 0, "alpha/beta dims must be x128"

  # Fused, gate-interleaved GRU weights (one hh dot, one act per gate pair).
  wih_cat = _interleave_gates(params["a_wih"], params["b_wih"], A, Bd)
  bih_cat = _interleave_gates(params["a_bih"], params["b_bih"], A, Bd)
  bhh_cat = _interleave_gates(params["a_bhh"], params["b_bhh"], A, Bd)
  whh_bd = _blockdiag_gates(params["a_whh"], params["b_whh"])

  adw_row = params["adw"].T                                        # (1, A)
  ow_row = params["ow"].T                                          # (1, E)

  # Time-major, group-blocked layout: row = g*T*Sg + t*Sg + s.
  x_km = (x.astype(jnp.float32)
           .reshape(G, Sg, T, C)
           .transpose(0, 2, 1, 3)
           .reshape(G * T * Sg, C))

  args = (x_km, params["wemb"], wih_cat, bih_cat, whh_bd, bhh_cat,
          adw_row, params["adb"], params["bdw"], params["bdb"],
          ow_row, params["ob"])

  in_specs = [pl.BlockSpec((T * Sg, C), lambda g: (g, 0))]
  in_specs += [pl.BlockSpec(a.shape, lambda g: (0, 0)) for a in args[1:]]

  flops = 2 * G * T * Sg * (C * E + E * 3 * H + H * 3 * H + Bd * E)
  transcendentals = G * T * Sg * (3 * H + E + 2)
  bytes_accessed = (sum(int(a.size) * a.dtype.itemsize for a in args)
                    + G * T * Sg * 4)

  out = pl.pallas_call(
      functools.partial(retain_kernel, T=T, S=Sg, A=A),
      out_shape=jax.ShapeDtypeStruct((G * T * Sg, 1), jnp.float32),
      grid=(G,),
      in_specs=in_specs,
      out_specs=pl.BlockSpec((T * Sg, 1), lambda g: (g, 0)),
      compiler_params=pltpu.CompilerParams(
          dimension_semantics=("parallel",),        # shards groups over TCs
          vmem_limit_bytes=32 * 1024 * 1024),
      cost_estimate=pl.CostEstimate(
          flops=flops, transcendentals=transcendentals,
          bytes_accessed=bytes_accessed),
  )(*args)

  # (G*T*Sg, 1) time-major -> (S, T, 1)
  return (out.reshape(G, T, Sg, 1)
             .transpose(0, 2, 1, 3)
             .reshape(S_total, T, 1))


# -----------------------------------------------------------------------------
# Pure-JAX reference (faithful translation of the torch forward, batch == 1)
# -----------------------------------------------------------------------------
def retain_reference(x, params):
  T, B, C = x.shape
  x = x.astype(jnp.float32)
  x_emb = x @ params["wemb"]                       # (T, B, E)
  re_emb = jnp.flip(x_emb, 0)

  def gru(seq, wih, whh, bih, bhh):
    H = whh.shape[0]

    def step(h, xt):
      gi = xt @ wih + bih
      gh = h @ whh + bhh
      r = jax.nn.sigmoid(gi[:, :H] + gh[:, :H])
      z = jax.nn.sigmoid(gi[:, H:2 * H] + gh[:, H:2 * H])
      n = jnp.tanh(gi[:, 2 * H:] + r * gh[:, 2 * H:])
      h_new = (1.0 - z) * n + z * h
      return h_new, h_new

    h0 = jnp.zeros((B, H), jnp.float32)
    _, out = lax.scan(step, h0, seq)
    return out                                      # (T, B, H)

  a_out = jnp.flip(
      gru(re_emb, params["a_wih"], params["a_whh"],
          params["a_bih"], params["a_bhh"]), 0)
  alpha_out = jax.nn.softmax(a_out @ params["adw"] + params["adb"], axis=0)
  b_out = jnp.flip(
      gru(re_emb, params["b_wih"], params["b_whh"],
          params["b_bih"], params["b_bhh"]), 0)
  beta_out = jnp.tanh(b_out @ params["bdw"] + params["bdb"])

  a1, a2 = alpha_out.shape[0], alpha_out.shape[1]
  b1, b2 = beta_out.shape[0], beta_out.shape[1]
  alpha = jnp.transpose(alpha_out, (1, 0, 2)).reshape(-1, a1 * a2)
  beta = beta_out.reshape(b1 * b2, -1)
  c_t = alpha[:, :, None] * beta
  c_t = jnp.squeeze(c_t)
  c_t = (c_t * x_emb).sum(axis=0)                  # broadcast as in torch (B=1)
  c_vector = c_t @ params["ow"] + params["ob"]
  return jax.nn.sigmoid(c_vector)                  # (T, 1)


# -----------------------------------------------------------------------------
# Deterministic parameter init (mirrors RETAIN.init_weight: U(-0.1, 0.1)
# weights, zero biases).  Linear / GRU weights stored pre-transposed [in,out].
# -----------------------------------------------------------------------------
def init_params(key, n_codes, emb_size, alpha_dim, beta_dim):
  ks = jax.random.split(key, 8)
  u = lambda k, shape: jax.random.uniform(
      k, shape, jnp.float32, minval=-0.1, maxval=0.1)
  return {
      "wemb": u(ks[0], (n_codes, emb_size)),
      "a_wih": u(ks[1], (emb_size, 3 * alpha_dim)),
      "a_whh": u(ks[2], (alpha_dim, 3 * alpha_dim)),
      "a_bih": jnp.zeros((1, 3 * alpha_dim), jnp.float32),
      "a_bhh": jnp.zeros((1, 3 * alpha_dim), jnp.float32),
      "b_wih": u(ks[3], (emb_size, 3 * beta_dim)),
      "b_whh": u(ks[4], (beta_dim, 3 * beta_dim)),
      "b_bih": jnp.zeros((1, 3 * beta_dim), jnp.float32),
      "b_bhh": jnp.zeros((1, 3 * beta_dim), jnp.float32),
      "adw": u(ks[5], (alpha_dim, 1)),
      "adb": jnp.zeros((1, 1), jnp.float32),
      "bdw": u(ks[6], (beta_dim, emb_size)),
      "bdb": jnp.zeros((1, emb_size), jnp.float32),
      "ow": u(ks[7], (emb_size, 1)),
      "ob": jnp.zeros((1, 1), jnp.float32),
  }


if __name__ == "__main__":
  # Small, lane-friendly sizes: seq T=8, per-sequence batch=1 (required by the
  # torch forward's broadcasting), n_input_codes=128, emb/alpha/beta dims=128.
  # S=16 independent sequences -> 2 grid groups of 8 sublane-batched sequences.
  T, C = 8, 128
  EMB, ALPHA_DIM, BETA_DIM = 128, 128, 128
  S = 16

  key = jax.random.PRNGKey(0)
  k_x, k_p = jax.random.split(key)
  x = (jax.random.uniform(k_x, (S, T, C)) < 0.1).astype(jnp.float32)
  lengths = jnp.full((S,), T, jnp.int32)   # unused by the forward pass
  params = init_params(k_p, C, EMB, ALPHA_DIM, BETA_DIM)

  pre_y = retain_forward(x, lengths, params)
  pre_y = jax.block_until_ready(pre_y)

  # Per-sequence (batch==1) reference, vmapped over the stacked sequences.
  ref = jax.vmap(lambda xs: retain_reference(xs[:, None, :], params))(x)
  assert pre_y.shape == (S, T, 1)
  assert jnp.allclose(pre_y, ref, rtol=1e-4, atol=1e-5), float(
      jnp.max(jnp.abs(pre_y - ref)))

  print("KERNEL_OK")
</pallas_src>

<mosaic_0001>
module attributes {stable_mosaic.version = 11 : i64} {
  func.func @retain_kernel(%arg0: i32, %arg1: memref<64x128xf32, #tpu.memory_space<vmem>>, %arg2: memref<128x128xf32, #tpu.memory_space<vmem>>, %arg3: memref<128x768xf32, #tpu.memory_space<vmem>>, %arg4: memref<1x768xf32, #tpu.memory_space<vmem>>, %arg5: memref<256x768xf32, #tpu.memory_space<vmem>>, %arg6: memref<1x768xf32, #tpu.memory_space<vmem>>, %arg7: memref<1x128xf32, #tpu.memory_space<vmem>>, %arg8: memref<1x1xf32, #tpu.memory_space<vmem>>, %arg9: memref<128x128xf32, #tpu.memory_space<vmem>>, %arg10: memref<1x128xf32, #tpu.memory_space<vmem>>, %arg11: memref<1x128xf32, #tpu.memory_space<vmem>>, %arg12: memref<1x1xf32, #tpu.memory_space<vmem>>, %arg13: memref<64x1xf32, #tpu.memory_space<vmem>>) attributes {dimension_semantics = [#tpu.dimension_semantics<parallel>], iteration_bounds = array<i64: 2>, scalar_prefetch = 0 : i64, scratch_operands = 0 : i64, tpu.core_type = #tpu.core_type<tc>, window_params = [{transform_indices = @transform_0, window_bounds = array<i64: 64, 128>}, {pipeline_mode = #tpu.pipeline_mode<synchronous>, transform_indices = @transform_1, window_bounds = array<i64: 128, 128>}, {pipeline_mode = #tpu.pipeline_mode<synchronous>, transform_indices = @transform_2, window_bounds = array<i64: 128, 768>}, {pipeline_mode = #tpu.pipeline_mode<synchronous>, transform_indices = @transform_3, window_bounds = array<i64: 1, 768>}, {pipeline_mode = #tpu.pipeline_mode<synchronous>, transform_indices = @transform_4, window_bounds = array<i64: 256, 768>}, {pipeline_mode = #tpu.pipeline_mode<synchronous>, transform_indices = @transform_5, window_bounds = array<i64: 1, 768>}, {pipeline_mode = #tpu.pipeline_mode<synchronous>, transform_indices = @transform_6, window_bounds = array<i64: 1, 128>}, {pipeline_mode = #tpu.pipeline_mode<synchronous>, transform_indices = @transform_7, window_bounds = array<i64: 1, 1>}, {pipeline_mode = #tpu.pipeline_mode<synchronous>, transform_indices = @transform_8, window_bounds = array<i64: 128, 128>}, {pipeline_mode = #tpu.pipeline_mode<synchronous>, transform_indices = @transform_9, window_bounds = array<i64: 1, 128>}, {pipeline_mode = #tpu.pipeline_mode<synchronous>, transform_indices = @transform_10, window_bounds = array<i64: 1, 128>}, {pipeline_mode = #tpu.pipeline_mode<synchronous>, transform_indices = @transform_11, window_bounds = array<i64: 1, 1>}, {transform_indices = @transform_12, window_bounds = array<i64: 64, 1>}]} {
    %c0 = arith.constant 0 : index
    %c0_0 = arith.constant 0 : index
    %0 = vector.load %arg1[%c0, %c0_0] : memref<64x128xf32, #tpu.memory_space<vmem>>, vector<64x128xf32>
    %c0_1 = arith.constant 0 : index
    %c0_2 = arith.constant 0 : index
    %1 = vector.load %arg2[%c0_1, %c0_2] : memref<128x128xf32, #tpu.memory_space<vmem>>, vector<128x128xf32>
    %cst = arith.constant dense<0.000000e+00> : vector<64x128xf32>
    %2 = tpu.matmul %0, %1, %cst {dimension_numbers = #tpu.dot_dimension_numbers<[1], [0], [0], [1], [0, 0, 1, 1], [], []>} : vector<64x128xf32>, vector<128x128xf32>, vector<64x128xf32> -> vector<64x128xf32>
    %c0_3 = arith.constant 0 : index
    %c0_4 = arith.constant 0 : index
    %3 = vector.load %arg3[%c0_3, %c0_4] : memref<128x768xf32, #tpu.memory_space<vmem>>, vector<128x768xf32>
    %cst_5 = arith.constant dense<0.000000e+00> : vector<64x768xf32>
    %4 = tpu.matmul %2, %3, %cst_5 {dimension_numbers = #tpu.dot_dimension_numbers<[1], [0], [0], [1], [0, 0, 1, 1], [], []>} : vector<64x128xf32>, vector<128x768xf32>, vector<64x768xf32> -> vector<64x768xf32>
    %c0_6 = arith.constant 0 : index
    %c0_7 = arith.constant 0 : index
    %5 = vector.load %arg4[%c0_6, %c0_7] : memref<1x768xf32, #tpu.memory_space<vmem>>, vector<1x768xf32>
    %6 = vector.broadcast %5 : vector<1x768xf32> to vector<64x768xf32>
    %7 = arith.addf %4, %6 : vector<64x768xf32>
    %c0_8 = arith.constant 0 : index
    %c0_9 = arith.constant 0 : index
    %8 = vector.load %arg5[%c0_8, %c0_9] : memref<256x768xf32, #tpu.memory_space<vmem>>, vector<256x768xf32>
    %c0_10 = arith.constant 0 : index
    %c0_11 = arith.constant 0 : index
    %9 = vector.load %arg6[%c0_10, %c0_11] : memref<1x768xf32, #tpu.memory_space<vmem>>, vector<1x768xf32>
    %cst_12 = arith.constant 0.000000e+00 : f32
    %10 = vector.broadcast %cst_12 : f32 to vector<8x256xf32>
    %11 = vector.extract_strided_slice %7 {offsets = [56, 0], sizes = [8, 768], strides = [1, 1]} : vector<64x768xf32> to vector<8x768xf32>
    %cst_13 = arith.constant dense<0.000000e+00> : vector<8x768xf32>
    %12 = tpu.matmul %10, %8, %cst_13 {dimension_numbers = #tpu.dot_dimension_numbers<[1], [0], [0], [1], [0, 0, 1, 1], [], []>} : vector<8x256xf32>, vector<256x768xf32>, vector<8x768xf32> -> vector<8x768xf32>
    %13 = vector.broadcast %9 : vector<1x768xf32> to vector<8x768xf32>
    %14 = arith.addf %12, %13 : vector<8x768xf32>
    %15 = vector.extract_strided_slice %11 {offsets = [0, 0], sizes = [8, 256], strides = [1, 1]} : vector<8x768xf32> to vector<8x256xf32>
    %16 = vector.extract_strided_slice %14 {offsets = [0, 0], sizes = [8, 256], strides = [1, 1]} : vector<8x768xf32> to vector<8x256xf32>
    %17 = arith.addf %15, %16 : vector<8x256xf32>
    %18 = arith.negf %17 : vector<8x256xf32>
    %19 = math.exp %18 : vector<8x256xf32>
    %cst_14 = arith.constant 1.000000e+00 : f32
    %20 = vector.broadcast %cst_14 : f32 to vector<8x256xf32>
    %21 = arith.addf %20, %19 : vector<8x256xf32>
    %22 = arith.divf %20, %21 : vector<8x256xf32>
    %23 = vector.extract_strided_slice %11 {offsets = [0, 256], sizes = [8, 256], strides = [1, 1]} : vector<8x768xf32> to vector<8x256xf32>
    %24 = vector.extract_strided_slice %14 {offsets = [0, 256], sizes = [8, 256], strides = [1, 1]} : vector<8x768xf32> to vector<8x256xf32>
    %25 = arith.addf %23, %24 : vector<8x256xf32>
    %26 = arith.negf %25 : vector<8x256xf32>
    %27 = math.exp %26 : vector<8x256xf32>
    %cst_15 = arith.constant 1.000000e+00 : f32
    %28 = vector.broadcast %cst_15 : f32 to vector<8x256xf32>
    %29 = arith.addf %28, %27 : vector<8x256xf32>
    %30 = arith.divf %28, %29 : vector<8x256xf32>
    %31 = vector.extract_strided_slice %11 {offsets = [0, 512], sizes = [8, 256], strides = [1, 1]} : vector<8x768xf32> to vector<8x256xf32>
    %32 = vector.extract_strided_slice %14 {offsets = [0, 512], sizes = [8, 256], strides = [1, 1]} : vector<8x768xf32> to vector<8x256xf32>
    %33 = arith.mulf %22, %32 : vector<8x256xf32>
    %34 = arith.addf %31, %33 : vector<8x256xf32>
    %35 = math.tanh %34 : vector<8x256xf32>
    %36 = arith.subf %10, %35 : vector<8x256xf32>
    %37 = arith.mulf %30, %36 : vector<8x256xf32>
    %38 = arith.addf %35, %37 : vector<8x256xf32>
    %39 = vector.extract_strided_slice %7 {offsets = [48, 0], sizes = [8, 768], strides = [1, 1]} : vector<64x768xf32> to vector<8x768xf32>
    %cst_16 = arith.constant dense<0.000000e+00> : vector<8x768xf32>
    %40 = tpu.matmul %38, %8, %cst_16 {dimension_numbers = #tpu.dot_dimension_numbers<[1], [0], [0], [1], [0, 0, 1, 1], [], []>} : vector<8x256xf32>, vector<256x768xf32>, vector<8x768xf32> -> vector<8x768xf32>
    %41 = vector.broadcast %9 : vector<1x768xf32> to vector<8x768xf32>
    %42 = arith.addf %40, %41 : vector<8x768xf32>
    %43 = vector.extract_strided_slice %39 {offsets = [0, 0], sizes = [8, 256], strides = [1, 1]} : vector<8x768xf32> to vector<8x256xf32>
    %44 = vector.extract_strided_slice %42 {offsets = [0, 0], sizes = [8, 256], strides = [1, 1]} : vector<8x768xf32> to vector<8x256xf32>
    %45 = arith.addf %43, %44 : vector<8x256xf32>
    %46 = arith.negf %45 : vector<8x256xf32>
    %47 = math.exp %46 : vector<8x256xf32>
    %cst_17 = arith.constant 1.000000e+00 : f32
    %48 = vector.broadcast %cst_17 : f32 to vector<8x256xf32>
    %49 = arith.addf %48, %47 : vector<8x256xf32>
    %50 = arith.divf %48, %49 : vector<8x256xf32>
    %51 = vector.extract_strided_slice %39 {offsets = [0, 256], sizes = [8, 256], strides = [1, 1]} : vector<8x768xf32> to vector<8x256xf32>
    %52 = vector.extract_strided_slice %42 {offsets = [0, 256], sizes = [8, 256], strides = [1, 1]} : vector<8x768xf32> to vector<8x256xf32>
    %53 = arith.addf %51, %52 : vector<8x256xf32>
    %54 = arith.negf %53 : vector<8x256xf32>
    %55 = math.exp %54 : vector<8x256xf32>
    %cst_18 = arith.constant 1.000000e+00 : f32
    %56 = vector.broadcast %cst_18 : f32 to vector<8x256xf32>
    %57 = arith.addf %56, %55 : vector<8x256xf32>
    %58 = arith.divf %56, %57 : vector<8x256xf32>
    %59 = vector.extract_strided_slice %39 {offsets = [0, 512], sizes = [8, 256], strides = [1, 1]} : vector<8x768xf32> to vector<8x256xf32>
    %60 = vector.extract_strided_slice %42 {offsets = [0, 512], sizes = [8, 256], strides = [1, 1]} : vector<8x768xf32> to vector<8x256xf32>
    %61 = arith.mulf %50, %60 : vector<8x256xf32>
    %62 = arith.addf %59, %61 : vector<8x256xf32>
    %63 = math.tanh %62 : vector<8x256xf32>
    %64 = arith.subf %38, %63 : vector<8x256xf32>
    %65 = arith.mulf %58, %64 : vector<8x256xf32>
    %66 = arith.addf %63, %65 : vector<8x256xf32>
    %67 = vector.extract_strided_slice %7 {offsets = [40, 0], sizes = [8, 768], strides = [1, 1]} : vector<64x768xf32> to vector<8x768xf32>
    %cst_19 = arith.constant dense<0.000000e+00> : vector<8x768xf32>
    %68 = tpu.matmul %66, %8, %cst_19 {dimension_numbers = #tpu.dot_dimension_numbers<[1], [0], [0], [1], [0, 0, 1, 1], [], []>} : vector<8x256xf32>, vector<256x768xf32>, vector<8x768xf32> -> vector<8x768xf32>
    %69 = vector.broadcast %9 : vector<1x768xf32> to vector<8x768xf32>
    %70 = arith.addf %68, %69 : vector<8x768xf32>
    %71 = vector.extract_strided_slice %67 {offsets = [0, 0], sizes = [8, 256], strides = [1, 1]} : vector<8x768xf32> to vector<8x256xf32>
    %72 = vector.extract_strided_slice %70 {offsets = [0, 0], sizes = [8, 256], strides = [1, 1]} : vector<8x768xf32> to vector<8x256xf32>
    %73 = arith.addf %71, %72 : vector<8x256xf32>
    %74 = arith.negf %73 : vector<8x256xf32>
    %75 = math.exp %74 : vector<8x256xf32>
    %cst_20 = arith.constant 1.000000e+00 : f32
    %76 = vector.broadcast %cst_20 : f32 to vector<8x256xf32>
    %77 = arith.addf %76, %75 : vector<8x256xf32>
    %78 = arith.divf %76, %77 : vector<8x256xf32>
    %79 = vector.extract_strided_slice %67 {offsets = [0, 256], sizes = [8, 256], strides = [1, 1]} : vector<8x768xf32> to vector<8x256xf32>
    %80 = vector.extract_strided_slice %70 {offsets = [0, 256], sizes = [8, 256], strides = [1, 1]} : vector<8x768xf32> to vector<8x256xf32>
    %81 = arith.addf %79, %80 : vector<8x256xf32>
    %82 = arith.negf %81 : vector<8x256xf32>
    %83 = math.exp %82 : vector<8x256xf32>
    %cst_21 = arith.constant 1.000000e+00 : f32
    %84 = vector.broadcast %cst_21 : f32 to vector<8x256xf32>
    %85 = arith.addf %84, %83 : vector<8x256xf32>
    %86 = arith.divf %84, %85 : vector<8x256xf32>
    %87 = vector.extract_strided_slice %67 {offsets = [0, 512], sizes = [8, 256], strides = [1, 1]} : vector<8x768xf32> to vector<8x256xf32>
    %88 = vector.extract_strided_slice %70 {offsets = [0, 512], sizes = [8, 256], strides = [1, 1]} : vector<8x768xf32> to vector<8x256xf32>
    %89 = arith.mulf %78, %88 : vector<8x256xf32>
    %90 = arith.addf %87, %89 : vector<8x256xf32>
    %91 = math.tanh %90 : vector<8x256xf32>
    %92 = arith.subf %66, %91 : vector<8x256xf32>
    %93 = arith.mulf %86, %92 : vector<8x256xf32>
    %94 = arith.addf %91, %93 : vector<8x256xf32>
    %95 = vector.extract_strided_slice %7 {offsets = [32, 0], sizes = [8, 768], strides = [1, 1]} : vector<64x768xf32> to vector<8x768xf32>
    %cst_22 = arith.constant dense<0.000000e+00> : vector<8x768xf32>
    %96 = tpu.matmul %94, %8, %cst_22 {dimension_numbers = #tpu.dot_dimension_numbers<[1], [0], [0], [1], [0, 0, 1, 1], [], []>} : vector<8x256xf32>, vector<256x768xf32>, vector<8x768xf32> -> vector<8x768xf32>
    %97 = vector.broadcast %9 : vector<1x768xf32> to vector<8x768xf32>
    %98 = arith.addf %96, %97 : vector<8x768xf32>
    %99 = vector.extract_strided_slice %95 {offsets = [0, 0], sizes = [8, 256], strides = [1, 1]} : vector<8x768xf32> to vector<8x256xf32>
    %100 = vector.extract_strided_slice %98 {offsets = [0, 0], sizes = [8, 256], strides = [1, 1]} : vector<8x768xf32> to vector<8x256xf32>
    %101 = arith.addf %99, %100 : vector<8x256xf32>
    %102 = arith.negf %101 : vector<8x256xf32>
    %103 = math.exp %102 : vector<8x256xf32>
    %cst_23 = arith.constant 1.000000e+00 : f32
    %104 = vector.broadcast %cst_23 : f32 to vector<8x256xf32>
    %105 = arith.addf %104, %103 : vector<8x256xf32>
    %106 = arith.divf %104, %105 : vector<8x256xf32>
    %107 = vector.extract_strided_slice %95 {offsets = [0, 256], sizes = [8, 256], strides = [1, 1]} : vector<8x768xf32> to vector<8x256xf32>
    %108 = vector.extract_strided_slice %98 {offsets = [0, 256], sizes = [8, 256], strides = [1, 1]} : vector<8x768xf32> to vector<8x256xf32>
    %109 = arith.addf %107, %108 : vector<8x256xf32>
    %110 = arith.negf %109 : vector<8x256xf32>
    %111 = math.exp %110 : vector<8x256xf32>
    %cst_24 = arith.constant 1.000000e+00 : f32
    %112 = vector.broadcast %cst_24 : f32 to vector<8x256xf32>
    %113 = arith.addf %112, %111 : vector<8x256xf32>
    %114 = arith.divf %112, %113 : vector<8x256xf32>
    %115 = vector.extract_strided_slice %95 {offsets = [0, 512], sizes = [8, 256], strides = [1, 1]} : vector<8x768xf32> to vector<8x256xf32>
    %116 = vector.extract_strided_slice %98 {offsets = [0, 512], sizes = [8, 256], strides = [1, 1]} : vector<8x768xf32> to vector<8x256xf32>
    %117 = arith.mulf %106, %116 : vector<8x256xf32>
    %118 = arith.addf %115, %117 : vector<8x256xf32>
    %119 = math.tanh %118 : vector<8x256xf32>
    %120 = arith.subf %94, %119 : vector<8x256xf32>
    %121 = arith.mulf %114, %120 : vector<8x256xf32>
    %122 = arith.addf %119, %121 : vector<8x256xf32>
    %123 = vector.extract_strided_slice %7 {offsets = [24, 0], sizes = [8, 768], strides = [1, 1]} : vector<64x768xf32> to vector<8x768xf32>
    %cst_25 = arith.constant dense<0.000000e+00> : vector<8x768xf32>
    %124 = tpu.matmul %122, %8, %cst_25 {dimension_numbers = #tpu.dot_dimension_numbers<[1], [0], [0], [1], [0, 0, 1, 1], [], []>} : vector<8x256xf32>, vector<256x768xf32>, vector<8x768xf32> -> vector<8x768xf32>
    %125 = vector.broadcast %9 : vector<1x768xf32> to vector<8x768xf32>
    %126 = arith.addf %124, %125 : vector<8x768xf32>
    %127 = vector.extract_strided_slice %123 {offsets = [0, 0], sizes = [8, 256], strides = [1, 1]} : vector<8x768xf32> to vector<8x256xf32>
    %128 = vector.extract_strided_slice %126 {offsets = [0, 0], sizes = [8, 256], strides = [1, 1]} : vector<8x768xf32> to vector<8x256xf32>
    %129 = arith.addf %127, %128 : vector<8x256xf32>
    %130 = arith.negf %129 : vector<8x256xf32>
    %131 = math.exp %130 : vector<8x256xf32>
    %cst_26 = arith.constant 1.000000e+00 : f32
    %132 = vector.broadcast %cst_26 : f32 to vector<8x256xf32>
    %133 = arith.addf %132, %131 : vector<8x256xf32>
    %134 = arith.divf %132, %133 : vector<8x256xf32>
    %135 = vector.extract_strided_slice %123 {offsets = [0, 256], sizes = [8, 256], strides = [1, 1]} : vector<8x768xf32> to vector<8x256xf32>
    %136 = vector.extract_strided_slice %126 {offsets = [0, 256], sizes = [8, 256], strides = [1, 1]} : vector<8x768xf32> to vector<8x256xf32>
    %137 = arith.addf %135, %136 : vector<8x256xf32>
    %138 = arith.negf %137 : vector<8x256xf32>
    %139 = math.exp %138 : vector<8x256xf32>
    %cst_27 = arith.constant 1.000000e+00 : f32
    %140 = vector.broadcast %cst_27 : f32 to vector<8x256xf32>
    %141 = arith.addf %140, %139 : vector<8x256xf32>
    %142 = arith.divf %140, %141 : vector<8x256xf32>
    %143 = vector.extract_strided_slice %123 {offsets = [0, 512], sizes = [8, 256], strides = [1, 1]} : vector<8x768xf32> to vector<8x256xf32>
    %144 = vector.extract_strided_slice %126 {offsets = [0, 512], sizes = [8, 256], strides = [1, 1]} : vector<8x768xf32> to vector<8x256xf32>
    %145 = arith.mulf %134, %144 : vector<8x256xf32>
    %146 = arith.addf %143, %145 : vector<8x256xf32>
    %147 = math.tanh %146 : vector<8x256xf32>
    %148 = arith.subf %122, %147 : vector<8x256xf32>
    %149 = arith.mulf %142, %148 : vector<8x256xf32>
    %150 = arith.addf %147, %149 : vector<8x256xf32>
    %151 = vector.extract_strided_slice %7 {offsets = [16, 0], sizes = [8, 768], strides = [1, 1]} : vector<64x768xf32> to vector<8x768xf32>
    %cst_28 = arith.constant dense<0.000000e+00> : vector<8x768xf32>
    %152 = tpu.matmul %150, %8, %cst_28 {dimension_numbers = #tpu.dot_dimension_numbers<[1], [0], [0], [1], [0, 0, 1, 1], [], []>} : vector<8x256xf32>, vector<256x768xf32>, vector<8x768xf32> -> vector<8x768xf32>
    %153 = vector.broadcast %9 : vector<1x768xf32> to vector<8x768xf32>
    %154 = arith.addf %152, %153 : vector<8x768xf32>
    %155 = vector.extract_strided_slice %151 {offsets = [0, 0], sizes = [8, 256], strides = [1, 1]} : vector<8x768xf32> to vector<8x256xf32>
    %156 = vector.extract_strided_slice %154 {offsets = [0, 0], sizes = [8, 256], strides = [1, 1]} : vector<8x768xf32> to vector<8x256xf32>
    %157 = arith.addf %155, %156 : vector<8x256xf32>
    %158 = arith.negf %157 : vector<8x256xf32>
    %159 = math.exp %158 : vector<8x256xf32>
    %cst_29 = arith.constant 1.000000e+00 : f32
    %160 = vector.broadcast %cst_29 : f32 to vector<8x256xf32>
    %161 = arith.addf %160, %159 : vector<8x256xf32>
    %162 = arith.divf %160, %161 : vector<8x256xf32>
    %163 = vector.extract_strided_slice %151 {offsets = [0, 256], sizes = [8, 256], strides = [1, 1]} : vector<8x768xf32> to vector<8x256xf32>
    %164 = vector.extract_strided_slice %154 {offsets = [0, 256], sizes = [8, 256], strides = [1, 1]} : vector<8x768xf32> to vector<8x256xf32>
    %165 = arith.addf %163, %164 : vector<8x256xf32>
    %166 = arith.negf %165 : vector<8x256xf32>
    %167 = math.exp %166 : vector<8x256xf32>
    %cst_30 = arith.constant 1.000000e+00 : f32
    %168 = vector.broadcast %cst_30 : f32 to vector<8x256xf32>
    %169 = arith.addf %168, %167 : vector<8x256xf32>
    %170 = arith.divf %168, %169 : vector<8x256xf32>
    %171 = vector.extract_strided_slice %151 {offsets = [0, 512], sizes = [8, 256], strides = [1, 1]} : vector<8x768xf32> to vector<8x256xf32>
    %172 = vector.extract_strided_slice %154 {offsets = [0, 512], sizes = [8, 256], strides = [1, 1]} : vector<8x768xf32> to vector<8x256xf32>
    %173 = arith.mulf %162, %172 : vector<8x256xf32>
    %174 = arith.addf %171, %173 : vector<8x256xf32>
    %175 = math.tanh %174 : vector<8x256xf32>
    %176 = arith.subf %150, %175 : vector<8x256xf32>
    %177 = arith.mulf %170, %176 : vector<8x256xf32>
    %178 = arith.addf %175, %177 : vector<8x256xf32>
    %179 = vector.extract_strided_slice %7 {offsets = [8, 0], sizes = [8, 768], strides = [1, 1]} : vector<64x768xf32> to vector<8x768xf32>
    %cst_31 = arith.constant dense<0.000000e+00> : vector<8x768xf32>
    %180 = tpu.matmul %178, %8, %cst_31 {dimension_numbers = #tpu.dot_dimension_numbers<[1], [0], [0], [1], [0, 0, 1, 1], [], []>} : vector<8x256xf32>, vector<256x768xf32>, vector<8x768xf32> -> vector<8x768xf32>
    %181 = vector.broadcast %9 : vector<1x768xf32> to vector<8x768xf32>
    %182 = arith.addf %180, %181 : vector<8x768xf32>
    %183 = vector.extract_strided_slice %179 {offsets = [0, 0], sizes = [8, 256], strides = [1, 1]} : vector<8x768xf32> to vector<8x256xf32>
    %184 = vector.extract_strided_slice %182 {offsets = [0, 0], sizes = [8, 256], strides = [1, 1]} : vector<8x768xf32> to vector<8x256xf32>
    %185 = arith.addf %183, %184 : vector<8x256xf32>
    %186 = arith.negf %185 : vector<8x256xf32>
    %187 = math.exp %186 : vector<8x256xf32>
    %cst_32 = arith.constant 1.000000e+00 : f32
    %188 = vector.broadcast %cst_32 : f32 to vector<8x256xf32>
    %189 = arith.addf %188, %187 : vector<8x256xf32>
    %190 = arith.divf %188, %189 : vector<8x256xf32>
    %191 = vector.extract_strided_slice %179 {offsets = [0, 256], sizes = [8, 256], strides = [1, 1]} : vector<8x768xf32> to vector<8x256xf32>
    %192 = vector.extract_strided_slice %182 {offsets = [0, 256], sizes = [8, 256], strides = [1, 1]} : vector<8x768xf32> to vector<8x256xf32>
    %193 = arith.addf %191, %192 : vector<8x256xf32>
    %194 = arith.negf %193 : vector<8x256xf32>
    %195 = math.exp %194 : vector<8x256xf32>
    %cst_33 = arith.constant 1.000000e+00 : f32
    %196 = vector.broadcast %cst_33 : f32 to vector<8x256xf32>
    %197 = arith.addf %196, %195 : vector<8x256xf32>
    %198 = arith.divf %196, %197 : vector<8x256xf32>
    %199 = vector.extract_strided_slice %179 {offsets = [0, 512], sizes = [8, 256], strides = [1, 1]} : vector<8x768xf32> to vector<8x256xf32>
    %200 = vector.extract_strided_slice %182 {offsets = [0, 512], sizes = [8, 256], strides = [1, 1]} : vector<8x768xf32> to vector<8x256xf32>
    %201 = arith.mulf %190, %200 : vector<8x256xf32>
    %202 = arith.addf %199, %201 : vector<8x256xf32>
    %203 = math.tanh %202 : vector<8x256xf32>
    %204 = arith.subf %178, %203 : vector<8x256xf32>
    %205 = arith.mulf %198, %204 : vector<8x256xf32>
    %206 = arith.addf %203, %205 : vector<8x256xf32>
    %207 = vector.extract_strided_slice %7 {offsets = [0, 0], sizes = [8, 768], strides = [1, 1]} : vector<64x768xf32> to vector<8x768xf32>
    %cst_34 = arith.constant dense<0.000000e+00> : vector<8x768xf32>
    %208 = tpu.matmul %206, %8, %cst_34 {dimension_numbers = #tpu.dot_dimension_numbers<[1], [0], [0], [1], [0, 0, 1, 1], [], []>} : vector<8x256xf32>, vector<256x768xf32>, vector<8x768xf32> -> vector<8x768xf32>
    %209 = vector.broadcast %9 : vector<1x768xf32> to vector<8x768xf32>
    %210 = arith.addf %208, %209 : vector<8x768xf32>
    %211 = vector.extract_strided_slice %207 {offsets = [0, 0], sizes = [8, 256], strides = [1, 1]} : vector<8x768xf32> to vector<8x256xf32>
    %212 = vector.extract_strided_slice %210 {offsets = [0, 0], sizes = [8, 256], strides = [1, 1]} : vector<8x768xf32> to vector<8x256xf32>
    %213 = arith.addf %211, %212 : vector<8x256xf32>
    %214 = arith.negf %213 : vector<8x256xf32>
    %215 = math.exp %214 : vector<8x256xf32>
    %cst_35 = arith.constant 1.000000e+00 : f32
    %216 = vector.broadcast %cst_35 : f32 to vector<8x256xf32>
    %217 = arith.addf %216, %215 : vector<8x256xf32>
    %218 = arith.divf %216, %217 : vector<8x256xf32>
    %219 = vector.extract_strided_slice %207 {offsets = [0, 256], sizes = [8, 256], strides = [1, 1]} : vector<8x768xf32> to vector<8x256xf32>
    %220 = vector.extract_strided_slice %210 {offsets = [0, 256], sizes = [8, 256], strides = [1, 1]} : vector<8x768xf32> to vector<8x256xf32>
    %221 = arith.addf %219, %220 : vector<8x256xf32>
    %222 = arith.negf %221 : vector<8x256xf32>
    %223 = math.exp %222 : vector<8x256xf32>
    %cst_36 = arith.constant 1.000000e+00 : f32
    %224 = vector.broadcast %cst_36 : f32 to vector<8x256xf32>
    %225 = arith.addf %224, %223 : vector<8x256xf32>
    %226 = arith.divf %224, %225 : vector<8x256xf32>
    %227 = vector.extract_strided_slice %207 {offsets = [0, 512], sizes = [8, 256], strides = [1, 1]} : vector<8x768xf32> to vector<8x256xf32>
    %228 = vector.extract_strided_slice %210 {offsets = [0, 512], sizes = [8, 256], strides = [1, 1]} : vector<8x768xf32> to vector<8x256xf32>
    %229 = arith.mulf %218, %228 : vector<8x256xf32>
    %230 = arith.addf %227, %229 : vector<8x256xf32>
    %231 = math.tanh %230 : vector<8x256xf32>
    %232 = arith.subf %206, %231 : vector<8x256xf32>
    %233 = arith.mulf %226, %232 : vector<8x256xf32>
    %234 = arith.addf %231, %233 : vector<8x256xf32>
    %235 = tpu.concatenate %234, %206, %178, %150, %122, %94, %66, %38 in 0 : vector<8x256xf32>, vector<8x256xf32>, vector<8x256xf32>, vector<8x256xf32>, vector<8x256xf32>, vector<8x256xf32>, vector<8x256xf32>, vector<8x256xf32> -> vector<64x256xf32>
    %236 = vector.extract_strided_slice %235 {offsets = [0, 0], sizes = [64, 128], strides = [1, 1]} : vector<64x256xf32> to vector<64x128xf32>
    %237 = vector.extract_strided_slice %235 {offsets = [0, 128], sizes = [64, 128], strides = [1, 1]} : vector<64x256xf32> to vector<64x128xf32>
    %c0_37 = arith.constant 0 : index
    %c0_38 = arith.constant 0 : index
    %238 = vector.load %arg7[%c0_37, %c0_38] : memref<1x128xf32, #tpu.memory_space<vmem>>, vector<1x128xf32>
    %239 = vector.broadcast %238 : vector<1x128xf32> to vector<64x128xf32>
    %240 = arith.mulf %236, %239 : vector<64x128xf32>
    %cst_39 = arith.constant dense<0.000000e+00> : vector<64xf32>
    %241 = vector.multi_reduction <add>, %240, %cst_39 [1] : vector<64x128xf32> to vector<64xf32>
    %242 = vector.shape_cast %241 : vector<64xf32> to vector<64x1xf32>
    %c0_40 = arith.constant 0 : index
    %c0_41 = arith.constant 0 : index
    %243 = vector.load %arg8[%c0_40, %c0_41] : memref<1x1xf32, #tpu.memory_space<vmem>>, vector<1x1xf32>
    %244 = vector.broadcast %243 : vector<1x1xf32> to vector<64x1xf32>
    %245 = arith.addf %242, %244 : vector<64x1xf32>
    %246 = vector.extract_strided_slice %245 {offsets = [0, 0], sizes = [8, 1], strides = [1, 1]} : vector<64x1xf32> to vector<8x1xf32>
    %247 = vector.extract_strided_slice %245 {offsets = [8, 0], sizes = [8, 1], strides = [1, 1]} : vector<64x1xf32> to vector<8x1xf32>
    %248 = vector.extract_strided_slice %245 {offsets = [16, 0], sizes = [8, 1], strides = [1, 1]} : vector<64x1xf32> to vector<8x1xf32>
    %249 = vector.extract_strided_slice %245 {offsets = [24, 0], sizes = [8, 1], strides = [1, 1]} : vector<64x1xf32> to vector<8x1xf32>
    %250 = vector.extract_strided_slice %245 {offsets = [32, 0], sizes = [8, 1], strides = [1, 1]} : vector<64x1xf32> to vector<8x1xf32>
    %251 = vector.extract_strided_slice %245 {offsets = [40, 0], sizes = [8, 1], strides = [1, 1]} : vector<64x1xf32> to vector<8x1xf32>
    %252 = vector.extract_strided_slice %245 {offsets = [48, 0], sizes = [8, 1], strides = [1, 1]} : vector<64x1xf32> to vector<8x1xf32>
    %253 = vector.extract_strided_slice %245 {offsets = [56, 0], sizes = [8, 1], strides = [1, 1]} : vector<64x1xf32> to vector<8x1xf32>
    %254 = arith.maximumf %246, %247 : vector<8x1xf32>
    %255 = arith.maximumf %254, %248 : vector<8x1xf32>
    %256 = arith.maximumf %255, %249 : vector<8x1xf32>
    %257 = arith.maximumf %256, %250 : vector<8x1xf32>
    %258 = arith.maximumf %257, %251 : vector<8x1xf32>
    %259 = arith.maximumf %258, %252 : vector<8x1xf32>
    %260 = arith.maximumf %259, %253 : vector<8x1xf32>
    %261 = arith.subf %246, %260 : vector<8x1xf32>
    %262 = math.exp %261 : vector<8x1xf32>
    %263 = arith.subf %247, %260 : vector<8x1xf32>
    %264 = math.exp %263 : vector<8x1xf32>
    %265 = arith.subf %248, %260 : vector<8x1xf32>
    %266 = math.exp %265 : vector<8x1xf32>
    %267 = arith.subf %249, %260 : vector<8x1xf32>
    %268 = math.exp %267 : vector<8x1xf32>
    %269 = arith.subf %250, %260 : vector<8x1xf32>
    %270 = math.exp %269 : vector<8x1xf32>
    %271 = arith.subf %251, %260 : vector<8x1xf32>
    %272 = math.exp %271 : vector<8x1xf32>
    %273 = arith.subf %252, %260 : vector<8x1xf32>
    %274 = math.exp %273 : vector<8x1xf32>
    %275 = arith.subf %253, %260 : vector<8x1xf32>
    %276 = math.exp %275 : vector<8x1xf32>
    %277 = arith.addf %262, %264 : vector<8x1xf32>
    %278 = arith.addf %277, %266 : vector<8x1xf32>
    %279 = arith.addf %278, %268 : vector<8x1xf32>
    %280 = arith.addf %279, %270 : vector<8x1xf32>
    %281 = arith.addf %280, %272 : vector<8x1xf32>
    %282 = arith.addf %281, %274 : vector<8x1xf32>
    %283 = arith.addf %282, %276 : vector<8x1xf32>
    %284 = tpu.reciprocal %283 : vector<8x1xf32> -> vector<8x1xf32>
    %285 = arith.mulf %262, %284 : vector<8x1xf32>
    %286 = arith.mulf %264, %284 : vector<8x1xf32>
    %287 = arith.mulf %266, %284 : vector<8x1xf32>
    %288 = arith.mulf %268, %284 : vector<8x1xf32>
    %289 = arith.mulf %270, %284 : vector<8x1xf32>
    %290 = arith.mulf %272, %284 : vector<8x1xf32>
    %291 = arith.mulf %274, %284 : vector<8x1xf32>
    %292 = arith.mulf %276, %284 : vector<8x1xf32>
    %293 = tpu.concatenate %285, %286, %287, %288, %289, %290, %291, %292 in 0 : vector<8x1xf32>, vector<8x1xf32>, vector<8x1xf32>, vector<8x1xf32>, vector<8x1xf32>, vector<8x1xf32>, vector<8x1xf32>, vector<8x1xf32> -> vector<64x1xf32>
    %c0_42 = arith.constant 0 : index
    %c0_43 = arith.constant 0 : index
    %294 = vector.load %arg9[%c0_42, %c0_43] : memref<128x128xf32, #tpu.memory_space<vmem>>, vector<128x128xf32>
    %cst_44 = arith.constant dense<0.000000e+00> : vector<64x128xf32>
    %295 = tpu.matmul %237, %294, %cst_44 {dimension_numbers = #tpu.dot_dimension_numbers<[1], [0], [0], [1], [0, 0, 1, 1], [], []>} : vector<64x128xf32>, vector<128x128xf32>, vector<64x128xf32> -> vector<64x128xf32>
    %c0_45 = arith.constant 0 : index
    %c0_46 = arith.constant 0 : index
    %296 = vector.load %arg10[%c0_45, %c0_46] : memref<1x128xf32, #tpu.memory_space<vmem>>, vector<1x128xf32>
    %297 = vector.broadcast %296 : vector<1x128xf32> to vector<64x128xf32>
    %298 = arith.addf %295, %297 : vector<64x128xf32>
    %299 = math.tanh %298 : vector<64x128xf32>
    %300 = vector.extract_strided_slice %2 {offsets = [0, 0], sizes = [8, 128], strides = [1, 1]} : vector<64x128xf32> to vector<8x128xf32>
    %301 = vector.extract_strided_slice %2 {offsets = [8, 0], sizes = [8, 128], strides = [1, 1]} : vector<64x128xf32> to vector<8x128xf32>
    %302 = arith.addf %300, %301 : vector<8x128xf32>
    %303 = vector.extract_strided_slice %2 {offsets = [16, 0], sizes = [8, 128], strides = [1, 1]} : vector<64x128xf32> to vector<8x128xf32>
    %304 = arith.addf %302, %303 : vector<8x128xf32>
    %305 = vector.extract_strided_slice %2 {offsets = [24, 0], sizes = [8, 128], strides = [1, 1]} : vector<64x128xf32> to vector<8x128xf32>
    %306 = arith.addf %304, %305 : vector<8x128xf32>
    %307 = vector.extract_strided_slice %2 {offsets = [32, 0], sizes = [8, 128], strides = [1, 1]} : vector<64x128xf32> to vector<8x128xf32>
    %308 = arith.addf %306, %307 : vector<8x128xf32>
    %309 = vector.extract_strided_slice %2 {offsets = [40, 0], sizes = [8, 128], strides = [1, 1]} : vector<64x128xf32> to vector<8x128xf32>
    %310 = arith.addf %308, %309 : vector<8x128xf32>
    %311 = vector.extract_strided_slice %2 {offsets = [48, 0], sizes = [8, 128], strides = [1, 1]} : vector<64x128xf32> to vector<8x128xf32>
    %312 = arith.addf %310, %311 : vector<8x128xf32>
    %313 = vector.extract_strided_slice %2 {offsets = [56, 0], sizes = [8, 128], strides = [1, 1]} : vector<64x128xf32> to vector<8x128xf32>
    %314 = arith.addf %312, %313 : vector<8x128xf32>
    %c0_47 = arith.constant 0 : index
    %c0_48 = arith.constant 0 : index
    %315 = vector.load %arg11[%c0_47, %c0_48] : memref<1x128xf32, #tpu.memory_space<vmem>>, vector<1x128xf32>
    %316 = vector.broadcast %315 : vector<1x128xf32> to vector<8x128xf32>
    %317 = arith.mulf %314, %316 : vector<8x128xf32>
    %318 = vector.extract_strided_slice %299 {offsets = [0, 0], sizes = [8, 128], strides = [1, 1]} : vector<64x128xf32> to vector<8x128xf32>
    %319 = arith.mulf %318, %317 : vector<8x128xf32>
    %cst_49 = arith.constant dense<0.000000e+00> : vector<8xf32>
    %320 = vector.multi_reduction <add>, %319, %cst_49 [1] : vector<8x128xf32> to vector<8xf32>
    %321 = vector.shape_cast %320 : vector<8xf32> to vector<8x1xf32>
    %322 = vector.extract_strided_slice %299 {offsets = [8, 0], sizes = [8, 128], strides = [1, 1]} : vector<64x128xf32> to vector<8x128xf32>
    %323 = arith.mulf %322, %317 : vector<8x128xf32>
    %cst_50 = arith.constant dense<0.000000e+00> : vector<8xf32>
    %324 = vector.multi_reduction <add>, %323, %cst_50 [1] : vector<8x128xf32> to vector<8xf32>
    %325 = vector.shape_cast %324 : vector<8xf32> to vector<8x1xf32>
    %326 = vector.extract_strided_slice %299 {offsets = [16, 0], sizes = [8, 128], strides = [1, 1]} : vector<64x128xf32> to vector<8x128xf32>
    %327 = arith.mulf %326, %317 : vector<8x128xf32>
    %cst_51 = arith.constant dense<0.000000e+00> : vector<8xf32>
    %328 = vector.multi_reduction <add>, %327, %cst_51 [1] : vector<8x128xf32> to vector<8xf32>
    %329 = vector.shape_cast %328 : vector<8xf32> to vector<8x1xf32>
    %330 = vector.extract_strided_slice %299 {offsets = [24, 0], sizes = [8, 128], strides = [1, 1]} : vector<64x128xf32> to vector<8x128xf32>
    %331 = arith.mulf %330, %317 : vector<8x128xf32>
    %cst_52 = arith.constant dense<0.000000e+00> : vector<8xf32>
    %332 = vector.multi_reduction <add>, %331, %cst_52 [1] : vector<8x128xf32> to vector<8xf32>
    %333 = vector.shape_cast %332 : vector<8xf32> to vector<8x1xf32>
    %334 = vector.extract_strided_slice %299 {offsets = [32, 0], sizes = [8, 128], strides = [1, 1]} : vector<64x128xf32> to vector<8x128xf32>
    %335 = arith.mulf %334, %317 : vector<8x128xf32>
    %cst_53 = arith.constant dense<0.000000e+00> : vector<8xf32>
    %336 = vector.multi_reduction <add>, %335, %cst_53 [1] : vector<8x128xf32> to vector<8xf32>
    %337 = vector.shape_cast %336 : vector<8xf32> to vector<8x1xf32>
    %338 = vector.extract_strided_slice %299 {offsets = [40, 0], sizes = [8, 128], strides = [1, 1]} : vector<64x128xf32> to vector<8x128xf32>
    %339 = arith.mulf %338, %317 : vector<8x128xf32>
    %cst_54 = arith.constant dense<0.000000e+00> : vector<8xf32>
    %340 = vector.multi_reduction <add>, %339, %cst_54 [1] : vector<8x128xf32> to vector<8xf32>
    %341 = vector.shape_cast %340 : vector<8xf32> to vector<8x1xf32>
    %342 = vector.extract_strided_slice %299 {offsets = [48, 0], sizes = [8, 128], strides = [1, 1]} : vector<64x128xf32> to vector<8x128xf32>
    %343 = arith.mulf %342, %317 : vector<8x128xf32>
    %cst_55 = arith.constant dense<0.000000e+00> : vector<8xf32>
    %344 = vector.multi_reduction <add>, %343, %cst_55 [1] : vector<8x128xf32> to vector<8xf32>
    %345 = vector.shape_cast %344 : vector<8xf32> to vector<8x1xf32>
    %346 = vector.extract_strided_slice %299 {offsets = [56, 0], sizes = [8, 128], strides = [1, 1]} : vector<64x128xf32> to vector<8x128xf32>
    %347 = arith.mulf %346, %317 : vector<8x128xf32>
    %cst_56 = arith.constant dense<0.000000e+00> : vector<8xf32>
    %348 = vector.multi_reduction <add>, %347, %cst_56 [1] : vector<8x128xf32> to vector<8xf32>
    %349 = vector.shape_cast %348 : vector<8xf32> to vector<8x1xf32>
    %350 = tpu.concatenate %321, %325, %329, %333, %337, %341, %345, %349 in 0 : vector<8x1xf32>, vector<8x1xf32>, vector<8x1xf32>, vector<8x1xf32>, vector<8x1xf32>, vector<8x1xf32>, vector<8x1xf32>, vector<8x1xf32> -> vector<64x1xf32>
    %351 = arith.mulf %293, %350 : vector<64x1xf32>
    %c0_57 = arith.constant 0 : index
    %c0_58 = arith.constant 0 : index
    %352 = vector.load %arg12[%c0_57, %c0_58] : memref<1x1xf32, #tpu.memory_space<vmem>>, vector<1x1xf32>
    %353 = vector.broadcast %352 : vector<1x1xf32> to vector<64x1xf32>
    %354 = arith.addf %351, %353 : vector<64x1xf32>
    %355 = arith.negf %354 : vector<64x1xf32>
    %356 = math.exp %355 : vector<64x1xf32>
    %cst_59 = arith.constant 1.000000e+00 : f32
    %357 = vector.broadcast %cst_59 : f32 to vector<64x1xf32>
    %358 = arith.addf %357, %356 : vector<64x1xf32>
    %359 = arith.divf %357, %358 : vector<64x1xf32>
    %c0_60 = arith.constant 0 : index
    %c0_61 = arith.constant 0 : index
    %360 = vector.load %arg13[%c0_60, %c0_61] : memref<64x1xf32, #tpu.memory_space<vmem>>, vector<64x1xf32>
    tpu.vector_store %arg13[%c0_60, %c0_61], %359 {strides = array<i32>} : memref<64x1xf32, #tpu.memory_space<vmem>>, vector<64x1xf32>,
    return
  }
  func.func @transform_0(%arg0: i32) -> (i32, i32) {
    %c0_i32 = arith.constant 0 : i32
    %c0_i32_0 = arith.constant 0 : i32
    return %arg0, %c0_i32 : i32, i32
  }
  func.func @transform_1(%arg0: i32) -> (i32, i32) {
    %c0_i32 = arith.constant 0 : i32
    %c0_i32_0 = arith.constant 0 : i32
    %c0_i32_1 = arith.constant 0 : i32
    return %c0_i32, %c0_i32_0 : i32, i32
  }
  func.func @transform_2(%arg0: i32) -> (i32, i32) {
    %c0_i32 = arith.constant 0 : i32
    %c0_i32_0 = arith.constant 0 : i32
    %c0_i32_1 = arith.constant 0 : i32
    return %c0_i32, %c0_i32_0 : i32, i32
  }
  func.func @transform_3(%arg0: i32) -> (i32, i32) {
    %c0_i32 = arith.constant 0 : i32
    %c0_i32_0 = arith.constant 0 : i32
    %c0_i32_1 = arith.constant 0 : i32
    return %c0_i32, %c0_i32_0 : i32, i32
  }
  func.func @transform_4(%arg0: i32) -> (i32, i32) {
    %c0_i32 = arith.constant 0 : i32
    %c0_i32_0 = arith.constant 0 : i32
    %c0_i32_1 = arith.constant 0 : i32
    return %c0_i32, %c0_i32_0 : i32, i32
  }
  func.func @transform_5(%arg0: i32) -> (i32, i32) {
    %c0_i32 = arith.constant 0 : i32
    %c0_i32_0 = arith.constant 0 : i32
    %c0_i32_1 = arith.constant 0 : i32
    return %c0_i32, %c0_i32_0 : i32, i32
  }
  func.func @transform_6(%arg0: i32) -> (i32, i32) {
    %c0_i32 = arith.constant 0 : i32
    %c0_i32_0 = arith.constant 0 : i32
    %c0_i32_1 = arith.constant 0 : i32
    return %c0_i32, %c0_i32_0 : i32, i32
  }
  func.func @transform_7(%arg0: i32) -> (i32, i32) {
    %c0_i32 = arith.constant 0 : i32
    %c0_i32_0 = arith.constant 0 : i32
    %c0_i32_1 = arith.constant 0 : i32
    return %c0_i32, %c0_i32_0 : i32, i32
  }
  func.func @transform_8(%arg0: i32) -> (i32, i32) {
    %c0_i32 = arith.constant 0 : i32
    %c0_i32_0 = arith.constant 0 : i32
    %c0_i32_1 = arith.constant 0 : i32
    return %c0_i32, %c0_i32_0 : i32, i32
  }
  func.func @transform_9(%arg0: i32) -> (i32, i32) {
    %c0_i32 = arith.constant 0 : i32
    %c0_i32_0 = arith.constant 0 : i32
    %c0_i32_1 = arith.constant 0 : i32
    return %c0_i32, %c0_i32_0 : i32, i32
  }
  func.func @transform_10(%arg0: i32) -> (i32, i32) {
    %c0_i32 = arith.constant 0 : i32
    %c0_i32_0 = arith.constant 0 : i32
    %c0_i32_1 = arith.constant 0 : i32
    return %c0_i32, %c0_i32_0 : i32, i32
  }
  func.func @transform_11(%arg0: i32) -> (i32, i32) {
    %c0_i32 = arith.constant 0 : i32
    %c0_i32_0 = arith.constant 0 : i32
    %c0_i32_1 = arith.constant 0 : i32
    return %c0_i32, %c0_i32_0 : i32, i32
  }
  func.func @transform_12(%arg0: i32) -> (i32, i32) {
    %c0_i32 = arith.constant 0 : i32
    %c0_i32_0 = arith.constant 0 : i32
    return %arg0, %c0_i32 : i32, i32
  }
}

</mosaic_0001>

<llo_original>
// kernel: retain_forward.1
$region0: #{retain_forward.1}
  #allocation0 [shape = 'u32[]', space=smem, size = 0x4, offset = 0x4, fixed_abs, tag = 'smem constant byte address 0x4 - core index']
  #allocation1 [shape = 'u32[72,128]{1,0:T(1,128)}', space=vmem, size = 0x9000, scoped, tag = 'internal scratch']
  #allocation2 [shape = 'f32[1,1]{1,0:T(1,128)S(1)}', space=vmem, size = 0x200, scoped, tag = 'scoped memory for retain_forward.1']
  #allocation3 [shape = 'f32[1,1]{1,0:T(1,128)S(1)}', space=vmem, size = 0x200, scoped, tag = 'scoped memory for retain_forward.1']
  %s0 = inlined_call_operand.vmem [shape: f32[128,128], index: 0, kind: input, shape index: {}]
  %s1 = inlined_call_operand.vmem [shape: f32[128,128], index: 1, kind: input, shape index: {}]
  %s2 = inlined_call_operand.vmem [shape: f32[128,768], index: 2, kind: input, shape index: {}]
  %s3 = inlined_call_operand.vmem [shape: f32[1,768], index: 3, kind: input, shape index: {}]
  %s4 = inlined_call_operand.vmem [shape: f32[256,768], index: 4, kind: input, shape index: {}]
  %s5 = inlined_call_operand.vmem [shape: f32[1,768], index: 5, kind: input, shape index: {}]
  %s6 = inlined_call_operand.vmem [shape: f32[1,128], index: 6, kind: input, shape index: {}]
  %s7 = inlined_call_operand.<no memory space> [shape: f32[1,1], index: 7, kind: input, shape index: {}]
  %s8 = inlined_call_operand.vmem [shape: f32[128,128], index: 8, kind: input, shape index: {}]
  %s9 = inlined_call_operand.vmem [shape: f32[1,128], index: 9, kind: input, shape index: {}]
  %s10 = inlined_call_operand.vmem [shape: f32[1,128], index: 10, kind: input, shape index: {}]
  %s11 = inlined_call_operand.<no memory space> [shape: f32[1,1], index: 11, kind: input, shape index: {}]
  %s12 = inlined_call_operand.vmem [shape: f32[128,1], index: 12, kind: output, shape index: {}]
  %s13 = sld [smem:[#allocation0]]
  $region81: #{retain_forward.1} parent=0
    _
  %s15 = ssub.s32 1, %s13
  %s16 = scalar_select 0, %s15, %s13
  %v17 = vstv %s7
  %18 = vst [vmem:[#allocation2] sm:$0x1] %v17
  %v19 = vstv %s11
  %20 = vst [vmem:[#allocation3] sm:$0x1] %v19
  loop: start=0, step=1, limit=4
  $region2: #{retain_forward.1} parent=0 // loop_pre_header
    _
  $region3: #{retain_forward.1} parent=0 // loop_header
    %s22 = sphi 0, %s26
    %p23 = scmp.ge.s32.totalorder %s22, 4
    %s32 = sphi 0, %s34
    %s35 = sphi 0, %s32
    %s36 = sphi 0, %s35
    %s52 = sphi 0, %s36
    %s56 = sphi 0, %s56
    %s58 = sphi 0, %s56
    %s59 = sphi 0, %s58
    %s73 = sphi 0, %s59
    %s77 = sphi 0, %s77
    %s79 = sphi 0, %s77
    %s80 = sphi 0, %s79
    %s94 = sphi 0, %s80
    %s98 = sphi 0, %s98
    %s100 = sphi 0, %s98
    %s101 = sphi 0, %s100
    %s115 = sphi 0, %s101
    %s119 = sphi 0, %s119
    %s121 = sphi 0, %s119
    %s122 = sphi 0, %s121
    %s136 = sphi 0, %s122
    %s140 = sphi 0, %s140
    %s142 = sphi 0, %s140
    %s143 = sphi 0, %s142
    %s157 = sphi 0, %s143
    %s161 = sphi 0, %s161
    %s163 = sphi 0, %s161
    %s164 = sphi 0, %s163
    %s178 = sphi 0, %s164
    %s182 = sphi 0, %s182
    %s184 = sphi 0, %s182
    %s185 = sphi 0, %s184
    %s199 = sphi 0, %s185
    %s203 = sphi 0, %s203
    %s205 = sphi 0, %s203
    %s206 = sphi 0, %s205
    %s220 = sphi 0, %s206
    %s224 = sphi 0, %s224
    %s226 = sphi 0, %s224
    %s227 = sphi 0, %s226
    %s241 = sphi 0, %s227
    %s245 = sphi 0, %s245
    %s247 = sphi 0, %s245
    %s248 = sphi 0, %s247
    %s262 = sphi 0, %s248
    %s266 = sphi 0, %s266
    %s268 = sphi 0, %s266
    %s269 = sphi 0, %s268
    %s283 = sphi 0, %s269
    %s289 = sphi 0, %s291
    %s292 = sphi 0, %s289
    %s293 = sphi 0, %s292
    %s309 = sphi 0, %s293
  $region4: #{retain_forward.1} parent=0 // loop_header_branch
    %25 = sbr.rel (%p23) target = $region8
  $region5: #{retain_forward.1} parent=0 // loop_body
    %s27 = ssub.s32 %s22, 1
    %s28 = ssub.s32 %s22, 2
    %s29 = sadd.s32 %s22, 1
    %s30 = ssub.s32 %s22, %s29
    %p31 = scmp.eq.s32.totalorder %s30, 0
    %s33 = sadd.s32 %s32, 1
    %s34 = scalar_select %p31, %s32, %s33
    %p37 = pneg %p31
    %p38 = scmp.eq.s32.totalorder %s22, 1
    %p39 = por %p37, %p38
    %p40 = scmp.ne.s32.totalorder %s32, %s35
    %p41 = scmp.eq.s32.totalorder %s22, 0
    %p42 = por %p40, %p41
    %p43 = scmp.ne.s32.totalorder %s32, %s35
    %p44 = scmp.eq.s32.totalorder %s27, 1
    %p45 = por %p43, %p44
    %p46 = scmp.ne.s32.totalorder %s35, %s36
    %p47 = scmp.eq.s32.totalorder %s27, 0
    %p48 = por %p46, %p47
    %p49 = scmp.ne.s32.totalorder %s35, %s36
    %p50 = scmp.eq.s32.totalorder %s28, 1
    %p51 = por %p49, %p50
    %p53 = scmp.ne.s32.totalorder %s36, %s52
    %p54 = scmp.eq.s32.totalorder %s28, 0
    %p55 = por %p53, %p54
    %s57 = sadd.s32 %s56, 1
    %p60 = scmp.eq.s32.totalorder %s22, 1
    %p61 = scmp.ne.s32.totalorder %s56, %s58
    %p62 = scmp.eq.s32.totalorder %s22, 0
    %p63 = por %p61, %p62
    %p64 = scmp.ne.s32.totalorder %s56, %s58
    %p65 = scmp.eq.s32.totalorder %s27, 1
    %p66 = por %p64, %p65
    %p67 = scmp.ne.s32.totalorder %s58, %s59
    %p68 = scmp.eq.s32.totalorder %s27, 0
    %p69 = por %p67, %p68
    %p70 = scmp.ne.s32.totalorder %s58, %s59
    %p71 = scmp.eq.s32.totalorder %s28, 1
    %p72 = por %p70, %p71
    %p74 = scmp.ne.s32.totalorder %s59, %s73
    %p75 = scmp.eq.s32.totalorder %s28, 0
    %p76 = por %p74, %p75
    %s78 = sadd.s32 %s77, 1
    %p81 = scmp.eq.s32.totalorder %s22, 1
    %p82 = scmp.ne.s32.totalorder %s77, %s79
    %p83 = scmp.eq.s32.totalorder %s22, 0
    %p84 = por %p82, %p83
    %p85 = scmp.ne.s32.totalorder %s77, %s79
    %p86 = scmp.eq.s32.totalorder %s27, 1
    %p87 = por %p85, %p86
    %p88 = scmp.ne.s32.totalorder %s79, %s80
    %p89 = scmp.eq.s32.totalorder %s27, 0
    %p90 = por %p88, %p89
    %p91 = scmp.ne.s32.totalorder %s79, %s80
    %p92 = scmp.eq.s32.totalorder %s28, 1
    %p93 = por %p91, %p92
    %p95 = scmp.ne.s32.totalorder %s80, %s94
    %p96 = scmp.eq.s32.totalorder %s28, 0
    %p97 = por %p95, %p96
    %s99 = sadd.s32 %s98, 1
    %p102 = scmp.eq.s32.totalorder %s22, 1
    %p103 = scmp.ne.s32.totalorder %s98, %s100
    %p104 = scmp.eq.s32.totalorder %s22, 0
    %p105 = por %p103, %p104
    %p106 = scmp.ne.s32.totalorder %s98, %s100
    %p107 = scmp.eq.s32.totalorder %s27, 1
    %p108 = por %p106, %p107
    %p109 = scmp.ne.s32.totalorder %s100, %s101
    %p110 = scmp.eq.s32.totalorder %s27, 0
    %p111 = por %p109, %p110
    %p112 = scmp.ne.s32.totalorder %s100, %s101
    %p113 = scmp.eq.s32.totalorder %s28, 1
    %p114 = por %p112, %p113
    %p116 = scmp.ne.s32.totalorder %s101, %s115
    %p117 = scmp.eq.s32.totalorder %s28, 0
    %p118 = por %p116, %p117
    %s120 = sadd.s32 %s119, 1
    %p123 = scmp.eq.s32.totalorder %s22, 1
    %p124 = scmp.ne.s32.totalorder %s119, %s121
    %p125 = scmp.eq.s32.totalorder %s22, 0
    %p126 = por %p124, %p125
    %p127 = scmp.ne.s32.totalorder %s119, %s121
    %p128 = scmp.eq.s32.totalorder %s27, 1
    %p129 = por %p127, %p128
    %p130 = scmp.ne.s32.totalorder %s121, %s122
    %p131 = scmp.eq.s32.totalorder %s27, 0
    %p132 = por %p130, %p131
    %p133 = scmp.ne.s32.totalorder %s121, %s122
    %p134 = scmp.eq.s32.totalorder %s28, 1
    %p135 = por %p133, %p134
    %p137 = scmp.ne.s32.totalorder %s122, %s136
    %p138 = scmp.eq.s32.totalorder %s28, 0
    %p139 = por %p137, %p138
    %s141 = sadd.s32 %s140, 1
    %p144 = scmp.eq.s32.totalorder %s22, 1
    %p145 = scmp.ne.s32.totalorder %s140, %s142
    %p146 = scmp.eq.s32.totalorder %s22, 0
    %p147 = por %p145, %p146
    %p148 = scmp.ne.s32.totalorder %s140, %s142
    %p149 = scmp.eq.s32.totalorder %s27, 1
    %p150 = por %p148, %p149
    %p151 = scmp.ne.s32.totalorder %s142, %s143
    %p152 = scmp.eq.s32.totalorder %s27, 0
    %p153 = por %p151, %p152
    %p154 = scmp.ne.s32.totalorder %s142, %s143
    %p155 = scmp.eq.s32.totalorder %s28, 1
    %p156 = por %p154, %p155
    %p158 = scmp.ne.s32.totalorder %s143, %s157
    %p159 = scmp.eq.s32.totalorder %s28, 0
    %p160 = por %p158, %p159
    %s162 = sadd.s32 %s161, 1
    %p165 = scmp.eq.s32.totalorder %s22, 1
    %p166 = scmp.ne.s32.totalorder %s161, %s163
    %p167 = scmp.eq.s32.totalorder %s22, 0
    %p168 = por %p166, %p167
    %p169 = scmp.ne.s32.totalorder %s161, %s163
    %p170 = scmp.eq.s32.totalorder %s27, 1
    %p171 = por %p169, %p170
    %p172 = scmp.ne.s32.totalorder %s163, %s164
    %p173 = scmp.eq.s32.totalorder %s27, 0
    %p174 = por %p172, %p173
    %p175 = scmp.ne.s32.totalorder %s163, %s164
    %p176 = scmp.eq.s32.totalorder %s28, 1
    %p177 = por %p175, %p176
    %p179 = scmp.ne.s32.totalorder %s164, %s178
    %p180 = scmp.eq.s32.totalorder %s28, 0
    %p181 = por %p179, %p180
    %s183 = sadd.s32 %s182, 1
    %p186 = scmp.eq.s32.totalorder %s22, 1
    %p187 = scmp.ne.s32.totalorder %s182, %s184
    %p188 = scmp.eq.s32.totalorder %s22, 0
    %p189 = por %p187, %p188
    %p190 = scmp.ne.s32.totalorder %s182, %s184
    %p191 = scmp.eq.s32.totalorder %s27, 1
    %p192 = por %p190, %p191
    %p193 = scmp.ne.s32.totalorder %s184, %s185
    %p194 = scmp.eq.s32.totalorder %s27, 0
    %p195 = por %p193, %p194
    %p196 = scmp.ne.s32.totalorder %s184, %s185
    %p197 = scmp.eq.s32.totalorder %s28, 1
    %p198 = por %p196, %p197
    %p200 = scmp.ne.s32.totalorder %s185, %s199
    %p201 = scmp.eq.s32.totalorder %s28, 0
    %p202 = por %p200, %p201
    %s204 = sadd.s32 %s203, 1
    %p207 = scmp.eq.s32.totalorder %s22, 1
    %p208 = scmp.ne.s32.totalorder %s203, %s205
    %p209 = scmp.eq.s32.totalorder %s22, 0
    %p210 = por %p208, %p209
    %p211 = scmp.ne.s32.totalorder %s203, %s205
    %p212 = scmp.eq.s32.totalorder %s27, 1
    %p213 = por %p211, %p212
    %p214 = scmp.ne.s32.totalorder %s205, %s206
    %p215 = scmp.eq.s32.totalorder %s27, 0
    %p216 = por %p214, %p215
    %p217 = scmp.ne.s32.totalorder %s205, %s206
    %p218 = scmp.eq.s32.totalorder %s28, 1
    %p219 = por %p217, %p218
    %p221 = scmp.ne.s32.totalorder %s206, %s220
    %p222 = scmp.eq.s32.totalorder %s28, 0
    %p223 = por %p221, %p222
    %s225 = sadd.s32 %s224, 1
    %p228 = scmp.eq.s32.totalorder %s22, 1
    %p229 = scmp.ne.s32.totalorder %s224, %s226
    %p230 = scmp.eq.s32.totalorder %s22, 0
    %p231 = por %p229, %p230
    %p232 = scmp.ne.s32.totalorder %s224, %s226
    %p233 = scmp.eq.s32.totalorder %s27, 1
    %p234 = por %p232, %p233
    %p235 = scmp.ne.s32.totalorder %s226, %s227
    %p236 = scmp.eq.s32.totalorder %s27, 0
    %p237 = por %p235, %p236
    %p238 = scmp.ne.s32.totalorder %s226, %s227
    %p239 = scmp.eq.s32.totalorder %s28, 1
    %p240 = por %p238, %p239
    %p242 = scmp.ne.s32.totalorder %s227, %s241
    %p243 = scmp.eq.s32.totalorder %s28, 0
    %p244 = por %p242, %p243
    %s246 = sadd.s32 %s245, 1
    %p249 = scmp.eq.s32.totalorder %s22, 1
    %p250 = scmp.ne.s32.totalorder %s245, %s247
    %p251 = scmp.eq.s32.totalorder %s22, 0
    %p252 = por %p250, %p251
    %p253 = scmp.ne.s32.totalorder %s245, %s247
    %p254 = scmp.eq.s32.totalorder %s27, 1
    %p255 = por %p253, %p254
    %p256 = scmp.ne.s32.totalorder %s247, %s248
    %p257 = scmp.eq.s32.totalorder %s27, 0
    %p258 = por %p256, %p257
    %p259 = scmp.ne.s32.totalorder %s247, %s248
    %p260 = scmp.eq.s32.totalorder %s28, 1
    %p261 = por %p259, %p260
    %p263 = scmp.ne.s32.totalorder %s248, %s262
    %p264 = scmp.eq.s32.totalorder %s28, 0
    %p265 = por %p263, %p264
    %s267 = sadd.s32 %s266, 1
    %p270 = scmp.eq.s32.totalorder %s22, 1
    %p271 = scmp.ne.s32.totalorder %s266, %s268
    %p272 = scmp.eq.s32.totalorder %s22, 0
    %p273 = por %p271, %p272
    %p274 = scmp.ne.s32.totalorder %s266, %s268
    %p275 = scmp.eq.s32.totalorder %s27, 1
    %p276 = por %p274, %p275
    %p277 = scmp.ne.s32.totalorder %s268, %s269
    %p278 = scmp.eq.s32.totalorder %s27, 0
    %p279 = por %p277, %p278
    %p280 = scmp.ne.s32.totalorder %s268, %s269
    %p281 = scmp.eq.s32.totalorder %s28, 1
    %p282 = por %p280, %p281
    %p284 = scmp.ne.s32.totalorder %s269, %s283
    %p285 = scmp.eq.s32.totalorder %s28, 0
    %p286 = por %p284, %p285
    %s287 = ssub.s32 %s22, %s29
    %p288 = scmp.eq.s32.totalorder %s287, 0
    %s290 = sadd.s32 %s289, 1
    %s291 = scalar_select %p288, %s289, %s290
    %p294 = pneg %p288
    %p295 = scmp.eq.s32.totalorder %s22, 1
    %p296 = por %p294, %p295
    %p297 = scmp.ne.s32.totalorder %s289, %s292
    %p298 = scmp.eq.s32.totalorder %s22, 0
    %p299 = por %p297, %p298
    %p300 = scmp.ne.s32.totalorder %s289, %s292
    %p301 = scmp.eq.s32.totalorder %s27, 1
    %p302 = por %p300, %p301
    %p303 = scmp.ne.s32.totalorder %s292, %s293
    %p304 = scmp.eq.s32.totalorder %s27, 0
    %p305 = por %p303, %p304
    %p306 = scmp.ne.s32.totalorder %s292, %s293
    %p307 = scmp.eq.s32.totalorder %s28, 1
    %p308 = por %p306, %p307
    %p310 = scmp.ne.s32.totalorder %s293, %s309
    %p311 = scmp.eq.s32.totalorder %s28, 0
    %p312 = por %p310, %p311
    %p313 = scmp.le.s32.totalorder 1, %s22
    %p314 = scmp.lt.s32.totalorder %s22, 3
    %p315 = pnand %p313, %p314
    %p316 = pneg %p315
    // Predicated region
    $region9: #{retain_forward.1} parent=5 // pred_check
      _
    $region10: #{retain_forward.1} parent=5 // pred_check_branch
      %318 = sbr.rel (%p315) target = $region12
    $region11: #{retain_forward.1} parent=5 // pred_region
      %s319 = ssub.s32 %s22, 1
      // Predicated region
      $region13: #{retain_forward.1} parent=11 // pred_check
        %p320 = pneg %p69
      $region14: #{retain_forward.1} parent=11 // pred_check_branch
        %322 = sbr.rel (%p320) target = $region16
      $region15: #{retain_forward.1} parent=11 // pred_region
        _
      $region16: #{retain_forward.1} parent=11 // pred_fallthru
        _
      // Predicated region
      $region17: #{retain_forward.1} parent=11 // pred_check
        %p323 = pneg %p90
      $region18: #{retain_forward.1} parent=11 // pred_check_branch
        %325 = sbr.rel (%p323) target = $region20
      $region19: #{retain_forward.1} parent=11 // pred_region
        _
      $region20: #{retain_forward.1} parent=11 // pred_fallthru
        _
      // Predicated region
      $region21: #{retain_forward.1} parent=11 // pred_check
        %p326 = pneg %p111
      $region22: #{retain_forward.1} parent=11 // pred_check_branch
        %328 = sbr.rel (%p326) target = $region24
      $region23: #{retain_forward.1} parent=11 // pred_region
        _
      $region24: #{retain_forward.1} parent=11 // pred_fallthru
        _
      // Predicated region
      $region25: #{retain_forward.1} parent=11 // pred_check
        %p329 = pneg %p132
      $region26: #{retain_forward.1} parent=11 // pred_check_branch
        %331 = sbr.rel (%p329) target = $region28
      $region27: #{retain_forward.1} parent=11 // pred_region
        _
      $region28: #{retain_forward.1} parent=11 // pred_fallthru
        _
      // Predicated region
      $region29: #{retain_forward.1} parent=11 // pred_check
        %p332 = pneg %p153
      $region30: #{retain_forward.1} parent=11 // pred_check_branch
        %334 = sbr.rel (%p332) target = $region32
      $region31: #{retain_forward.1} parent=11 // pred_region
        _
      $region32: #{retain_forward.1} parent=11 // pred_fallthru
        _
      // Predicated region
      $region33: #{retain_forward.1} parent=11 // pred_check
        %p335 = pneg %p174
      $region34: #{retain_forward.1} parent=11 // pred_check_branch
        %337 = sbr.rel (%p335) target = $region36
      $region35: #{retain_forward.1} parent=11 // pred_region
        _
      $region36: #{retain_forward.1} parent=11 // pred_fallthru
        _
      // Predicated region
      $region37: #{retain_forward.1} parent=11 // pred_check
        %p338 = pneg %p195
      $region38: #{retain_forward.1} parent=11 // pred_check_branch
        %340 = sbr.rel (%p338) target = $region40
      $region39: #{retain_forward.1} parent=11 // pred_region
        _
      $region40: #{retain_forward.1} parent=11 // pred_fallthru
        _
      // Predicated region
      $region41: #{retain_forward.1} parent=11 // pred_check
        %p341 = pneg %p216
      $region42: #{retain_forward.1} parent=11 // pred_check_branch
        %343 = sbr.rel (%p341) target = $region44
      $region43: #{retain_forward.1} parent=11 // pred_region
        _
      $region44: #{retain_forward.1} parent=11 // pred_fallthru
        _
      // Predicated region
      $region45: #{retain_forward.1} parent=11 // pred_check
        %p344 = pneg %p237
      $region46: #{retain_forward.1} parent=11 // pred_check_branch
        %346 = sbr.rel (%p344) target = $region48
      $region47: #{retain_forward.1} parent=11 // pred_region
        _
      $region48: #{retain_forward.1} parent=11 // pred_fallthru
        _
      // Predicated region
      $region49: #{retain_forward.1} parent=11 // pred_check
        %p347 = pneg %p258
      $region50: #{retain_forward.1} parent=11 // pred_check_branch
        %349 = sbr.rel (%p347) target = $region52
      $region51: #{retain_forward.1} parent=11 // pred_region
        _
      $region52: #{retain_forward.1} parent=11 // pred_fallthru
        _
      // Predicated region
      $region53: #{retain_forward.1} parent=11 // pred_check
        %p350 = pneg %p279
      $region54: #{retain_forward.1} parent=11 // pred_check_branch
        %352 = sbr.rel (%p350) target = $region56
      $region55: #{retain_forward.1} parent=11 // pred_region
        _
      $region56: #{retain_forward.1} parent=11 // pred_fallthru
        _
    $region12: #{retain_forward.1} parent=5 // pred_fallthru
      _
    %p353 = scmp.lt.s32.totalorder %s22, 2
    // Predicated region
    $region57: #{retain_forward.1} parent=5 // pred_check
      %p354 = pneg %p353
    $region58: #{retain_forward.1} parent=5 // pred_check_branch
      %356 = sbr.rel (%p354) target = $region60
    $region59: #{retain_forward.1} parent=5 // pred_region
      // Predicated region
      $region61: #{retain_forward.1} parent=59 // pred_check
        %p357 = pneg %p42
      $region62: #{retain_forward.1} parent=59 // pred_check_branch
        %359 = sbr.rel (%p357) target = $region64
      $region63: #{retain_forward.1} parent=59 // pred_region
        %s360 = smul.u32 8, %s22
        %p361 = scmp.lt.s32.totalorder %s360, 15
        %s362 = scalar_select %p361, %s360, 15
        %s363 = smul.addr %s362, 8
        %s364 = scalar_lea.vmem %s0, %s363
        %s365 = smul.u32 8, %s22
      $region64: #{retain_forward.1} parent=59 // pred_fallthru
        _
    $region60: #{retain_forward.1} parent=5 // pred_fallthru
      _
    %p366 = scmp.le.s32.totalorder 1, %s22
    %p367 = scmp.lt.s32.totalorder %s22, 3
    %p368 = pnand %p366, %p367
    %p369 = pneg %p368
    // Predicated region
    $region65: #{retain_forward.1} parent=5 // pred_check
      _
    $region66: #{retain_forward.1} parent=5 // pred_check_branch
      %371 = sbr.rel (%p368) target = $region68
    $region67: #{retain_forward.1} parent=5 // pred_region
      %s372 = ssub.s32 %s22, 1
      %s373 = smul.u32 8, %s27
      %p374 = scmp.lt.s32.totalorder %s373, 15
      %s375 = scalar_select %p374, %s373, 15
      %s376 = smul.addr %s375, 8
      %s377 = scalar_lea.vmem %s0, %s376
      %p378 = pneg %p48
      %p379 = pneg %p45
      %p380 = pneg %p69
      %p381 = pneg %p66
      %p382 = pneg %p90
      %p383 = pneg %p87
      %p384 = pneg %p111
      %p385 = pneg %p108
      %p386 = pneg %p132
      %p387 = pneg %p129
      %p388 = pneg %p153
      %p389 = pneg %p150
      %p390 = pneg %p174
      %p391 = pneg %p171
      %p392 = pneg %p195
      %p393 = pneg %p192
      %p394 = pneg %p216
      %p395 = pneg %p213
      %p396 = pneg %p237
      %p397 = pneg %p234
      %p398 = pneg %p258
      %p399 = pneg %p255
      %p400 = pneg %p279
      %p401 = pneg %p276
      %p402 = pneg %p305
      %p403 = pneg %p302
      %s404 = smul.u32 8, %s27
      %p405 = scmp.lt.s32.totalorder %s404, 15
      %s406 = scalar_select %p405, %s404, 15
      %s407 = smul.addr %s406, 8
      %s408 = scalar_lea.vmem %s12, %s407
      %s409 = smul.u32 8, %s27
      %p410 = scmp.lt.s32.totalorder %s409, 15
      %s411 = scalar_select %p410, %s409, 15
      %s412 = smul.addr %s411, 8
      %s413 = scalar_lea.vmem %s0, %s412
      %s414 = smul.u32 8, %s27
      %s415 = smul.u32 8, %s27
      %p416 = scmp.lt.s32.totalorder %s415, 15
      %s417 = scalar_select %p416, %s415, 15
      %s418 = smul.addr %s417, 8
      %s419 = scalar_lea.vmem %s12, %s418
      %s420 = smul.u32 8, %s27
      %v421 = vld [vmem:[%s413] sm:$0xff]
      %v422 = vld [vmem:[%s413 + $0x8] sm:$0xff]
      %v423 = vld [vmem:[%s413 + $0x10] sm:$0xff]
      %v424 = vld [vmem:[%s413 + $0x18] sm:$0xff]
      %v425 = vld [vmem:[%s413 + $0x20] sm:$0xff]
      %v426 = vld [vmem:[%s413 + $0x28] sm:$0xff]
      %v427 = vld [vmem:[%s413 + $0x30] sm:$0xff]
      %v428 = vld [vmem:[%s413 + $0x38] sm:$0xff]
      %v429 = vld [vmem:[%s1] sm:$0xff]
      %v430 = vld [vmem:[%s1 + $0x8] sm:$0xff]
      %v431 = vld [vmem:[%s1 + $0x10] sm:$0xff]
      %v432 = vld [vmem:[%s1 + $0x18] sm:$0xff]
      %v433 = vld [vmem:[%s1 + $0x20] sm:$0xff]
      %v434 = vld [vmem:[%s1 + $0x28] sm:$0xff]
      %v435 = vld [vmem:[%s1 + $0x30] sm:$0xff]
      %v436 = vld [vmem:[%s1 + $0x38] sm:$0xff]
      %v437 = vld [vmem:[%s1 + $0x40] sm:$0xff]
      %v438 = vld [vmem:[%s1 + $0x48] sm:$0xff]
      %v439 = vld [vmem:[%s1 + $0x50] sm:$0xff]
      %v440 = vld [vmem:[%s1 + $0x58] sm:$0xff]
      %v441 = vld [vmem:[%s1 + $0x60] sm:$0xff]
      %v442 = vld [vmem:[%s1 + $0x68] sm:$0xff]
      %v443 = vld [vmem:[%s1 + $0x70] sm:$0xff]
      %v444 = vld [vmem:[%s1 + $0x78] sm:$0xff]
      %445 = vmatpush.msra.mxu0 %v444
      %446 = vmatpush.msra.mxu0 %v443
      %447 = vmatpush.msra.mxu0 %v442
      %448 = vmatpush.msra.mxu0 %v441
      %449 = vmatpush.msra.mxu0 %v440
      %450 = vmatpush.msra.mxu0 %v439
      %451 = vmatpush.msra.mxu0 %v438
      %452 = vmatpush.msra.mxu0 %v437
      %453 = vmatpush.msra.mxu0 %v436
      %454 = vmatpush.msra.mxu0 %v435
      %455 = vmatpush.msra.mxu0 %v434
      %456 = vmatpush.msra.mxu0 %v433
      %457 = vmatpush.msra.mxu0 %v432
      %458 = vmatpush.msra.mxu0 %v431
      %459 = vmatpush.msra.mxu0 %v430
      %460 = vmatpush.msra.mxu0 %v429
      %461 = vmatmul.f32.gmra.mxu0 %v421
      %v462 = vpop.f32.mrf.mxu0
      %v463 = vadd.f32 0.0, %v462
      %464 = vmatmul.f32.gmra.mxu0 %v422
      %v465 = vpop.f32.mrf.mxu0
      %v466 = vadd.f32 0.0, %v465
      %467 = vmatmul.f32.gmra.mxu0 %v423
      %v468 = vpop.f32.mrf.mxu0
      %v469 = vadd.f32 0.0, %v468
      %470 = vmatmul.f32.gmra.mxu0 %v424
      %v471 = vpop.f32.mrf.mxu0
      %v472 = vadd.f32 0.0, %v471
      %473 = vmatmul.f32.gmra.mxu0 %v425
      %v474 = vpop.f32.mrf.mxu0
      %v475 = vadd.f32 0.0, %v474
      %476 = vmatmul.f32.gmra.mxu0 %v426
      %v477 = vpop.f32.mrf.mxu0
      %v478 = vadd.f32 0.0, %v477
      %479 = vmatmul.f32.gmra.mxu0 %v427
      %v480 = vpop.f32.mrf.mxu0
      %v481 = vadd.f32 0.0, %v480
      %482 = vmatmul.f32.gmra.mxu0 %v428
      %v483 = vpop.f32.mrf.mxu0
      %v484 = vadd.f32 0.0, %v483
      %485 = vdwg.mxu0
      %v486 = vld [vmem:[%s2] sm:$0xff]
      %v487 = vld [vmem:[%s2 + $0x8] sm:$0xff]
      %v488 = vld [vmem:[%s2 + $0x10] sm:$0xff]
      %v489 = vld [vmem:[%s2 + $0x18] sm:$0xff]
      %v490 = vld [vmem:[%s2 + $0x20] sm:$0xff]
      %v491 = vld [vmem:[%s2 + $0x28] sm:$0xff]
      %v492 = vld [vmem:[%s2 + $0x30] sm:$0xff]
      %v493 = vld [vmem:[%s2 + $0x38] sm:$0xff]
      %v494 = vld [vmem:[%s2 + $0x40] sm:$0xff]
      %v495 = vld [vmem:[%s2 + $0x48] sm:$0xff]
      %v496 = vld [vmem:[%s2 + $0x50] sm:$0xff]
      %v497 = vld [vmem:[%s2 + $0x58] sm:$0xff]
      %v498 = vld [vmem:[%s2 + $0x60] sm:$0xff]
      %v499 = vld [vmem:[%s2 + $0x68] sm:$0xff]
      %v500 = vld [vmem:[%s2 + $0x70] sm:$0xff]
      %v501 = vld [vmem:[%s2 + $0x78] sm:$0xff]
      %v502 = vld [vmem:[%s2 + $0x80] sm:$0xff]
      %v503 = vld [vmem:[%s2 + $0x88] sm:$0xff]
      %v504 = vld [vmem:[%s2 + $0x90] sm:$0xff]
      %v505 = vld [vmem:[%s2 + $0x98] sm:$0xff]
      %v506 = vld [vmem:[%s2 + $0xa0] sm:$0xff]
      %v507 = vld [vmem:[%s2 + $0xa8] sm:$0xff]
      %v508 = vld [vmem:[%s2 + $0xb0] sm:$0xff]
      %v509 = vld [vmem:[%s2 + $0xb8] sm:$0xff]
      %v510 = vld [vmem:[%s2 + $0xc0] sm:$0xff]
      %v511 = vld [vmem:[%s2 + $0xc8] sm:$0xff]
      %v512 = vld [vmem:[%s2 + $0xd0] sm:$0xff]
      %v513 = vld [vmem:[%s2 + $0xd8] sm:$0xff]
      %v514 = vld [vmem:[%s2 + $0xe0] sm:$0xff]
      %v515 = vld [vmem:[%s2 + $0xe8] sm:$0xff]
      %v516 = vld [vmem:[%s2 + $0xf0] sm:$0xff]
      %v517 = vld [vmem:[%s2 + $0xf8] sm:$0xff]
      %v518 = vld [vmem:[%s2 + $0x100] sm:$0xff]
      %v519 = vld [vmem:[%s2 + $0x108] sm:$0xff]
      %v520 = vld [vmem:[%s2 + $0x110] sm:$0xff]
      %v521 = vld [vmem:[%s2 + $0x118] sm:$0xff]
      %v522 = vld [vmem:[%s2 + $0x120] sm:$0xff]
      %v523 = vld [vmem:[%s2 + $0x128] sm:$0xff]
      %v524 = vld [vmem:[%s2 + $0x130] sm:$0xff]
      %v525 = vld [vmem:[%s2 + $0x138] sm:$0xff]
      %v526 = vld [vmem:[%s2 + $0x140] sm:$0xff]
      %v527 = vld [vmem:[%s2 + $0x148] sm:$0xff]
      %v528 = vld [vmem:[%s2 + $0x150] sm:$0xff]
      %v529 = vld [vmem:[%s2 + $0x158] sm:$0xff]
      %v530 = vld [vmem:[%s2 + $0x160] sm:$0xff]
      %v531 = vld [vmem:[%s2 + $0x168] sm:$0xff]
      %v532 = vld [vmem:[%s2 + $0x170] sm:$0xff]
      %v533 = vld [vmem:[%s2 + $0x178] sm:$0xff]
      %v534 = vld [vmem:[%s2 + $0x180] sm:$0xff]
      %v535 = vld [vmem:[%s2 + $0x188] sm:$0xff]
      %v536 = vld [vmem:[%s2 + $0x190] sm:$0xff]
      %v537 = vld [vmem:[%s2 + $0x198] sm:$0xff]
      %v538 = vld [vmem:[%s2 + $0x1a0] sm:$0xff]
      %v539 = vld [vmem:[%s2 + $0x1a8] sm:$0xff]
      %v540 = vld [vmem:[%s2 + $0x1b0] sm:$0xff]
      %v541 = vld [vmem:[%s2 + $0x1b8] sm:$0xff]
      %v542 = vld [vmem:[%s2 + $0x1c0] sm:$0xff]
      %v543 = vld [vmem:[%s2 + $0x1c8] sm:$0xff]
      %v544 = vld [vmem:[%s2 + $0x1d0] sm:$0xff]
      %v545 = vld [vmem:[%s2 + $0x1d8] sm:$0xff]
      %v546 = vld [vmem:[%s2 + $0x1e0] sm:$0xff]
      %v547 = vld [vmem:[%s2 + $0x1e8] sm:$0xff]
      %v548 = vld [vmem:[%s2 + $0x1f0] sm:$0xff]
      %v549 = vld [vmem:[%s2 + $0x1f8] sm:$0xff]
      %v550 = vld [vmem:[%s2 + $0x200] sm:$0xff]
      %v551 = vld [vmem:[%s2 + $0x208] sm:$0xff]
      %v552 = vld [vmem:[%s2 + $0x210] sm:$0xff]
      %v553 = vld [vmem:[%s2 + $0x218] sm:$0xff]
      %v554 = vld [vmem:[%s2 + $0x220] sm:$0xff]
      %v555 = vld [vmem:[%s2 + $0x228] sm:$0xff]
      %v556 = vld [vmem:[%s2 + $0x230] sm:$0xff]
      %v557 = vld [vmem:[%s2 + $0x238] sm:$0xff]
      %v558 = vld [vmem:[%s2 + $0x240] sm:$0xff]
      %v559 = vld [vmem:[%s2 + $0x248] sm:$0xff]
      %v560 = vld [vmem:[%s2 + $0x250] sm:$0xff]
      %v561 = vld [vmem:[%s2 + $0x258] sm:$0xff]
      %v562 = vld [vmem:[%s2 + $0x260] sm:$0xff]
      %v563 = vld [vmem:[%s2 + $0x268] sm:$0xff]
      %v564 = vld [vmem:[%s2 + $0x270] sm:$0xff]
      %v565 = vld [vmem:[%s2 + $0x278] sm:$0xff]
      %v566 = vld [vmem:[%s2 + $0x280] sm:$0xff]
      %v567 = vld [vmem:[%s2 + $0x288] sm:$0xff]
      %v568 = vld [vmem:[%s2 + $0x290] sm:$0xff]
      %v569 = vld [vmem:[%s2 + $0x298] sm:$0xff]
      %v570 = vld [vmem:[%s2 + $0x2a0] sm:$0xff]
      %v571 = vld [vmem:[%s2 + $0x2a8] sm:$0xff]
      %v572 = vld [vmem:[%s2 + $0x2b0] sm:$0xff]
      %v573 = vld [vmem:[%s2 + $0x2b8] sm:$0xff]
      %v574 = vld [vmem:[%s2 + $0x2c0] sm:$0xff]
      %v575 = vld [vmem:[%s2 + $0x2c8] sm:$0xff]
      %v576 = vld [vmem:[%s2 + $0x2d0] sm:$0xff]
      %v577 = vld [vmem:[%s2 + $0x2d8] sm:$0xff]
      %v578 = vld [vmem:[%s2 + $0x2e0] sm:$0xff]
      %v579 = vld [vmem:[%s2 + $0x2e8] sm:$0xff]
      %v580 = vld [vmem:[%s2 + $0x2f0] sm:$0xff]
      %v581 = vld [vmem:[%s2 + $0x2f8] sm:$0xff]
      %v582 = vld [vmem:[%s3] sm:$0x3f]
      %v584 = vperm.slane %v582, 0
      %v585 = vperm.slane %v582, 1
      %v586 = vperm.slane %v582, 2
      %v587 = vperm.slane %v582, 3
      %v588 = vperm.slane %v582, 4
      %v589 = vperm.slane %v582, 5
      %596 = vmatpush.msra.mxu0 %v576
      %597 = vmatpush.msra.mxu0 %v570
      %598 = vmatpush.msra.mxu0 %v564
      %599 = vmatpush.msra.mxu0 %v558
      %600 = vmatpush.msra.mxu0 %v552
      %601 = vmatpush.msra.mxu0 %v546
      %602 = vmatpush.msra.mxu0 %v540
      %603 = vmatpush.msra.mxu0 %v534
      %604 = vmatpush.msra.mxu0 %v528
      %605 = vmatpush.msra.mxu0 %v522
      %606 = vmatpush.msra.mxu0 %v516
      %607 = vmatpush.msra.mxu0 %v510
      %608 = vmatpush.msra.mxu0 %v504
      %609 = vmatpush.msra.mxu0 %v498
      %610 = vmatpush.msra.mxu0 %v492
      %611 = vmatpush.msra.mxu0 %v486
      %612 = vmatmul.f32.gmra.mxu0 %v463
      %v613 = vpop.f32.mrf.mxu0
      %v614 = vadd.f32 %v584, %v613
      %615 = vmatmul.f32.gmra.mxu0 %v466
      %v616 = vpop.f32.mrf.mxu0
      %v617 = vadd.f32 %v584, %v616
      %618 = vmatmul.f32.gmra.mxu0 %v469
      %v619 = vpop.f32.mrf.mxu0
      %v620 = vadd.f32 %v584, %v619
      %621 = vmatmul.f32.gmra.mxu0 %v472
      %v622 = vpop.f32.mrf.mxu0
      %v623 = vadd.f32 %v584, %v622
      %624 = vmatmul.f32.gmra.mxu0 %v475
      %v625 = vpop.f32.mrf.mxu0
      %v626 = vadd.f32 %v584, %v625
      %627 = vmatmul.f32.gmra.mxu0 %v478
      %v628 = vpop.f32.mrf.mxu0
      %v629 = vadd.f32 %v584, %v628
      %630 = vmatmul.f32.gmra.mxu0 %v481
      %v631 = vpop.f32.mrf.mxu0
      %v632 = vadd.f32 %v584, %v631
      %633 = vmatmul.f32.gmra.mxu0 %v484
      %v634 = vpop.f32.mrf.mxu0
      %v635 = vadd.f32 %v584, %v634
      %636 = vdwg.mxu0
      %637 = vmatpush.msra.mxu0 %v577
      %638 = vmatpush.msra.mxu0 %v571
      %639 = vmatpush.msra.mxu0 %v565
      %640 = vmatpush.msra.mxu0 %v559
      %641 = vmatpush.msra.mxu0 %v553
      %642 = vmatpush.msra.mxu0 %v547
      %643 = vmatpush.msra.mxu0 %v541
      %644 = vmatpush.msra.mxu0 %v535
      %645 = vmatpush.msra.mxu0 %v529
      %646 = vmatpush.msra.mxu0 %v523
      %647 = vmatpush.msra.mxu0 %v517
      %648 = vmatpush.msra.mxu0 %v511
      %649 = vmatpush.msra.mxu0 %v505
      %650 = vmatpush.msra.mxu0 %v499
      %651 = vmatpush.msra.mxu0 %v493
      %652 = vmatpush.msra.mxu0 %v487
      %653 = vmatmul.f32.gmra.mxu0 %v463
      %v654 = vpop.f32.mrf.mxu0
      %v655 = vadd.f32 %v585, %v654
      %656 = vmatmul.f32.gmra.mxu0 %v466
      %v657 = vpop.f32.mrf.mxu0
      %v658 = vadd.f32 %v585, %v657
      %659 = vmatmul.f32.gmra.mxu0 %v469
      %v660 = vpop.f32.mrf.mxu0
      %v661 = vadd.f32 %v585, %v660
      %662 = vmatmul.f32.gmra.mxu0 %v472
      %v663 = vpop.f32.mrf.mxu0
      %v664 = vadd.f32 %v585, %v663
      %665 = vmatmul.f32.gmra.mxu0 %v475
      %v666 = vpop.f32.mrf.mxu0
      %v667 = vadd.f32 %v585, %v666
      %668 = vmatmul.f32.gmra.mxu0 %v478
      %v669 = vpop.f32.mrf.mxu0
      %v670 = vadd.f32 %v585, %v669
      %671 = vmatmul.f32.gmra.mxu0 %v481
      %v672 = vpop.f32.mrf.mxu0
      %v673 = vadd.f32 %v585, %v672
      %674 = vmatmul.f32.gmra.mxu0 %v484
      %v675 = vpop.f32.mrf.mxu0
      %v676 = vadd.f32 %v585, %v675
      %677 = vdwg.mxu0
      %678 = vmatpush.msra.mxu0 %v578
      %679 = vmatpush.msra.mxu0 %v572
      %680 = vmatpush.msra.mxu0 %v566
      %681 = vmatpush.msra.mxu0 %v560
      %682 = vmatpush.msra.mxu0 %v554
      %683 = vmatpush.msra.mxu0 %v548
      %684 = vmatpush.msra.mxu0 %v542
      %685 = vmatpush.msra.mxu0 %v536
      %686 = vmatpush.msra.mxu0 %v530
      %687 = vmatpush.msra.mxu0 %v524
      %688 = vmatpush.msra.mxu0 %v518
      %689 = vmatpush.msra.mxu0 %v512
      %690 = vmatpush.msra.mxu0 %v506
      %691 = vmatpush.msra.mxu0 %v500
      %692 = vmatpush.msra.mxu0 %v494
      %693 = vmatpush.msra.mxu0 %v488
      %694 = vmatmul.f32.gmra.mxu0 %v463
      %v695 = vpop.f32.mrf.mxu0
      %v696 = vadd.f32 %v586, %v695
      %697 = vmatmul.f32.gmra.mxu0 %v466
      %v698 = vpop.f32.mrf.mxu0
      %v699 = vadd.f32 %v586, %v698
      %700 = vmatmul.f32.gmra.mxu0 %v469
      %v701 = vpop.f32.mrf.mxu0
      %v702 = vadd.f32 %v586, %v701
      %703 = vmatmul.f32.gmra.mxu0 %v472
      %v704 = vpop.f32.mrf.mxu0
      %v705 = vadd.f32 %v586, %v704
      %706 = vmatmul.f32.gmra.mxu0 %v475
      %v707 = vpop.f32.mrf.mxu0
      %v708 = vadd.f32 %v586, %v707
      %709 = vmatmul.f32.gmra.mxu0 %v478
      %v710 = vpop.f32.mrf.mxu0
      %v711 = vadd.f32 %v586, %v710
      %712 = vmatmul.f32.gmra.mxu0 %v481
      %v713 = vpop.f32.mrf.mxu0
      %v714 = vadd.f32 %v586, %v713
      %715 = vmatmul.f32.gmra.mxu0 %v484
      %v716 = vpop.f32.mrf.mxu0
      %v717 = vadd.f32 %v586, %v716
      %718 = vdwg.mxu0
      %719 = vmatpush.msra.mxu0 %v579
      %720 = vmatpush.msra.mxu0 %v573
      %721 = vmatpush.msra.mxu0 %v567
      %722 = vmatpush.msra.mxu0 %v561
      %723 = vmatpush.msra.mxu0 %v555
      %724 = vmatpush.msra.mxu0 %v549
      %725 = vmatpush.msra.mxu0 %v543
      %726 = vmatpush.msra.mxu0 %v537
      %727 = vmatpush.msra.mxu0 %v531
      %728 = vmatpush.msra.mxu0 %v525
      %729 = vmatpush.msra.mxu0 %v519
      %730 = vmatpush.msra.mxu0 %v513
      %731 = vmatpush.msra.mxu0 %v507
      %732 = vmatpush.msra.mxu0 %v501
      %733 = vmatpush.msra.mxu0 %v495
      %734 = vmatpush.msra.mxu0 %v489
      %735 = vmatmul.f32.gmra.mxu0 %v463
      %v736 = vpop.f32.mrf.mxu0
      %v737 = vadd.f32 %v587, %v736
      %738 = vmatmul.f32.gmra.mxu0 %v466
      %v739 = vpop.f32.mrf.mxu0
      %v740 = vadd.f32 %v587, %v739
      %741 = vmatmul.f32.gmra.mxu0 %v469
      %v742 = vpop.f32.mrf.mxu0
      %v743 = vadd.f32 %v587, %v742
      %744 = vmatmul.f32.gmra.mxu0 %v472
      %v745 = vpop.f32.mrf.mxu0
      %v746 = vadd.f32 %v587, %v745
      %747 = vmatmul.f32.gmra.mxu0 %v475
      %v748 = vpop.f32.mrf.mxu0
      %v749 = vadd.f32 %v587, %v748
      %750 = vmatmul.f32.gmra.mxu0 %v478
      %v751 = vpop.f32.mrf.mxu0
      %v752 = vadd.f32 %v587, %v751
      %753 = vmatmul.f32.gmra.mxu0 %v481
      %v754 = vpop.f32.mrf.mxu0
      %v755 = vadd.f32 %v587, %v754
      %756 = vmatmul.f32.gmra.mxu0 %v484
      %v757 = vpop.f32.mrf.mxu0
      %v758 = vadd.f32 %v587, %v757
      %759 = vdwg.mxu0
      %760 = vmatpush.msra.mxu0 %v580
      %761 = vmatpush.msra.mxu0 %v574
      %762 = vmatpush.msra.mxu0 %v568
      %763 = vmatpush.msra.mxu0 %v562
      %764 = vmatpush.msra.mxu0 %v556
      %765 = vmatpush.msra.mxu0 %v550
      %766 = vmatpush.msra.mxu0 %v544
      %767 = vmatpush.msra.mxu0 %v538
      %768 = vmatpush.msra.mxu0 %v532
      %769 = vmatpush.msra.mxu0 %v526
      %770 = vmatpush.msra.mxu0 %v520
      %771 = vmatpush.msra.mxu0 %v514
      %772 = vmatpush.msra.mxu0 %v508
      %773 = vmatpush.msra.mxu0 %v502
      %774 = vmatpush.msra.mxu0 %v496
      %775 = vmatpush.msra.mxu0 %v490
      %776 = vmatmul.f32.gmra.mxu0 %v463
      %v777 = vpop.f32.mrf.mxu0
      %v778 = vadd.f32 %v588, %v777
      %779 = vmatmul.f32.gmra.mxu0 %v466
      %v780 = vpop.f32.mrf.mxu0
      %v781 = vadd.f32 %v588, %v780
      %782 = vmatmul.f32.gmra.mxu0 %v469
      %v783 = vpop.f32.mrf.mxu0
      %v784 = vadd.f32 %v588, %v783
      %785 = vmatmul.f32.gmra.mxu0 %v472
      %v786 = vpop.f32.mrf.mxu0
      %v787 = vadd.f32 %v588, %v786
      %788 = vmatmul.f32.gmra.mxu0 %v475
      %v789 = vpop.f32.mrf.mxu0
      %v790 = vadd.f32 %v588, %v789
      %791 = vmatmul.f32.gmra.mxu0 %v478
      %v792 = vpop.f32.mrf.mxu0
      %v793 = vadd.f32 %v588, %v792
      %794 = vmatmul.f32.gmra.mxu0 %v481
      %v795 = vpop.f32.mrf.mxu0
      %v796 = vadd.f32 %v588, %v795
      %797 = vmatmul.f32.gmra.mxu0 %v484
      %v798 = vpop.f32.mrf.mxu0
      %v799 = vadd.f32 %v588, %v798
      %800 = vdwg.mxu0
      %801 = vmatpush.msra.mxu0 %v581
      %802 = vmatpush.msra.mxu0 %v575
      %803 = vmatpush.msra.mxu0 %v569
      %804 = vmatpush.msra.mxu0 %v563
      %805 = vmatpush.msra.mxu0 %v557
      %806 = vmatpush.msra.mxu0 %v551
      %807 = vmatpush.msra.mxu0 %v545
      %808 = vmatpush.msra.mxu0 %v539
      %809 = vmatpush.msra.mxu0 %v533
      %810 = vmatpush.msra.mxu0 %v527
      %811 = vmatpush.msra.mxu0 %v521
      %812 = vmatpush.msra.mxu0 %v515
      %813 = vmatpush.msra.mxu0 %v509
      %814 = vmatpush.msra.mxu0 %v503
      %815 = vmatpush.msra.mxu0 %v497
      %816 = vmatpush.msra.mxu0 %v491
      %817 = vmatmul.f32.gmra.mxu0 %v463
      %v818 = vpop.f32.mrf.mxu0
      %v819 = vadd.f32 %v589, %v818
      %820 = vmatmul.f32.gmra.mxu0 %v466
      %v821 = vpop.f32.mrf.mxu0
      %v822 = vadd.f32 %v589, %v821
      %823 = vmatmul.f32.gmra.mxu0 %v469
      %v824 = vpop.f32.mrf.mxu0
      %v825 = vadd.f32 %v589, %v824
      %826 = vmatmul.f32.gmra.mxu0 %v472
      %v827 = vpop.f32.mrf.mxu0
      %v828 = vadd.f32 %v589, %v827
      %829 = vmatmul.f32.gmra.mxu0 %v475
      %v830 = vpop.f32.mrf.mxu0
      %v831 = vadd.f32 %v589, %v830
      %832 = vmatmul.f32.gmra.mxu0 %v478
      %v833 = vpop.f32.mrf.mxu0
      %v834 = vadd.f32 %v589, %v833
      %835 = vmatmul.f32.gmra.mxu0 %v481
      %v836 = vpop.f32.mrf.mxu0
      %v837 = vadd.f32 %v589, %v836
      %838 = vmatmul.f32.gmra.mxu0 %v484
      %v839 = vpop.f32.mrf.mxu0
      %v840 = vadd.f32 %v589, %v839
      %841 = vdwg.mxu0
      %v842 = vld [vmem:[%s4] sm:$0xff]
      %v843 = vld [vmem:[%s4 + $0x8] sm:$0xff]
      %v844 = vld [vmem:[%s4 + $0x10] sm:$0xff]
      %v845 = vld [vmem:[%s4 + $0x18] sm:$0xff]
      %v846 = vld [vmem:[%s4 + $0x20] sm:$0xff]
      %v847 = vld [vmem:[%s4 + $0x28] sm:$0xff]
      %v848 = vld [vmem:[%s4 + $0x30] sm:$0xff]
      %v849 = vld [vmem:[%s4 + $0x38] sm:$0xff]
      %v850 = vld [vmem:[%s4 + $0x40] sm:$0xff]
      %v851 = vld [vmem:[%s4 + $0x48] sm:$0xff]
      %v852 = vld [vmem:[%s4 + $0x50] sm:$0xff]
      %v853 = vld [vmem:[%s4 + $0x58] sm:$0xff]
      %v854 = vld [vmem:[%s4 + $0x60] sm:$0xff]
      %v855 = vld [vmem:[%s4 + $0x68] sm:$0xff]
      %v856 = vld [vmem:[%s4 + $0x70] sm:$0xff]
      %v857 = vld [vmem:[%s4 + $0x78] sm:$0xff]
      %v858 = vld [vmem:[%s4 + $0x80] sm:$0xff]
      %v859 = vld [vmem:[%s4 + $0x88] sm:$0xff]
      %v860 = vld [vmem:[%s4 + $0x90] sm:$0xff]
      %v861 = vld [vmem:[%s4 + $0x98] sm:$0xff]
      %v862 = vld [vmem:[%s4 + $0xa0] sm:$0xff]
      %v863 = vld [vmem:[%s4 + $0xa8] sm:$0xff]
      %v864 = vld [vmem:[%s4 + $0xb0] sm:$0xff]
      %v865 = vld [vmem:[%s4 + $0xb8] sm:$0xff]
      %v866 = vld [vmem:[%s4 + $0xc0] sm:$0xff]
      %v867 = vld [vmem:[%s4 + $0xc8] sm:$0xff]
      %v868 = vld [vmem:[%s4 + $0xd0] sm:$0xff]
      %v869 = vld [vmem:[%s4 + $0xd8] sm:$0xff]
      %v870 = vld [vmem:[%s4 + $0xe0] sm:$0xff]
      %v871 = vld [vmem:[%s4 + $0xe8] sm:$0xff]
      %v872 = vld [vmem:[%s4 + $0xf0] sm:$0xff]
      %v873 = vld [vmem:[%s4 + $0xf8] sm:$0xff]
      %v874 = vld [vmem:[%s4 + $0x100] sm:$0xff]
      %v875 = vld [vmem:[%s4 + $0x108] sm:$0xff]
      %v876 = vld [vmem:[%s4 + $0x110] sm:$0xff]
      %v877 = vld [vmem:[%s4 + $0x118] sm:$0xff]
      %v878 = vld [vmem:[%s4 + $0x120] sm:$0xff]
      %v879 = vld [vmem:[%s4 + $0x128] sm:$0xff]
      %v880 = vld [vmem:[%s4 + $0x130] sm:$0xff]
      %v881 = vld [vmem:[%s4 + $0x138] sm:$0xff]
      %v882 = vld [vmem:[%s4 + $0x140] sm:$0xff]
      %v883 = vld [vmem:[%s4 + $0x148] sm:$0xff]
      %v884 = vld [vmem:[%s4 + $0x150] sm:$0xff]
      %v885 = vld [vmem:[%s4 + $0x158] sm:$0xff]
      %v886 = vld [vmem:[%s4 + $0x160] sm:$0xff]
      %v887 = vld [vmem:[%s4 + $0x168] sm:$0xff]
      %v888 = vld [vmem:[%s4 + $0x170] sm:$0xff]
      %v889 = vld [vmem:[%s4 + $0x178] sm:$0xff]
      %v890 = vld [vmem:[%s4 + $0x180] sm:$0xff]
      %v891 = vld [vmem:[%s4 + $0x188] sm:$0xff]
      %v892 = vld [vmem:[%s4 + $0x190] sm:$0xff]
      %v893 = vld [vmem:[%s4 + $0x198] sm:$0xff]
      %v894 = vld [vmem:[%s4 + $0x1a0] sm:$0xff]
      %v895 = vld [vmem:[%s4 + $0x1a8] sm:$0xff]
      %v896 = vld [vmem:[%s4 + $0x1b0] sm:$0xff]
      %v897 = vld [vmem:[%s4 + $0x1b8] sm:$0xff]
      %v898 = vld [vmem:[%s4 + $0x1c0] sm:$0xff]
      %v899 = vld [vmem:[%s4 + $0x1c8] sm:$0xff]
      %v900 = vld [vmem:[%s4 + $0x1d0] sm:$0xff]
      %v901 = vld [vmem:[%s4 + $0x1d8] sm:$0xff]
      %v902 = vld [vmem:[%s4 + $0x1e0] sm:$0xff]
      %v903 = vld [vmem:[%s4 + $0x1e8] sm:$0xff]
      %v904 = vld [vmem:[%s4 + $0x1f0] sm:$0xff]
      %v905 = vld [vmem:[%s4 + $0x1f8] sm:$0xff]
      %v906 = vld [vmem:[%s4 + $0x200] sm:$0xff]
      %v907 = vld [vmem:[%s4 + $0x208] sm:$0xff]
      %v908 = vld [vmem:[%s4 + $0x210] sm:$0xff]
      %v909 = vld [vmem:[%s4 + $0x218] sm:$0xff]
      %v910 = vld [vmem:[%s4 + $0x220] sm:$0xff]
      %v911 = vld [vmem:[%s4 + $0x228] sm:$0xff]
      %v912 = vld [vmem:[%s4 + $0x230] sm:$0xff]
      %v913 = vld [vmem:[%s4 + $0x238] sm:$0xff]
      %v914 = vld [vmem:[%s4 + $0x240] sm:$0xff]
      %v915 = vld [vmem:[%s4 + $0x248] sm:$0xff]
      %v916 = vld [vmem:[%s4 + $0x250] sm:$0xff]
      %v917 = vld [vmem:[%s4 + $0x258] sm:$0xff]
      %v918 = vld [vmem:[%s4 + $0x260] sm:$0xff]
      %v919 = vld [vmem:[%s4 + $0x268] sm:$0xff]
      %v920 = vld [vmem:[%s4 + $0x270] sm:$0xff]
      %v921 = vld [vmem:[%s4 + $0x278] sm:$0xff]
      %v922 = vld [vmem:[%s4 + $0x280] sm:$0xff]
      %v923 = vld [vmem:[%s4 + $0x288] sm:$0xff]
      %v924 = vld [vmem:[%s4 + $0x290] sm:$0xff]
      %v925 = vld [vmem:[%s4 + $0x298] sm:$0xff]
      %v926 = vld [vmem:[%s4 + $0x2a0] sm:$0xff]
      %v927 = vld [vmem:[%s4 + $0x2a8] sm:$0xff]
      %v928 = vld [vmem:[%s4 + $0x2b0] sm:$0xff]
      %v929 = vld [vmem:[%s4 + $0x2b8] sm:$0xff]
      %v930 = vld [vmem:[%s4 + $0x2c0] sm:$0xff]
      %v931 = vld [vmem:[%s4 + $0x2c8] sm:$0xff]
      %v932 = vld [vmem:[%s4 + $0x2d0] sm:$0xff]
      %v933 = vld [vmem:[%s4 + $0x2d8] sm:$0xff]
      %v934 = vld [vmem:[%s4 + $0x2e0] sm:$0xff]
      %v935 = vld [vmem:[%s4 + $0x2e8] sm:$0xff]
      %v936 = vld [vmem:[%s4 + $0x2f0] sm:$0xff]
      %v937 = vld [vmem:[%s4 + $0x2f8] sm:$0xff]
      %v938 = vld [vmem:[%s4 + $0x300] sm:$0xff]
      %v939 = vld [vmem:[%s4 + $0x308] sm:$0xff]
      %v940 = vld [vmem:[%s4 + $0x310] sm:$0xff]
      %v941 = vld [vmem:[%s4 + $0x318] sm:$0xff]
      %v942 = vld [vmem:[%s4 + $0x320] sm:$0xff]
      %v943 = vld [vmem:[%s4 + $0x328] sm:$0xff]
      %v944 = vld [vmem:[%s4 + $0x330] sm:$0xff]
      %v945 = vld [vmem:[%s4 + $0x338] sm:$0xff]
      %v946 = vld [vmem:[%s4 + $0x340] sm:$0xff]
      %v947 = vld [vmem:[%s4 + $0x348] sm:$0xff]
      %v948 = vld [vmem:[%s4 + $0x350] sm:$0xff]
      %v949 = vld [vmem:[%s4 + $0x358] sm:$0xff]
      %v950 = vld [vmem:[%s4 + $0x360] sm:$0xff]
      %v951 = vld [vmem:[%s4 + $0x368] sm:$0xff]
      %v952 = vld [vmem:[%s4 + $0x370] sm:$0xff]
      %v953 = vld [vmem:[%s4 + $0x378] sm:$0xff]
      %v954 = vld [vmem:[%s4 + $0x380] sm:$0xff]
      %v955 = vld [vmem:[%s4 + $0x388] sm:$0xff]
      %v956 = vld [vmem:[%s4 + $0x390] sm:$0xff]
      %v957 = vld [vmem:[%s4 + $0x398] sm:$0xff]
      %v958 = vld [vmem:[%s4 + $0x3a0] sm:$0xff]
      %v959 = vld [vmem:[%s4 + $0x3a8] sm:$0xff]
      %v960 = vld [vmem:[%s4 + $0x3b0] sm:$0xff]
      %v961 = vld [vmem:[%s4 + $0x3b8] sm:$0xff]
      %v962 = vld [vmem:[%s4 + $0x3c0] sm:$0xff]
      %v963 = vld [vmem:[%s4 + $0x3c8] sm:$0xff]
      %v964 = vld [vmem:[%s4 + $0x3d0] sm:$0xff]
      %v965 = vld [vmem:[%s4 + $0x3d8] sm:$0xff]
      %v966 = vld [vmem:[%s4 + $0x3e0] sm:$0xff]
      %v967 = vld [vmem:[%s4 + $0x3e8] sm:$0xff]
      %v968 = vld [vmem:[%s4 + $0x3f0] sm:$0xff]
      %v969 = vld [vmem:[%s4 + $0x3f8] sm:$0xff]
      %v970 = vld [vmem:[%s4 + $0x400] sm:$0xff]
      %v971 = vld [vmem:[%s4 + $0x408] sm:$0xff]
      %v972 = vld [vmem:[%s4 + $0x410] sm:$0xff]
      %v973 = vld [vmem:[%s4 + $0x418] sm:$0xff]
      %v974 = vld [vmem:[%s4 + $0x420] sm:$0xff]
      %v975 = vld [vmem:[%s4 + $0x428] sm:$0xff]
      %v976 = vld [vmem:[%s4 + $0x430] sm:$0xff]
      %v977 = vld [vmem:[%s4 + $0x438] sm:$0xff]
      %v978 = vld [vmem:[%s4 + $0x440] sm:$0xff]
      %v979 = vld [vmem:[%s4 + $0x448] sm:$0xff]
      %v980 = vld [vmem:[%s4 + $0x450] sm:$0xff]
      %v981 = vld [vmem:[%s4 + $0x458] sm:$0xff]
      %v982 = vld [vmem:[%s4 + $0x460] sm:$0xff]
      %v983 = vld [vmem:[%s4 + $0x468] sm:$0xff]
      %v984 = vld [vmem:[%s4 + $0x470] sm:$0xff]
      %v985 = vld [vmem:[%s4 + $0x478] sm:$0xff]
      %v986 = vld [vmem:[%s4 + $0x480] sm:$0xff]
      %v987 = vld [vmem:[%s4 + $0x488] sm:$0xff]
      %v988 = vld [vmem:[%s4 + $0x490] sm:$0xff]
      %v989 = vld [vmem:[%s4 + $0x498] sm:$0xff]
      %v990 = vld [vmem:[%s4 + $0x4a0] sm:$0xff]
      %v991 = vld [vmem:[%s4 + $0x4a8] sm:$0xff]
      %v992 = vld [vmem:[%s4 + $0x4b0] sm:$0xff]
      %v993 = vld [vmem:[%s4 + $0x4b8] sm:$0xff]
      %v994 = vld [vmem:[%s4 + $0x4c0] sm:$0xff]
      %v995 = vld [vmem:[%s4 + $0x4c8] sm:$0xff]
      %v996 = vld [vmem:[%s4 + $0x4d0] sm:$0xff]
      %v997 = vld [vmem:[%s4 + $0x4d8] sm:$0xff]
      %v998 = vld [vmem:[%s4 + $0x4e0] sm:$0xff]
      %v999 = vld [vmem:[%s4 + $0x4e8] sm:$0xff]
      %v1000 = vld [vmem:[%s4 + $0x4f0] sm:$0xff]
      %v1001 = vld [vmem:[%s4 + $0x4f8] sm:$0xff]
      %v1002 = vld [vmem:[%s4 + $0x500] sm:$0xff]
      %v1003 = vld [vmem:[%s4 + $0x508] sm:$0xff]
      %v1004 = vld [vmem:[%s4 + $0x510] sm:$0xff]
      %v1005 = vld [vmem:[%s4 + $0x518] sm:$0xff]
      %v1006 = vld [vmem:[%s4 + $0x520] sm:$0xff]
      %v1007 = vld [vmem:[%s4 + $0x528] sm:$0xff]
      %v1008 = vld [vmem:[%s4 + $0x530] sm:$0xff]
      %v1009 = vld [vmem:[%s4 + $0x538] sm:$0xff]
      %v1010 = vld [vmem:[%s4 + $0x540] sm:$0xff]
      %v1011 = vld [vmem:[%s4 + $0x548] sm:$0xff]
      %v1012 = vld [vmem:[%s4 + $0x550] sm:$0xff]
      %v1013 = vld [vmem:[%s4 + $0x558] sm:$0xff]
      %v1014 = vld [vmem:[%s4 + $0x560] sm:$0xff]
      %v1015 = vld [vmem:[%s4 + $0x568] sm:$0xff]
      %v1016 = vld [vmem:[%s4 + $0x570] sm:$0xff]
      %v1017 = vld [vmem:[%s4 + $0x578] sm:$0xff]
      %v1018 = vld [vmem:[%s4 + $0x580] sm:$0xff]
      %v1019 = vld [vmem:[%s4 + $0x588] sm:$0xff]
      %v1020 = vld [vmem:[%s4 + $0x590] sm:$0xff]
      %v1021 = vld [vmem:[%s4 + $0x598] sm:$0xff]
      %v1022 = vld [vmem:[%s4 + $0x5a0] sm:$0xff]
      %v1023 = vld [vmem:[%s4 + $0x5a8] sm:$0xff]
      %v1024 = vld [vmem:[%s4 + $0x5b0] sm:$0xff]
      %v1025 = vld [vmem:[%s4 + $0x5b8] sm:$0xff]
      %v1026 = vld [vmem:[%s4 + $0x5c0] sm:$0xff]
      %v1027 = vld [vmem:[%s4 + $0x5c8] sm:$0xff]
      %v1028 = vld [vmem:[%s4 + $0x5d0] sm:$0xff]
      %v1029 = vld [vmem:[%s4 + $0x5d8] sm:$0xff]
      %v1030 = vld [vmem:[%s4 + $0x5e0] sm:$0xff]
      %v1031 = vld [vmem:[%s4 + $0x5e8] sm:$0xff]
      %v1032 = vld [vmem:[%s4 + $0x5f0] sm:$0xff]
      %v1033 = vld [vmem:[%s4 + $0x5f8] sm:$0xff]
      %v1034 = vld [vmem:[%s5] sm:$0x3f]
      %v1036 = vperm.slane %v1034, 0
      %v1037 = vperm.slane %v1034, 1
      %v1038 = vperm.slane %v1034, 2
      %v1039 = vperm.slane %v1034, 3
      %v1040 = vperm.slane %v1034, 4
      %v1041 = vperm.slane %v1034, 5
      %1048 = vmatpush.msra.mxu0 %v932
      %1049 = vmatpush.msra.mxu0 %v926
      %1050 = vmatpush.msra.mxu0 %v920
      %1051 = vmatpush.msra.mxu0 %v914
      %1052 = vmatpush.msra.mxu0 %v908
      %1053 = vmatpush.msra.mxu0 %v902
      %1054 = vmatpush.msra.mxu0 %v896
      %1055 = vmatpush.msra.mxu0 %v890
      %1056 = vmatpush.msra.mxu0 %v884
      %1057 = vmatpush.msra.mxu0 %v878
      %1058 = vmatpush.msra.mxu0 %v872
      %1059 = vmatpush.msra.mxu0 %v866
      %1060 = vmatpush.msra.mxu0 %v860
      %1061 = vmatpush.msra.mxu0 %v854
      %1062 = vmatpush.msra.mxu0 %v848
      %1063 = vmatpush.msra.mxu0 %v842
      %1064 = vmatmul.f32.gmra.mxu0 0.0
      %v1065 = vpop.f32.mrf.mxu0
      %v1066 = vadd.f32 %v1036, %v1065
      %1067 = vdwg.mxu0
      %1068 = vmatpush.msra.mxu0 %v1028
      %1069 = vmatpush.msra.mxu0 %v1022
      %1070 = vmatpush.msra.mxu0 %v1016
      %1071 = vmatpush.msra.mxu0 %v1010
      %1072 = vmatpush.msra.mxu0 %v1004
      %1073 = vmatpush.msra.mxu0 %v998
      %1074 = vmatpush.msra.mxu0 %v992
      %1075 = vmatpush.msra.mxu0 %v986
      %1076 = vmatpush.msra.mxu0 %v980
      %1077 = vmatpush.msra.mxu0 %v974
      %1078 = vmatpush.msra.mxu0 %v968
      %1079 = vmatpush.msra.mxu0 %v962
      %1080 = vmatpush.msra.mxu0 %v956
      %1081 = vmatpush.msra.mxu0 %v950
      %1082 = vmatpush.msra.mxu0 %v944
      %1083 = vmatpush.msra.mxu0 %v938
      %1084 = vmatmul.f32.gmra.mxu0 0.0
      %v1085 = vpop.f32.mrf.mxu0
      %v1086 = vadd.f32 %v1066, %v1085
      %1087 = vdwg.mxu0
      %1088 = vmatpush.msra.mxu0 %v933
      %1089 = vmatpush.msra.mxu0 %v927
      %1090 = vmatpush.msra.mxu0 %v921
      %1091 = vmatpush.msra.mxu0 %v915
      %1092 = vmatpush.msra.mxu0 %v909
      %1093 = vmatpush.msra.mxu0 %v903
      %1094 = vmatpush.msra.mxu0 %v897
      %1095 = vmatpush.msra.mxu0 %v891
      %1096 = vmatpush.msra.mxu0 %v885
      %1097 = vmatpush.msra.mxu0 %v879
      %1098 = vmatpush.msra.mxu0 %v873
      %1099 = vmatpush.msra.mxu0 %v867
      %1100 = vmatpush.msra.mxu0 %v861
      %1101 = vmatpush.msra.mxu0 %v855
      %1102 = vmatpush.msra.mxu0 %v849
      %1103 = vmatpush.msra.mxu0 %v843
      %1104 = vmatmul.f32.gmra.mxu0 0.0
      %v1105 = vpop.f32.mrf.mxu0
      %v1106 = vadd.f32 %v1037, %v1105
      %1107 = vdwg.mxu0
      %1108 = vmatpush.msra.mxu0 %v1029
      %1109 = vmatpush.msra.mxu0 %v1023
      %1110 = vmatpush.msra.mxu0 %v1017
      %1111 = vmatpush.msra.mxu0 %v1011
      %1112 = vmatpush.msra.mxu0 %v1005
      %1113 = vmatpush.msra.mxu0 %v999
      %1114 = vmatpush.msra.mxu0 %v993
      %1115 = vmatpush.msra.mxu0 %v987
      %1116 = vmatpush.msra.mxu0 %v981
      %1117 = vmatpush.msra.mxu0 %v975
      %1118 = vmatpush.msra.mxu0 %v969
      %1119 = vmatpush.msra.mxu0 %v963
      %1120 = vmatpush.msra.mxu0 %v957
      %1121 = vmatpush.msra.mxu0 %v951
      %1122 = vmatpush.msra.mxu0 %v945
      %1123 = vmatpush.msra.mxu0 %v939
      %1124 = vmatmul.f32.gmra.mxu0 0.0
      %v1125 = vpop.f32.mrf.mxu0
      %v1126 = vadd.f32 %v1106, %v1125
      %1127 = vdwg.mxu0
      %1128 = vmatpush.msra.mxu0 %v934
      %1129 = vmatpush.msra.mxu0 %v928
      %1130 = vmatpush.msra.mxu0 %v922
      %1131 = vmatpush.msra.mxu0 %v916
      %1132 = vmatpush.msra.mxu0 %v910
      %1133 = vmatpush.msra.mxu0 %v904
      %1134 = vmatpush.msra.mxu0 %v898
      %1135 = vmatpush.msra.mxu0 %v892
      %1136 = vmatpush.msra.mxu0 %v886
      %1137 = vmatpush.msra.mxu0 %v880
      %1138 = vmatpush.msra.mxu0 %v874
      %1139 = vmatpush.msra.mxu0 %v868
      %1140 = vmatpush.msra.mxu0 %v862
      %1141 = vmatpush.msra.mxu0 %v856
      %1142 = vmatpush.msra.mxu0 %v850
      %1143 = vmatpush.msra.mxu0 %v844
      %1144 = vmatmul.f32.gmra.mxu0 0.0
      %v1145 = vpop.f32.mrf.mxu0
      %v1146 = vadd.f32 %v1038, %v1145
      %1147 = vdwg.mxu0
      %1148 = vmatpush.msra.mxu0 %v1030
      %1149 = vmatpush.msra.mxu0 %v1024
      %1150 = vmatpush.msra.mxu0 %v1018
      %1151 = vmatpush.msra.mxu0 %v1012
      %1152 = vmatpush.msra.mxu0 %v1006
      %1153 = vmatpush.msra.mxu0 %v1000
      %1154 = vmatpush.msra.mxu0 %v994
      %1155 = vmatpush.msra.mxu0 %v988
      %1156 = vmatpush.msra.mxu0 %v982
      %1157 = vmatpush.msra.mxu0 %v976
      %1158 = vmatpush.msra.mxu0 %v970
      %1159 = vmatpush.msra.mxu0 %v964
      %1160 = vmatpush.msra.mxu0 %v958
      %1161 = vmatpush.msra.mxu0 %v952
      %1162 = vmatpush.msra.mxu0 %v946
      %1163 = vmatpush.msra.mxu0 %v940
      %1164 = vmatmul.f32.gmra.mxu0 0.0
      %v1165 = vpop.f32.mrf.mxu0
      %v1166 = vadd.f32 %v1146, %v1165
      %1167 = vdwg.mxu0
      %1168 = vmatpush.msra.mxu0 %v935
      %1169 = vmatpush.msra.mxu0 %v929
      %1170 = vmatpush.msra.mxu0 %v923
      %1171 = vmatpush.msra.mxu0 %v917
      %1172 = vmatpush.msra.mxu0 %v911
      %1173 = vmatpush.msra.mxu0 %v905
      %1174 = vmatpush.msra.mxu0 %v899
      %1175 = vmatpush.msra.mxu0 %v893
      %1176 = vmatpush.msra.mxu0 %v887
      %1177 = vmatpush.msra.mxu0 %v881
      %1178 = vmatpush.msra.mxu0 %v875
      %1179 = vmatpush.msra.mxu0 %v869
      %1180 = vmatpush.msra.mxu0 %v863
      %1181 = vmatpush.msra.mxu0 %v857
      %1182 = vmatpush.msra.mxu0 %v851
      %1183 = vmatpush.msra.mxu0 %v845
      %1184 = vmatmul.f32.gmra.mxu0 0.0
      %v1185 = vpop.f32.mrf.mxu0
      %v1186 = vadd.f32 %v1039, %v1185
      %1187 = vdwg.mxu0
      %1188 = vmatpush.msra.mxu0 %v1031
      %1189 = vmatpush.msra.mxu0 %v1025
      %1190 = vmatpush.msra.mxu0 %v1019
      %1191 = vmatpush.msra.mxu0 %v1013
      %1192 = vmatpush.msra.mxu0 %v1007
      %1193 = vmatpush.msra.mxu0 %v1001
      %1194 = vmatpush.msra.mxu0 %v995
      %1195 = vmatpush.msra.mxu0 %v989
      %1196 = vmatpush.msra.mxu0 %v983
      %1197 = vmatpush.msra.mxu0 %v977
      %1198 = vmatpush.msra.mxu0 %v971
      %1199 = vmatpush.msra.mxu0 %v965
      %1200 = vmatpush.msra.mxu0 %v959
      %1201 = vmatpush.msra.mxu0 %v953
      %1202 = vmatpush.msra.mxu0 %v947
      %1203 = vmatpush.msra.mxu0 %v941
      %1204 = vmatmul.f32.gmra.mxu0 0.0
      %v1205 = vpop.f32.mrf.mxu0
      %v1206 = vadd.f32 %v1186, %v1205
      %1207 = vdwg.mxu0
      %1208 = vmatpush.msra.mxu0 %v936
      %1209 = vmatpush.msra.mxu0 %v930
      %1210 = vmatpush.msra.mxu0 %v924
      %1211 = vmatpush.msra.mxu0 %v918
      %1212 = vmatpush.msra.mxu0 %v912
      %1213 = vmatpush.msra.mxu0 %v906
      %1214 = vmatpush.msra.mxu0 %v900
      %1215 = vmatpush.msra.mxu0 %v894
      %1216 = vmatpush.msra.mxu0 %v888
      %1217 = vmatpush.msra.mxu0 %v882
      %1218 = vmatpush.msra.mxu0 %v876
      %1219 = vmatpush.msra.mxu0 %v870
      %1220 = vmatpush.msra.mxu0 %v864
      %1221 = vmatpush.msra.mxu0 %v858
      %1222 = vmatpush.msra.mxu0 %v852
      %1223 = vmatpush.msra.mxu0 %v846
      %1224 = vmatmul.f32.gmra.mxu0 0.0
      %v1225 = vpop.f32.mrf.mxu0
      %v1226 = vadd.f32 %v1040, %v1225
      %1227 = vdwg.mxu0
      %1228 = vmatpush.msra.mxu0 %v1032
      %1229 = vmatpush.msra.mxu0 %v1026
      %1230 = vmatpush.msra.mxu0 %v1020
      %1231 = vmatpush.msra.mxu0 %v1014
      %1232 = vmatpush.msra.mxu0 %v1008
      %1233 = vmatpush.msra.mxu0 %v1002
      %1234 = vmatpush.msra.mxu0 %v996
      %1235 = vmatpush.msra.mxu0 %v990
      %1236 = vmatpush.msra.mxu0 %v984
      %1237 = vmatpush.msra.mxu0 %v978
      %1238 = vmatpush.msra.mxu0 %v972
      %1239 = vmatpush.msra.mxu0 %v966
      %1240 = vmatpush.msra.mxu0 %v960
      %1241 = vmatpush.msra.mxu0 %v954
      %1242 = vmatpush.msra.mxu0 %v948
      %1243 = vmatpush.msra.mxu0 %v942
      %1244 = vmatmul.f32.gmra.mxu0 0.0
      %v1245 = vpop.f32.mrf.mxu0
      %v1246 = vadd.f32 %v1226, %v1245
      %1247 = vdwg.mxu0
      %1248 = vmatpush.msra.mxu0 %v937
      %1249 = vmatpush.msra.mxu0 %v931
      %1250 = vmatpush.msra.mxu0 %v925
      %1251 = vmatpush.msra.mxu0 %v919
      %1252 = vmatpush.msra.mxu0 %v913
      %1253 = vmatpush.msra.mxu0 %v907
      %1254 = vmatpush.msra.mxu0 %v901
      %1255 = vmatpush.msra.mxu0 %v895
      %1256 = vmatpush.msra.mxu0 %v889
      %1257 = vmatpush.msra.mxu0 %v883
      %1258 = vmatpush.msra.mxu0 %v877
      %1259 = vmatpush.msra.mxu0 %v871
      %1260 = vmatpush.msra.mxu0 %v865
      %1261 = vmatpush.msra.mxu0 %v859
      %1262 = vmatpush.msra.mxu0 %v853
      %1263 = vmatpush.msra.mxu0 %v847
      %1264 = vmatmul.f32.gmra.mxu0 0.0
      %v1265 = vpop.f32.mrf.mxu0
      %v1266 = vadd.f32 %v1041, %v1265
      %1267 = vdwg.mxu0
      %1268 = vmatpush.msra.mxu0 %v1033
      %1269 = vmatpush.msra.mxu0 %v1027
      %1270 = vmatpush.msra.mxu0 %v1021
      %1271 = vmatpush.msra.mxu0 %v1015
      %1272 = vmatpush.msra.mxu0 %v1009
      %1273 = vmatpush.msra.mxu0 %v1003
      %1274 = vmatpush.msra.mxu0 %v997
      %1275 = vmatpush.msra.mxu0 %v991
      %1276 = vmatpush.msra.mxu0 %v985
      %1277 = vmatpush.msra.mxu0 %v979
      %1278 = vmatpush.msra.mxu0 %v973
      %1279 = vmatpush.msra.mxu0 %v967
      %1280 = vmatpush.msra.mxu0 %v961
      %1281 = vmatpush.msra.mxu0 %v955
      %1282 = vmatpush.msra.mxu0 %v949
      %1283 = vmatpush.msra.mxu0 %v943
      %1284 = vmatmul.f32.gmra.mxu0 0.0
      %v1285 = vpop.f32.mrf.mxu0
      %v1286 = vadd.f32 %v1266, %v1285
      %1287 = vdwg.mxu0
      %v1288 = vadd.f32 %v635, %v1086
      %v1289 = vadd.f32 %v676, %v1126
      %v1290 = vxor.u32 %v1288, 2147483648
      %v1291 = vxor.u32 %v1289, 2147483648
      %v1292 = vmul.f32 %v1290, 1.442695
      %v1293 = vpow.pop %v1292
      %v1294 = vmul.f32 %v1291, 1.442695
      %v1295 = vpow.pop %v1294
      %v1296 = vadd.f32 %v1293, 1.0
      %v1297 = vadd.f32 %v1295, 1.0
      %v1298 = vrcp.pop %v1296
      %v1299 = vmul.f32 %v1296, %v1298
      %v1300 = vsub.f32 1.0, %v1299
      %v1301 = vmul.f32 %v1298, %v1300
      %v1302 = vadd.f32 %v1298, %v1301
      %vm1303 = vweird.f32 %v1296
      %vm1304 = vweird.f32 %v1298
      %vm1305 = vmor %vm1303, %vm1304
      %v1306 = vsel %vm1305, %v1298, %v1302
      %v1307 = vand.u32 2147483647, %v1296
      %vm1308 = vcmp.eq.f32.partialorder %v1307, 8.507059e+37
      %v1309 = vand.u32 %v1296, 2147483648
      %v1310 = vor.u32 1.1754944e-38, %v1309
      %v1311 = vsel %vm1308, %v1310, %v1306
      %v1312 = vmul.f32 1.0, %v1311
      %v1313 = vrcp.pop %v1297
      %v1314 = vmul.f32 %v1297, %v1313
      %v1315 = vsub.f32 1.0, %v1314
      %v1316 = vmul.f32 %v1313, %v1315
      %v1317 = vadd.f32 %v1313, %v1316
      %vm1318 = vweird.f32 %v1297
      %vm1319 = vweird.f32 %v1313
      %vm1320 = vmor %vm1318, %vm1319
      %v1321 = vsel %vm1320, %v1313, %v1317
      %v1322 = vand.u32 2147483647, %v1297
      %vm1323 = vcmp.eq.f32.partialorder %v1322, 8.507059e+37
      %v1324 = vand.u32 %v1297, 2147483648
      %v1325 = vor.u32 1.1754944e-38, %v1324
      %v1326 = vsel %vm1323, %v1325, %v1321
      %v1327 = vmul.f32 1.0, %v1326
      %v1328 = vadd.f32 %v717, %v1166
      %v1329 = vadd.f32 %v758, %v1206
      %v1330 = vxor.u32 %v1328, 2147483648
      %v1331 = vxor.u32 %v1329, 2147483648
      %v1332 = vmul.f32 %v1330, 1.442695
      %v1333 = vpow.pop %v1332
      %v1334 = vmul.f32 %v1331, 1.442695
      %v1335 = vpow.pop %v1334
      %v1336 = vadd.f32 %v1333, 1.0
      %v1337 = vadd.f32 %v1335, 1.0
      %v1338 = vrcp.pop %v1336
      %v1339 = vmul.f32 %v1336, %v1338
      %v1340 = vsub.f32 1.0, %v1339
      %v1341 = vmul.f32 %v1338, %v1340
      %v1342 = vadd.f32 %v1338, %v1341
      %vm1343 = vweird.f32 %v1336
      %vm1344 = vweird.f32 %v1338
      %vm1345 = vmor %vm1343, %vm1344
      %v1346 = vsel %vm1345, %v1338, %v1342
      %v1347 = vand.u32 2147483647, %v1336
      %vm1348 = vcmp.eq.f32.partialorder %v1347, 8.507059e+37
      %v1349 = vand.u32 %v1336, 2147483648
      %v1350 = vor.u32 1.1754944e-38, %v1349
      %v1351 = vsel %vm1348, %v1350, %v1346
      %v1352 = vmul.f32 1.0, %v1351
      %v1353 = vrcp.pop %v1337
      %v1354 = vmul.f32 %v1337, %v1353
      %v1355 = vsub.f32 1.0, %v1354
      %v1356 = vmul.f32 %v1353, %v1355
      %v1357 = vadd.f32 %v1353, %v1356
      %vm1358 = vweird.f32 %v1337
      %vm1359 = vweird.f32 %v1353
      %vm1360 = vmor %vm1358, %vm1359
      %v1361 = vsel %vm1360, %v1353, %v1357
      %v1362 = vand.u32 2147483647, %v1337
      %vm1363 = vcmp.eq.f32.partialorder %v1362, 8.507059e+37
      %v1364 = vand.u32 %v1337, 2147483648
      %v1365 = vor.u32 1.1754944e-38, %v1364
      %v1366 = vsel %vm1363, %v1365, %v1361
      %v1367 = vmul.f32 1.0, %v1366
      %v1368 = vmul.f32 %v1312, %v1246
      %v1369 = vmul.f32 %v1327, %v1286
      %v1370 = vadd.f32 %v799, %v1368
      %v1371 = vadd.f32 %v840, %v1369
      %v1372 = vtanh.pop %v1370
      %v1373 = vtanh.pop %v1371
      %v1374 = vsub.f32 0.0, %v1372
      %v1375 = vsub.f32 0.0, %v1373
      %v1376 = vmul.f32 %v1352, %v1374
      %v1377 = vmul.f32 %v1367, %v1375
      %v1378 = vadd.f32 %v1372, %v1376
      %v1379 = vadd.f32 %v1373, %v1377
      %1380 = vmatpush.msra.mxu0 %v932
      %1381 = vmatpush.msra.mxu0 %v926
      %1382 = vmatpush.msra.mxu0 %v920
      %1383 = vmatpush.msra.mxu0 %v914
      %1384 = vmatpush.msra.mxu0 %v908
      %1385 = vmatpush.msra.mxu0 %v902
      %1386 = vmatpush.msra.mxu0 %v896
      %1387 = vmatpush.msra.mxu0 %v890
      %1388 = vmatpush.msra.mxu0 %v884
      %1389 = vmatpush.msra.mxu0 %v878
      %1390 = vmatpush.msra.mxu0 %v872
      %1391 = vmatpush.msra.mxu0 %v866
      %1392 = vmatpush.msra.mxu0 %v860
      %1393 = vmatpush.msra.mxu0 %v854
      %1394 = vmatpush.msra.mxu0 %v848
      %1395 = vmatpush.msra.mxu0 %v842
      %1396 = vmatmul.f32.gmra.mxu0 %v1378
      %v1397 = vpop.f32.mrf.mxu0
      %v1398 = vadd.f32 %v1036, %v1397
      %1399 = vdwg.mxu0
      %1400 = vmatpush.msra.mxu0 %v1028
      %1401 = vmatpush.msra.mxu0 %v1022
      %1402 = vmatpush.msra.mxu0 %v1016
      %1403 = vmatpush.msra.mxu0 %v1010
      %1404 = vmatpush.msra.mxu0 %v1004
      %1405 = vmatpush.msra.mxu0 %v998
      %1406 = vmatpush.msra.mxu0 %v992
      %1407 = vmatpush.msra.mxu0 %v986
      %1408 = vmatpush.msra.mxu0 %v980
      %1409 = vmatpush.msra.mxu0 %v974
      %1410 = vmatpush.msra.mxu0 %v968
      %1411 = vmatpush.msra.mxu0 %v962
      %1412 = vmatpush.msra.mxu0 %v956
      %1413 = vmatpush.msra.mxu0 %v950
      %1414 = vmatpush.msra.mxu0 %v944
      %1415 = vmatpush.msra.mxu0 %v938
      %1416 = vmatmul.f32.gmra.mxu0 %v1379
      %v1417 = vpop.f32.mrf.mxu0
      %v1418 = vadd.f32 %v1398, %v1417
      %1419 = vdwg.mxu0
      %1420 = vmatpush.msra.mxu0 %v933
      %1421 = vmatpush.msra.mxu0 %v927
      %1422 = vmatpush.msra.mxu0 %v921
      %1423 = vmatpush.msra.mxu0 %v915
      %1424 = vmatpush.msra.mxu0 %v909
      %1425 = vmatpush.msra.mxu0 %v903
      %1426 = vmatpush.msra.mxu0 %v897
      %1427 = vmatpush.msra.mxu0 %v891
      %1428 = vmatpush.msra.mxu0 %v885
      %1429 = vmatpush.msra.mxu0 %v879
      %1430 = vmatpush.msra.mxu0 %v873
      %1431 = vmatpush.msra.mxu0 %v867
      %1432 = vmatpush.msra.mxu0 %v861
      %1433 = vmatpush.msra.mxu0 %v855
      %1434 = vmatpush.msra.mxu0 %v849
      %1435 = vmatpush.msra.mxu0 %v843
      %1436 = vmatmul.f32.gmra.mxu0 %v1378
      %v1437 = vpop.f32.mrf.mxu0
      %v1438 = vadd.f32 %v1037, %v1437
      %1439 = vdwg.mxu0
      %1440 = vmatpush.msra.mxu0 %v1029
      %1441 = vmatpush.msra.mxu0 %v1023
      %1442 = vmatpush.msra.mxu0 %v1017
      %1443 = vmatpush.msra.mxu0 %v1011
      %1444 = vmatpush.msra.mxu0 %v1005
      %1445 = vmatpush.msra.mxu0 %v999
      %1446 = vmatpush.msra.mxu0 %v993
      %1447 = vmatpush.msra.mxu0 %v987
      %1448 = vmatpush.msra.mxu0 %v981
      %1449 = vmatpush.msra.mxu0 %v975
      %1450 = vmatpush.msra.mxu0 %v969
      %1451 = vmatpush.msra.mxu0 %v963
      %1452 = vmatpush.msra.mxu0 %v957
      %1453 = vmatpush.msra.mxu0 %v951
      %1454 = vmatpush.msra.mxu0 %v945
      %1455 = vmatpush.msra.mxu0 %v939
      %1456 = vmatmul.f32.gmra.mxu0 %v1379
      %v1457 = vpop.f32.mrf.mxu0
      %v1458 = vadd.f32 %v1438, %v1457
      %1459 = vdwg.mxu0
      %1460 = vmatpush.msra.mxu0 %v934
      %1461 = vmatpush.msra.mxu0 %v928
      %1462 = vmatpush.msra.mxu0 %v922
      %1463 = vmatpush.msra.mxu0 %v916
      %1464 = vmatpush.msra.mxu0 %v910
      %1465 = vmatpush.msra.mxu0 %v904
      %1466 = vmatpush.msra.mxu0 %v898
      %1467 = vmatpush.msra.mxu0 %v892
      %1468 = vmatpush.msra.mxu0 %v886
      %1469 = vmatpush.msra.mxu0 %v880
      %1470 = vmatpush.msra.mxu0 %v874
      %1471 = vmatpush.msra.mxu0 %v868
      %1472 = vmatpush.msra.mxu0 %v862
      %1473 = vmatpush.msra.mxu0 %v856
      %1474 = vmatpush.msra.mxu0 %v850
      %1475 = vmatpush.msra.mxu0 %v844
      %1476 = vmatmul.f32.gmra.mxu0 %v1378
      %v1477 = vpop.f32.mrf.mxu0
      %v1478 = vadd.f32 %v1038, %v1477
      %1479 = vdwg.mxu0
      %1480 = vmatpush.msra.mxu0 %v1030
      %1481 = vmatpush.msra.mxu0 %v1024
      %1482 = vmatpush.msra.mxu0 %v1018
      %1483 = vmatpush.msra.mxu0 %v1012
      %1484 = vmatpush.msra.mxu0 %v1006
      %1485 = vmatpush.msra.mxu0 %v1000
      %1486 = vmatpush.msra.mxu0 %v994
      %1487 = vmatpush.msra.mxu0 %v988
      %1488 = vmatpush.msra.mxu0 %v982
      %1489 = vmatpush.msra.mxu0 %v976
      %1490 = vmatpush.msra.mxu0 %v970
      %1491 = vmatpush.msra.mxu0 %v964
      %1492 = vmatpush.msra.mxu0 %v958
      %1493 = vmatpush.msra.mxu0 %v952
      %1494 = vmatpush.msra.mxu0 %v946
      %1495 = vmatpush.msra.mxu0 %v940
      %1496 = vmatmul.f32.gmra.mxu0 %v1379
      %v1497 = vpop.f32.mrf.mxu0
      %v1498 = vadd.f32 %v1478, %v1497
      %1499 = vdwg.mxu0
      %1500 = vmatpush.msra.mxu0 %v935
      %1501 = vmatpush.msra.mxu0 %v929
      %1502 = vmatpush.msra.mxu0 %v923
      %1503 = vmatpush.msra.mxu0 %v917
      %1504 = vmatpush.msra.mxu0 %v911
      %1505 = vmatpush.msra.mxu0 %v905
      %1506 = vmatpush.msra.mxu0 %v899
      %1507 = vmatpush.msra.mxu0 %v893
      %1508 = vmatpush.msra.mxu0 %v887
      %1509 = vmatpush.msra.mxu0 %v881
      %1510 = vmatpush.msra.mxu0 %v875
      %1511 = vmatpush.msra.mxu0 %v869
      %1512 = vmatpush.msra.mxu0 %v863
      %1513 = vmatpush.msra.mxu0 %v857
      %1514 = vmatpush.msra.mxu0 %v851
      %1515 = vmatpush.msra.mxu0 %v845
      %1516 = vmatmul.f32.gmra.mxu0 %v1378
      %v1517 = vpop.f32.mrf.mxu0
      %v1518 = vadd.f32 %v1039, %v1517
      %1519 = vdwg.mxu0
      %1520 = vmatpush.msra.mxu0 %v1031
      %1521 = vmatpush.msra.mxu0 %v1025
      %1522 = vmatpush.msra.mxu0 %v1019
      %1523 = vmatpush.msra.mxu0 %v1013
      %1524 = vmatpush.msra.mxu0 %v1007
      %1525 = vmatpush.msra.mxu0 %v1001
      %1526 = vmatpush.msra.mxu0 %v995
      %1527 = vmatpush.msra.mxu0 %v989
      %1528 = vmatpush.msra.mxu0 %v983
      %1529 = vmatpush.msra.mxu0 %v977
      %1530 = vmatpush.msra.mxu0 %v971
      %1531 = vmatpush.msra.mxu0 %v965
      %1532 = vmatpush.msra.mxu0 %v959
      %1533 = vmatpush.msra.mxu0 %v953
      %1534 = vmatpush.msra.mxu0 %v947
      %1535 = vmatpush.msra.mxu0 %v941
      %1536 = vmatmul.f32.gmra.mxu0 %v1379
      %v1537 = vpop.f32.mrf.mxu0
      %v1538 = vadd.f32 %v1518, %v1537
      %1539 = vdwg.mxu0
      %1540 = vmatpush.msra.mxu0 %v936
      %1541 = vmatpush.msra.mxu0 %v930
      %1542 = vmatpush.msra.mxu0 %v924
      %1543 = vmatpush.msra.mxu0 %v918
      %1544 = vmatpush.msra.mxu0 %v912
      %1545 = vmatpush.msra.mxu0 %v906
      %1546 = vmatpush.msra.mxu0 %v900
      %1547 = vmatpush.msra.mxu0 %v894
      %1548 = vmatpush.msra.mxu0 %v888
      %1549 = vmatpush.msra.mxu0 %v882
      %1550 = vmatpush.msra.mxu0 %v876
      %1551 = vmatpush.msra.mxu0 %v870
      %1552 = vmatpush.msra.mxu0 %v864
      %1553 = vmatpush.msra.mxu0 %v858
      %1554 = vmatpush.msra.mxu0 %v852
      %1555 = vmatpush.msra.mxu0 %v846
      %1556 = vmatmul.f32.gmra.mxu0 %v1378
      %v1557 = vpop.f32.mrf.mxu0
      %v1558 = vadd.f32 %v1040, %v1557
      %1559 = vdwg.mxu0
      %1560 = vmatpush.msra.mxu0 %v1032
      %1561 = vmatpush.msra.mxu0 %v1026
      %1562 = vmatpush.msra.mxu0 %v1020
      %1563 = vmatpush.msra.mxu0 %v1014
      %1564 = vmatpush.msra.mxu0 %v1008
      %1565 = vmatpush.msra.mxu0 %v1002
      %1566 = vmatpush.msra.mxu0 %v996
      %1567 = vmatpush.msra.mxu0 %v990
      %1568 = vmatpush.msra.mxu0 %v984
      %1569 = vmatpush.msra.mxu0 %v978
      %1570 = vmatpush.msra.mxu0 %v972
      %1571 = vmatpush.msra.mxu0 %v966
      %1572 = vmatpush.msra.mxu0 %v960
      %1573 = vmatpush.msra.mxu0 %v954
      %1574 = vmatpush.msra.mxu0 %v948
      %1575 = vmatpush.msra.mxu0 %v942
      %1576 = vmatmul.f32.gmra.mxu0 %v1379
      %v1577 = vpop.f32.mrf.mxu0
      %v1578 = vadd.f32 %v1558, %v1577
      %1579 = vdwg.mxu0
      %1580 = vmatpush.msra.mxu0 %v937
      %1581 = vmatpush.msra.mxu0 %v931
      %1582 = vmatpush.msra.mxu0 %v925
      %1583 = vmatpush.msra.mxu0 %v919
      %1584 = vmatpush.msra.mxu0 %v913
      %1585 = vmatpush.msra.mxu0 %v907
      %1586 = vmatpush.msra.mxu0 %v901
      %1587 = vmatpush.msra.mxu0 %v895
      %1588 = vmatpush.msra.mxu0 %v889
      %1589 = vmatpush.msra.mxu0 %v883
      %1590 = vmatpush.msra.mxu0 %v877
      %1591 = vmatpush.msra.mxu0 %v871
      %1592 = vmatpush.msra.mxu0 %v865
      %1593 = vmatpush.msra.mxu0 %v859
      %1594 = vmatpush.msra.mxu0 %v853
      %1595 = vmatpush.msra.mxu0 %v847
      %1596 = vmatmul.f32.gmra.mxu0 %v1378
      %v1597 = vpop.f32.mrf.mxu0
      %v1598 = vadd.f32 %v1041, %v1597
      %1599 = vdwg.mxu0
      %1600 = vmatpush.msra.mxu0 %v1033
      %1601 = vmatpush.msra.mxu0 %v1027
      %1602 = vmatpush.msra.mxu0 %v1021
      %1603 = vmatpush.msra.mxu0 %v1015
      %1604 = vmatpush.msra.mxu0 %v1009
      %1605 = vmatpush.msra.mxu0 %v1003
      %1606 = vmatpush.msra.mxu0 %v997
      %1607 = vmatpush.msra.mxu0 %v991
      %1608 = vmatpush.msra.mxu0 %v985
      %1609 = vmatpush.msra.mxu0 %v979
      %1610 = vmatpush.msra.mxu0 %v973
      %1611 = vmatpush.msra.mxu0 %v967
      %1612 = vmatpush.msra.mxu0 %v961
      %1613 = vmatpush.msra.mxu0 %v955
      %1614 = vmatpush.msra.mxu0 %v949
      %1615 = vmatpush.msra.mxu0 %v943
      %1616 = vmatmul.f32.gmra.mxu0 %v1379
      %v1617 = vpop.f32.mrf.mxu0
      %v1618 = vadd.f32 %v1598, %v1617
      %1619 = vdwg.mxu0
      %v1620 = vadd.f32 %v632, %v1418
      %v1621 = vadd.f32 %v673, %v1458
      %v1622 = vxor.u32 %v1620, 2147483648
      %v1623 = vxor.u32 %v1621, 2147483648
      %v1624 = vmul.f32 %v1622, 1.442695
      %v1625 = vpow.pop %v1624
      %v1626 = vmul.f32 %v1623, 1.442695
      %v1627 = vpow.pop %v1626
      %v1628 = vadd.f32 %v1625, 1.0
      %v1629 = vadd.f32 %v1627, 1.0
      %v1630 = vrcp.pop %v1628
      %v1631 = vmul.f32 %v1628, %v1630
      %v1632 = vsub.f32 1.0, %v1631
      %v1633 = vmul.f32 %v1630, %v1632
      %v1634 = vadd.f32 %v1630, %v1633
      %vm1635 = vweird.f32 %v1628
      %vm1636 = vweird.f32 %v1630
      %vm1637 = vmor %vm1635, %vm1636
      %v1638 = vsel %vm1637, %v1630, %v1634
      %v1639 = vand.u32 2147483647, %v1628
      %vm1640 = vcmp.eq.f32.partialorder %v1639, 8.507059e+37
      %v1641 = vand.u32 %v1628, 2147483648
      %v1642 = vor.u32 1.1754944e-38, %v1641
      %v1643 = vsel %vm1640, %v1642, %v1638
      %v1644 = vmul.f32 1.0, %v1643
      %v1645 = vrcp.pop %v1629
      %v1646 = vmul.f32 %v1629, %v1645
      %v1647 = vsub.f32 1.0, %v1646
      %v1648 = vmul.f32 %v1645, %v1647
      %v1649 = vadd.f32 %v1645, %v1648
      %vm1650 = vweird.f32 %v1629
      %vm1651 = vweird.f32 %v1645
      %vm1652 = vmor %vm1650, %vm1651
      %v1653 = vsel %vm1652, %v1645, %v1649
      %v1654 = vand.u32 2147483647, %v1629
      %vm1655 = vcmp.eq.f32.partialorder %v1654, 8.507059e+37
      %v1656 = vand.u32 %v1629, 2147483648
      %v1657 = vor.u32 1.1754944e-38, %v1656
      %v1658 = vsel %vm1655, %v1657, %v1653
      %v1659 = vmul.f32 1.0, %v1658
      %v1660 = vadd.f32 %v714, %v1498
      %v1661 = vadd.f32 %v755, %v1538
      %v1662 = vxor.u32 %v1660, 2147483648
      %v1663 = vxor.u32 %v1661, 2147483648
      %v1664 = vmul.f32 %v1662, 1.442695
      %v1665 = vpow.pop %v1664
      %v1666 = vmul.f32 %v1663, 1.442695
      %v1667 = vpow.pop %v1666
      %v1668 = vadd.f32 %v1665, 1.0
      %v1669 = vadd.f32 %v1667, 1.0
      %v1670 = vrcp.pop %v1668
      %v1671 = vmul.f32 %v1668, %v1670
      %v1672 = vsub.f32 1.0, %v1671
      %v1673 = vmul.f32 %v1670, %v1672
      %v1674 = vadd.f32 %v1670, %v1673
      %vm1675 = vweird.f32 %v1668
      %vm1676 = vweird.f32 %v1670
      %vm1677 = vmor %vm1675, %vm1676
      %v1678 = vsel %vm1677, %v1670, %v1674
      %v1679 = vand.u32 2147483647, %v1668
      %vm1680 = vcmp.eq.f32.partialorder %v1679, 8.507059e+37
      %v1681 = vand.u32 %v1668, 2147483648
      %v1682 = vor.u32 1.1754944e-38, %v1681
      %v1683 = vsel %vm1680, %v1682, %v1678
      %v1684 = vmul.f32 1.0, %v1683
      %v1685 = vrcp.pop %v1669
      %v1686 = vmul.f32 %v1669, %v1685
      %v1687 = vsub.f32 1.0, %v1686
      %v1688 = vmul.f32 %v1685, %v1687
      %v1689 = vadd.f32 %v1685, %v1688
      %vm1690 = vweird.f32 %v1669
      %vm1691 = vweird.f32 %v1685
      %vm1692 = vmor %vm1690, %vm1691
      %v1693 = vsel %vm1692, %v1685, %v1689
      %v1694 = vand.u32 2147483647, %v1669
      %vm1695 = vcmp.eq.f32.partialorder %v1694, 8.507059e+37
      %v1696 = vand.u32 %v1669, 2147483648
      %v1697 = vor.u32 1.1754944e-38, %v1696
      %v1698 = vsel %vm1695, %v1697, %v1693
      %v1699 = vmul.f32 1.0, %v1698
      %v1700 = vmul.f32 %v1644, %v1578
      %v1701 = vmul.f32 %v1659, %v1618
      %v1702 = vadd.f32 %v796, %v1700
      %v1703 = vadd.f32 %v837, %v1701
      %v1704 = vtanh.pop %v1702
      %v1705 = vtanh.pop %v1703
      %v1706 = vsub.f32 %v1378, %v1704
      %v1707 = vsub.f32 %v1379, %v1705
      %v1708 = vmul.f32 %v1684, %v1706
      %v1709 = vmul.f32 %v1699, %v1707
      %v1710 = vadd.f32 %v1704, %v1708
      %v1711 = vadd.f32 %v1705, %v1709
      %1712 = vmatpush.msra.mxu0 %v932
      %1713 = vmatpush.msra.mxu0 %v926
      %1714 = vmatpush.msra.mxu0 %v920
      %1715 = vmatpush.msra.mxu0 %v914
      %1716 = vmatpush.msra.mxu0 %v908
      %1717 = vmatpush.msra.mxu0 %v902
      %1718 = vmatpush.msra.mxu0 %v896
      %1719 = vmatpush.msra.mxu0 %v890
      %1720 = vmatpush.msra.mxu0 %v884
      %1721 = vmatpush.msra.mxu0 %v878
      %1722 = vmatpush.msra.mxu0 %v872
      %1723 = vmatpush.msra.mxu0 %v866
      %1724 = vmatpush.msra.mxu0 %v860
      %1725 = vmatpush.msra.mxu0 %v854
      %1726 = vmatpush.msra.mxu0 %v848
      %1727 = vmatpush.msra.mxu0 %v842
      %1728 = vmatmul.f32.gmra.mxu0 %v1710
      %v1729 = vpop.f32.mrf.mxu0
      %v1730 = vadd.f32 %v1036, %v1729
      %1731 = vdwg.mxu0
      %1732 = vmatpush.msra.mxu0 %v1028
      %1733 = vmatpush.msra.mxu0 %v1022
      %1734 = vmatpush.msra.mxu0 %v1016
      %1735 = vmatpush.msra.mxu0 %v1010
      %1736 = vmatpush.msra.mxu0 %v1004
      %1737 = vmatpush.msra.mxu0 %v998
      %1738 = vmatpush.msra.mxu0 %v992
      %1739 = vmatpush.msra.mxu0 %v986
      %1740 = vmatpush.msra.mxu0 %v980
      %1741 = vmatpush.msra.mxu0 %v974
      %1742 = vmatpush.msra.mxu0 %v968
      %1743 = vmatpush.msra.mxu0 %v962
      %1744 = vmatpush.msra.mxu0 %v956
      %1745 = vmatpush.msra.mxu0 %v950
      %1746 = vmatpush.msra.mxu0 %v944
      %1747 = vmatpush.msra.mxu0 %v938
      %1748 = vmatmul.f32.gmra.mxu0 %v1711
      %v1749 = vpop.f32.mrf.mxu0
      %v1750 = vadd.f32 %v1730, %v1749
      %1751 = vdwg.mxu0
      %1752 = vmatpush.msra.mxu0 %v933
      %1753 = vmatpush.msra.mxu0 %v927
      %1754 = vmatpush.msra.mxu0 %v921
      %1755 = vmatpush.msra.mxu0 %v915
      %1756 = vmatpush.msra.mxu0 %v909
      %1757 = vmatpush.msra.mxu0 %v903
      %1758 = vmatpush.msra.mxu0 %v897
      %1759 = vmatpush.msra.mxu0 %v891
      %1760 = vmatpush.msra.mxu0 %v885
      %1761 = vmatpush.msra.mxu0 %v879
      %1762 = vmatpush.msra.mxu0 %v873
      %1763 = vmatpush.msra.mxu0 %v867
      %1764 = vmatpush.msra.mxu0 %v861
      %1765 = vmatpush.msra.mxu0 %v855
      %1766 = vmatpush.msra.mxu0 %v849
      %1767 = vmatpush.msra.mxu0 %v843
      %1768 = vmatmul.f32.gmra.mxu0 %v1710
      %v1769 = vpop.f32.mrf.mxu0
      %v1770 = vadd.f32 %v1037, %v1769
      %1771 = vdwg.mxu0
      %1772 = vmatpush.msra.mxu0 %v1029
      %1773 = vmatpush.msra.mxu0 %v1023
      %1774 = vmatpush.msra.mxu0 %v1017
      %1775 = vmatpush.msra.mxu0 %v1011
      %1776 = vmatpush.msra.mxu0 %v1005
      %1777 = vmatpush.msra.mxu0 %v999
      %1778 = vmatpush.msra.mxu0 %v993
      %1779 = vmatpush.msra.mxu0 %v987
      %1780 = vmatpush.msra.mxu0 %v981
      %1781 = vmatpush.msra.mxu0 %v975
      %1782 = vmatpush.msra.mxu0 %v969
      %1783 = vmatpush.msra.mxu0 %v963
      %1784 = vmatpush.msra.mxu0 %v957
      %1785 = vmatpush.msra.mxu0 %v951
      %1786 = vmatpush.msra.mxu0 %v945
      %1787 = vmatpush.msra.mxu0 %v939
      %1788 = vmatmul.f32.gmra.mxu0 %v1711
      %v1789 = vpop.f32.mrf.mxu0
      %v1790 = vadd.f32 %v1770, %v1789
      %1791 = vdwg.mxu0
      %1792 = vmatpush.msra.mxu0 %v934
      %1793 = vmatpush.msra.mxu0 %v928
      %1794 = vmatpush.msra.mxu0 %v922
      %1795 = vmatpush.msra.mxu0 %v916
      %1796 = vmatpush.msra.mxu0 %v910
      %1797 = vmatpush.msra.mxu0 %v904
      %1798 = vmatpush.msra.mxu0 %v898
      %1799 = vmatpush.msra.mxu0 %v892
      %1800 = vmatpush.msra.mxu0 %v886
      %1801 = vmatpush.msra.mxu0 %v880
      %1802 = vmatpush.msra.mxu0 %v874
      %1803 = vmatpush.msra.mxu0 %v868
      %1804 = vmatpush.msra.mxu0 %v862
      %1805 = vmatpush.msra.mxu0 %v856
      %1806 = vmatpush.msra.mxu0 %v850
      %1807 = vmatpush.msra.mxu0 %v844
      %1808 = vmatmul.f32.gmra.mxu0 %v1710
      %v1809 = vpop.f32.mrf.mxu0
      %v1810 = vadd.f32 %v1038, %v1809
      %1811 = vdwg.mxu0
      %1812 = vmatpush.msra.mxu0 %v1030
      %1813 = vmatpush.msra.mxu0 %v1024
      %1814 = vmatpush.msra.mxu0 %v1018
      %1815 = vmatpush.msra.mxu0 %v1012
      %1816 = vmatpush.msra.mxu0 %v1006
      %1817 = vmatpush.msra.mxu0 %v1000
      %1818 = vmatpush.msra.mxu0 %v994
      %1819 = vmatpush.msra.mxu0 %v988
      %1820 = vmatpush.msra.mxu0 %v982
      %1821 = vmatpush.msra.mxu0 %v976
      %1822 = vmatpush.msra.mxu0 %v970
      %1823 = vmatpush.msra.mxu0 %v964
      %1824 = vmatpush.msra.mxu0 %v958
      %1825 = vmatpush.msra.mxu0 %v952
      %1826 = vmatpush.msra.mxu0 %v946
      %1827 = vmatpush.msra.mxu0 %v940
      %1828 = vmatmul.f32.gmra.mxu0 %v1711
      %v1829 = vpop.f32.mrf.mxu0
      %v1830 = vadd.f32 %v1810, %v1829
      %1831 = vdwg.mxu0
      %1832 = vmatpush.msra.mxu0 %v935
      %1833 = vmatpush.msra.mxu0 %v929
      %1834 = vmatpush.msra.mxu0 %v923
      %1835 = vmatpush.msra.mxu0 %v917
      %1836 = vmatpush.msra.mxu0 %v911
      %1837 = vmatpush.msra.mxu0 %v905
      %1838 = vmatpush.msra.mxu0 %v899
      %1839 = vmatpush.msra.mxu0 %v893
      %1840 = vmatpush.msra.mxu0 %v887
      %1841 = vmatpush.msra.mxu0 %v881
      %1842 = vmatpush.msra.mxu0 %v875
      %1843 = vmatpush.msra.mxu0 %v869
      %1844 = vmatpush.msra.mxu0 %v863
      %1845 = vmatpush.msra.mxu0 %v857
      %1846 = vmatpush.msra.mxu0 %v851
      %1847 = vmatpush.msra.mxu0 %v845
      %1848 = vmatmul.f32.gmra.mxu0 %v1710
      %v1849 = vpop.f32.mrf.mxu0
      %v1850 = vadd.f32 %v1039, %v1849
      %1851 = vdwg.mxu0
      %1852 = vmatpush.msra.mxu0 %v1031
      %1853 = vmatpush.msra.mxu0 %v1025
      %1854 = vmatpush.msra.mxu0 %v1019
      %1855 = vmatpush.msra.mxu0 %v1013
      %1856 = vmatpush.msra.mxu0 %v1007
      %1857 = vmatpush.msra.mxu0 %v1001
      %1858 = vmatpush.msra.mxu0 %v995
      %1859 = vmatpush.msra.mxu0 %v989
      %1860 = vmatpush.msra.mxu0 %v983
      %1861 = vmatpush.msra.mxu0 %v977
      %1862 = vmatpush.msra.mxu0 %v971
      %1863 = vmatpush.msra.mxu0 %v965
      %1864 = vmatpush.msra.mxu0 %v959
      %1865 = vmatpush.msra.mxu0 %v953
      %1866 = vmatpush.msra.mxu0 %v947
      %1867 = vmatpush.msra.mxu0 %v941
      %1868 = vmatmul.f32.gmra.mxu0 %v1711
      %v1869 = vpop.f32.mrf.mxu0
      %v1870 = vadd.f32 %v1850, %v1869
      %1871 = vdwg.mxu0
      %1872 = vmatpush.msra.mxu0 %v936
      %1873 = vmatpush.msra.mxu0 %v930
      %1874 = vmatpush.msra.mxu0 %v924
      %1875 = vmatpush.msra.mxu0 %v918
      %1876 = vmatpush.msra.mxu0 %v912
      %1877 = vmatpush.msra.mxu0 %v906
      %1878 = vmatpush.msra.mxu0 %v900
      %1879 = vmatpush.msra.mxu0 %v894
      %1880 = vmatpush.msra.mxu0 %v888
      %1881 = vmatpush.msra.mxu0 %v882
      %1882 = vmatpush.msra.mxu0 %v876
      %1883 = vmatpush.msra.mxu0 %v870
      %1884 = vmatpush.msra.mxu0 %v864
      %1885 = vmatpush.msra.mxu0 %v858
      %1886 = vmatpush.msra.mxu0 %v852
      %1887 = vmatpush.msra.mxu0 %v846
      %1888 = vmatmul.f32.gmra.mxu0 %v1710
      %v1889 = vpop.f32.mrf.mxu0
      %v1890 = vadd.f32 %v1040, %v1889
      %1891 = vdwg.mxu0
      %1892 = vmatpush.msra.mxu0 %v1032
      %1893 = vmatpush.msra.mxu0 %v1026
      %1894 = vmatpush.msra.mxu0 %v1020
      %1895 = vmatpush.msra.mxu0 %v1014
      %1896 = vmatpush.msra.mxu0 %v1008
      %1897 = vmatpush.msra.mxu0 %v1002
      %1898 = vmatpush.msra.mxu0 %v996
      %1899 = vmatpush.msra.mxu0 %v990
      %1900 = vmatpush.msra.mxu0 %v984
      %1901 = vmatpush.msra.mxu0 %v978
      %1902 = vmatpush.msra.mxu0 %v972
      %1903 = vmatpush.msra.mxu0 %v966
      %1904 = vmatpush.msra.mxu0 %v960
      %1905 = vmatpush.msra.mxu0 %v954
      %1906 = vmatpush.msra.mxu0 %v948
      %1907 = vmatpush.msra.mxu0 %v942
      %1908 = vmatmul.f32.gmra.mxu0 %v1711
      %v1909 = vpop.f32.mrf.mxu0
      %v1910 = vadd.f32 %v1890, %v1909
      %1911 = vdwg.mxu0
      %1912 = vmatpush.msra.mxu0 %v937
      %1913 = vmatpush.msra.mxu0 %v931
      %1914 = vmatpush.msra.mxu0 %v925
      %1915 = vmatpush.msra.mxu0 %v919
      %1916 = vmatpush.msra.mxu0 %v913
      %1917 = vmatpush.msra.mxu0 %v907
      %1918 = vmatpush.msra.mxu0 %v901
      %1919 = vmatpush.msra.mxu0 %v895
      %1920 = vmatpush.msra.mxu0 %v889
      %1921 = vmatpush.msra.mxu0 %v883
      %1922 = vmatpush.msra.mxu0 %v877
      %1923 = vmatpush.msra.mxu0 %v871
      %1924 = vmatpush.msra.mxu0 %v865
      %1925 = vmatpush.msra.mxu0 %v859
      %1926 = vmatpush.msra.mxu0 %v853
      %1927 = vmatpush.msra.mxu0 %v847
      %1928 = vmatmul.f32.gmra.mxu0 %v1710
      %v1929 = vpop.f32.mrf.mxu0
      %v1930 = vadd.f32 %v1041, %v1929
      %1931 = vdwg.mxu0
      %1932 = vmatpush.msra.mxu0 %v1033
      %1933 = vmatpush.msra.mxu0 %v1027
      %1934 = vmatpush.msra.mxu0 %v1021
      %1935 = vmatpush.msra.mxu0 %v1015
      %1936 = vmatpush.msra.mxu0 %v1009
      %1937 = vmatpush.msra.mxu0 %v1003
      %1938 = vmatpush.msra.mxu0 %v997
      %1939 = vmatpush.msra.mxu0 %v991
      %1940 = vmatpush.msra.mxu0 %v985
      %1941 = vmatpush.msra.mxu0 %v979
      %1942 = vmatpush.msra.mxu0 %v973
      %1943 = vmatpush.msra.mxu0 %v967
      %1944 = vmatpush.msra.mxu0 %v961
      %1945 = vmatpush.msra.mxu0 %v955
      %1946 = vmatpush.msra.mxu0 %v949
      %1947 = vmatpush.msra.mxu0 %v943
      %1948 = vmatmul.f32.gmra.mxu0 %v1711
      %v1949 = vpop.f32.mrf.mxu0
      %v1950 = vadd.f32 %v1930, %v1949
      %1951 = vdwg.mxu0
      %v1952 = vadd.f32 %v629, %v1750
      %v1953 = vadd.f32 %v670, %v1790
      %v1954 = vxor.u32 %v1952, 2147483648
      %v1955 = vxor.u32 %v1953, 2147483648
      %v1956 = vmul.f32 %v1954, 1.442695
      %v1957 = vpow.pop %v1956
      %v1958 = vmul.f32 %v1955, 1.442695
      %v1959 = vpow.pop %v1958
      %v1960 = vadd.f32 %v1957, 1.0
      %v1961 = vadd.f32 %v1959, 1.0
      %v1962 = vrcp.pop %v1960
      %v1963 = vmul.f32 %v1960, %v1962
      %v1964 = vsub.f32 1.0, %v1963
      %v1965 = vmul.f32 %v1962, %v1964
      %v1966 = vadd.f32 %v1962, %v1965
      %vm1967 = vweird.f32 %v1960
      %vm1968 = vweird.f32 %v1962
      %vm1969 = vmor %vm1967, %vm1968
      %v1970 = vsel %vm1969, %v1962, %v1966
      %v1971 = vand.u32 2147483647, %v1960
      %vm1972 = vcmp.eq.f32.partialorder %v1971, 8.507059e+37
      %v1973 = vand.u32 %v1960, 2147483648
      %v1974 = vor.u32 1.1754944e-38, %v1973
      %v1975 = vsel %vm1972, %v1974, %v1970
      %v1976 = vmul.f32 1.0, %v1975
      %v1977 = vrcp.pop %v1961
      %v1978 = vmul.f32 %v1961, %v1977
      %v1979 = vsub.f32 1.0, %v1978
      %v1980 = vmul.f32 %v1977, %v1979
      %v1981 = vadd.f32 %v1977, %v1980
      %vm1982 = vweird.f32 %v1961
      %vm1983 = vweird.f32 %v1977
      %vm1984 = vmor %vm1982, %vm1983
      %v1985 = vsel %vm1984, %v1977, %v1981
      %v1986 = vand.u32 2147483647, %v1961
      %vm1987 = vcmp.eq.f32.partialorder %v1986, 8.507059e+37
      %v1988 = vand.u32 %v1961, 2147483648
      %v1989 = vor.u32 1.1754944e-38, %v1988
      %v1990 = vsel %vm1987, %v1989, %v1985
      %v1991 = vmul.f32 1.0, %v1990
      %v1992 = vadd.f32 %v711, %v1830
      %v1993 = vadd.f32 %v752, %v1870
      %v1994 = vxor.u32 %v1992, 2147483648
      %v1995 = vxor.u32 %v1993, 2147483648
      %v1996 = vmul.f32 %v1994, 1.442695
      %v1997 = vpow.pop %v1996
      %v1998 = vmul.f32 %v1995, 1.442695
      %v1999 = vpow.pop %v1998
      %v2000 = vadd.f32 %v1997, 1.0
      %v2001 = vadd.f32 %v1999, 1.0
      %v2002 = vrcp.pop %v2000
      %v2003 = vmul.f32 %v2000, %v2002
      %v2004 = vsub.f32 1.0, %v2003
      %v2005 = vmul.f32 %v2002, %v2004
      %v2006 = vadd.f32 %v2002, %v2005
      %vm2007 = vweird.f32 %v2000
      %vm2008 = vweird.f32 %v2002
      %vm2009 = vmor %vm2007, %vm2008
      %v2010 = vsel %vm2009, %v2002, %v2006
      %v2011 = vand.u32 2147483647, %v2000
      %vm2012 = vcmp.eq.f32.partialorder %v2011, 8.507059e+37
      %v2013 = vand.u32 %v2000, 2147483648
      %v2014 = vor.u32 1.1754944e-38, %v2013
      %v2015 = vsel %vm2012, %v2014, %v2010
      %v2016 = vmul.f32 1.0, %v2015
      %v2017 = vrcp.pop %v2001
      %v2018 = vmul.f32 %v2001, %v2017
      %v2019 = vsub.f32 1.0, %v2018
      %v2020 = vmul.f32 %v2017, %v2019
      %v2021 = vadd.f32 %v2017, %v2020
      %vm2022 = vweird.f32 %v2001
      %vm2023 = vweird.f32 %v2017
      %vm2024 = vmor %vm2022, %vm2023
      %v2025 = vsel %vm2024, %v2017, %v2021
      %v2026 = vand.u32 2147483647, %v2001
      %vm2027 = vcmp.eq.f32.partialorder %v2026, 8.507059e+37
      %v2028 = vand.u32 %v2001, 2147483648
      %v2029 = vor.u32 1.1754944e-38, %v2028
      %v2030 = vsel %vm2027, %v2029, %v2025
      %v2031 = vmul.f32 1.0, %v2030
      %v2032 = vmul.f32 %v1976, %v1910
      %v2033 = vmul.f32 %v1991, %v1950
      %v2034 = vadd.f32 %v793, %v2032
      %v2035 = vadd.f32 %v834, %v2033
      %v2036 = vtanh.pop %v2034
      %v2037 = vtanh.pop %v2035
      %v2038 = vsub.f32 %v1710, %v2036
      %v2039 = vsub.f32 %v1711, %v2037
      %v2040 = vmul.f32 %v2016, %v2038
      %v2041 = vmul.f32 %v2031, %v2039
      %v2042 = vadd.f32 %v2036, %v2040
      %v2043 = vadd.f32 %v2037, %v2041
      %2044 = vmatpush.msra.mxu0 %v932
      %2045 = vmatpush.msra.mxu0 %v926
      %2046 = vmatpush.msra.mxu0 %v920
      %2047 = vmatpush.msra.mxu0 %v914
      %2048 = vmatpush.msra.mxu0 %v908
      %2049 = vmatpush.msra.mxu0 %v902
      %2050 = vmatpush.msra.mxu0 %v896
      %2051 = vmatpush.msra.mxu0 %v890
      %2052 = vmatpush.msra.mxu0 %v884
      %2053 = vmatpush.msra.mxu0 %v878
      %2054 = vmatpush.msra.mxu0 %v872
      %2055 = vmatpush.msra.mxu0 %v866
      %2056 = vmatpush.msra.mxu0 %v860
      %2057 = vmatpush.msra.mxu0 %v854
      %2058 = vmatpush.msra.mxu0 %v848
      %2059 = vmatpush.msra.mxu0 %v842
      %2060 = vmatmul.f32.gmra.mxu0 %v2042
      %v2061 = vpop.f32.mrf.mxu0
      %v2062 = vadd.f32 %v1036, %v2061
      %2063 = vdwg.mxu0
      %2064 = vmatpush.msra.mxu0 %v1028
      %2065 = vmatpush.msra.mxu0 %v1022
      %2066 = vmatpush.msra.mxu0 %v1016
      %2067 = vmatpush.msra.mxu0 %v1010
      %2068 = vmatpush.msra.mxu0 %v1004
      %2069 = vmatpush.msra.mxu0 %v998
      %2070 = vmatpush.msra.mxu0 %v992
      %2071 = vmatpush.msra.mxu0 %v986
      %2072 = vmatpush.msra.mxu0 %v980
      %2073 = vmatpush.msra.mxu0 %v974
      %2074 = vmatpush.msra.mxu0 %v968
      %2075 = vmatpush.msra.mxu0 %v962
      %2076 = vmatpush.msra.mxu0 %v956
      %2077 = vmatpush.msra.mxu0 %v950
      %2078 = vmatpush.msra.mxu0 %v944
      %2079 = vmatpush.msra.mxu0 %v938
      %2080 = vmatmul.f32.gmra.mxu0 %v2043
      %v2081 = vpop.f32.mrf.mxu0
      %v2082 = vadd.f32 %v2062, %v2081
      %2083 = vdwg.mxu0
      %2084 = vmatpush.msra.mxu0 %v933
      %2085 = vmatpush.msra.mxu0 %v927
      %2086 = vmatpush.msra.mxu0 %v921
      %2087 = vmatpush.msra.mxu0 %v915
      %2088 = vmatpush.msra.mxu0 %v909
      %2089 = vmatpush.msra.mxu0 %v903
      %2090 = vmatpush.msra.mxu0 %v897
      %2091 = vmatpush.msra.mxu0 %v891
      %2092 = vmatpush.msra.mxu0 %v885
      %2093 = vmatpush.msra.mxu0 %v879
      %2094 = vmatpush.msra.mxu0 %v873
      %2095 = vmatpush.msra.mxu0 %v867
      %2096 = vmatpush.msra.mxu0 %v861
      %2097 = vmatpush.msra.mxu0 %v855
      %2098 = vmatpush.msra.mxu0 %v849
      %2099 = vmatpush.msra.mxu0 %v843
      %2100 = vmatmul.f32.gmra.mxu0 %v2042
      %v2101 = vpop.f32.mrf.mxu0
      %v2102 = vadd.f32 %v1037, %v2101
      %2103 = vdwg.mxu0
      %2104 = vmatpush.msra.mxu0 %v1029
      %2105 = vmatpush.msra.mxu0 %v1023
      %2106 = vmatpush.msra.mxu0 %v1017
      %2107 = vmatpush.msra.mxu0 %v1011
      %2108 = vmatpush.msra.mxu0 %v1005
      %2109 = vmatpush.msra.mxu0 %v999
      %2110 = vmatpush.msra.mxu0 %v993
      %2111 = vmatpush.msra.mxu0 %v987
      %2112 = vmatpush.msra.mxu0 %v981
      %2113 = vmatpush.msra.mxu0 %v975
      %2114 = vmatpush.msra.mxu0 %v969
      %2115 = vmatpush.msra.mxu0 %v963
      %2116 = vmatpush.msra.mxu0 %v957
      %2117 = vmatpush.msra.mxu0 %v951
      %2118 = vmatpush.msra.mxu0 %v945
      %2119 = vmatpush.msra.mxu0 %v939
      %2120 = vmatmul.f32.gmra.mxu0 %v2043
      %v2121 = vpop.f32.mrf.mxu0
      %v2122 = vadd.f32 %v2102, %v2121
      %2123 = vdwg.mxu0
      %2124 = vmatpush.msra.mxu0 %v934
      %2125 = vmatpush.msra.mxu0 %v928
      %2126 = vmatpush.msra.mxu0 %v922
      %2127 = vmatpush.msra.mxu0 %v916
      %2128 = vmatpush.msra.mxu0 %v910
      %2129 = vmatpush.msra.mxu0 %v904
      %2130 = vmatpush.msra.mxu0 %v898
      %2131 = vmatpush.msra.mxu0 %v892
      %2132 = vmatpush.msra.mxu0 %v886
      %2133 = vmatpush.msra.mxu0 %v880
      %2134 = vmatpush.msra.mxu0 %v874
      %2135 = vmatpush.msra.mxu0 %v868
      %2136 = vmatpush.msra.mxu0 %v862
      %2137 = vmatpush.msra.mxu0 %v856
      %2138 = vmatpush.msra.mxu0 %v850
      %2139 = vmatpush.msra.mxu0 %v844
      %2140 = vmatmul.f32.gmra.mxu0 %v2042
      %v2141 = vpop.f32.mrf.mxu0
      %v2142 = vadd.f32 %v1038, %v2141
      %2143 = vdwg.mxu0
      %2144 = vmatpush.msra.mxu0 %v1030
      %2145 = vmatpush.msra.mxu0 %v1024
      %2146 = vmatpush.msra.mxu0 %v1018
      %2147 = vmatpush.msra.mxu0 %v1012
      %2148 = vmatpush.msra.mxu0 %v1006
      %2149 = vmatpush.msra.mxu0 %v1000
      %2150 = vmatpush.msra.mxu0 %v994
      %2151 = vmatpush.msra.mxu0 %v988
      %2152 = vmatpush.msra.mxu0 %v982
      %2153 = vmatpush.msra.mxu0 %v976
      %2154 = vmatpush.msra.mxu0 %v970
      %2155 = vmatpush.msra.mxu0 %v964
      %2156 = vmatpush.msra.mxu0 %v958
      %2157 = vmatpush.msra.mxu0 %v952
      %2158 = vmatpush.msra.mxu0 %v946
      %2159 = vmatpush.msra.mxu0 %v940
      %2160 = vmatmul.f32.gmra.mxu0 %v2043
      %v2161 = vpop.f32.mrf.mxu0
      %v2162 = vadd.f32 %v2142, %v2161
      %2163 = vdwg.mxu0
      %2164 = vmatpush.msra.mxu0 %v935
      %2165 = vmatpush.msra.mxu0 %v929
      %2166 = vmatpush.msra.mxu0 %v923
      %2167 = vmatpush.msra.mxu0 %v917
      %2168 = vmatpush.msra.mxu0 %v911
      %2169 = vmatpush.msra.mxu0 %v905
      %2170 = vmatpush.msra.mxu0 %v899
      %2171 = vmatpush.msra.mxu0 %v893
      %2172 = vmatpush.msra.mxu0 %v887
      %2173 = vmatpush.msra.mxu0 %v881
      %2174 = vmatpush.msra.mxu0 %v875
      %2175 = vmatpush.msra.mxu0 %v869
      %2176 = vmatpush.msra.mxu0 %v863
      %2177 = vmatpush.msra.mxu0 %v857
      %2178 = vmatpush.msra.mxu0 %v851
      %2179 = vmatpush.msra.mxu0 %v845
      %2180 = vmatmul.f32.gmra.mxu0 %v2042
      %v2181 = vpop.f32.mrf.mxu0
      %v2182 = vadd.f32 %v1039, %v2181
      %2183 = vdwg.mxu0
      %2184 = vmatpush.msra.mxu0 %v1031
      %2185 = vmatpush.msra.mxu0 %v1025
      %2186 = vmatpush.msra.mxu0 %v1019
      %2187 = vmatpush.msra.mxu0 %v1013
      %2188 = vmatpush.msra.mxu0 %v1007
      %2189 = vmatpush.msra.mxu0 %v1001
      %2190 = vmatpush.msra.mxu0 %v995
      %2191 = vmatpush.msra.mxu0 %v989
      %2192 = vmatpush.msra.mxu0 %v983
      %2193 = vmatpush.msra.mxu0 %v977
      %2194 = vmatpush.msra.mxu0 %v971
      %2195 = vmatpush.msra.mxu0 %v965
      %2196 = vmatpush.msra.mxu0 %v959
      %2197 = vmatpush.msra.mxu0 %v953
      %2198 = vmatpush.msra.mxu0 %v947
      %2199 = vmatpush.msra.mxu0 %v941
      %2200 = vmatmul.f32.gmra.mxu0 %v2043
      %v2201 = vpop.f32.mrf.mxu0
      %v2202 = vadd.f32 %v2182, %v2201
      %2203 = vdwg.mxu0
      %2204 = vmatpush.msra.mxu0 %v936
      %2205 = vmatpush.msra.mxu0 %v930
      %2206 = vmatpush.msra.mxu0 %v924
      %2207 = vmatpush.msra.mxu0 %v918
      %2208 = vmatpush.msra.mxu0 %v912
      %2209 = vmatpush.msra.mxu0 %v906
      %2210 = vmatpush.msra.mxu0 %v900
      %2211 = vmatpush.msra.mxu0 %v894
      %2212 = vmatpush.msra.mxu0 %v888
      %2213 = vmatpush.msra.mxu0 %v882
      %2214 = vmatpush.msra.mxu0 %v876
      %2215 = vmatpush.msra.mxu0 %v870
      %2216 = vmatpush.msra.mxu0 %v864
      %2217 = vmatpush.msra.mxu0 %v858
      %2218 = vmatpush.msra.mxu0 %v852
      %2219 = vmatpush.msra.mxu0 %v846
      %2220 = vmatmul.f32.gmra.mxu0 %v2042
      %v2221 = vpop.f32.mrf.mxu0
      %v2222 = vadd.f32 %v1040, %v2221
      %2223 = vdwg.mxu0
      %2224 = vmatpush.msra.mxu0 %v1032
      %2225 = vmatpush.msra.mxu0 %v1026
      %2226 = vmatpush.msra.mxu0 %v1020
      %2227 = vmatpush.msra.mxu0 %v1014
      %2228 = vmatpush.msra.mxu0 %v1008
      %2229 = vmatpush.msra.mxu0 %v1002
      %2230 = vmatpush.msra.mxu0 %v996
      %2231 = vmatpush.msra.mxu0 %v990
      %2232 = vmatpush.msra.mxu0 %v984
      %2233 = vmatpush.msra.mxu0 %v978
      %2234 = vmatpush.msra.mxu0 %v972
      %2235 = vmatpush.msra.mxu0 %v966
      %2236 = vmatpush.msra.mxu0 %v960
      %2237 = vmatpush.msra.mxu0 %v954
      %2238 = vmatpush.msra.mxu0 %v948
      %2239 = vmatpush.msra.mxu0 %v942
      %2240 = vmatmul.f32.gmra.mxu0 %v2043
      %v2241 = vpop.f32.mrf.mxu0
      %v2242 = vadd.f32 %v2222, %v2241
      %2243 = vdwg.mxu0
      %2244 = vmatpush.msra.mxu0 %v937
      %2245 = vmatpush.msra.mxu0 %v931
      %2246 = vmatpush.msra.mxu0 %v925
      %2247 = vmatpush.msra.mxu0 %v919
      %2248 = vmatpush.msra.mxu0 %v913
      %2249 = vmatpush.msra.mxu0 %v907
      %2250 = vmatpush.msra.mxu0 %v901
      %2251 = vmatpush.msra.mxu0 %v895
      %2252 = vmatpush.msra.mxu0 %v889
      %2253 = vmatpush.msra.mxu0 %v883
      %2254 = vmatpush.msra.mxu0 %v877
      %2255 = vmatpush.msra.mxu0 %v871
      %2256 = vmatpush.msra.mxu0 %v865
      %2257 = vmatpush.msra.mxu0 %v859
      %2258 = vmatpush.msra.mxu0 %v853
      %2259 = vmatpush.msra.mxu0 %v847
      %2260 = vmatmul.f32.gmra.mxu0 %v2042
      %v2261 = vpop.f32.mrf.mxu0
      %v2262 = vadd.f32 %v1041, %v2261
      %2263 = vdwg.mxu0
      %2264 = vmatpush.msra.mxu0 %v1033
      %2265 = vmatpush.msra.mxu0 %v1027
      %2266 = vmatpush.msra.mxu0 %v1021
      %2267 = vmatpush.msra.mxu0 %v1015
      %2268 = vmatpush.msra.mxu0 %v1009
      %2269 = vmatpush.msra.mxu0 %v1003
      %2270 = vmatpush.msra.mxu0 %v997
      %2271 = vmatpush.msra.mxu0 %v991
      %2272 = vmatpush.msra.mxu0 %v985
      %2273 = vmatpush.msra.mxu0 %v979
      %2274 = vmatpush.msra.mxu0 %v973
      %2275 = vmatpush.msra.mxu0 %v967
      %2276 = vmatpush.msra.mxu0 %v961
      %2277 = vmatpush.msra.mxu0 %v955
      %2278 = vmatpush.msra.mxu0 %v949
      %2279 = vmatpush.msra.mxu0 %v943
      %2280 = vmatmul.f32.gmra.mxu0 %v2043
      %v2281 = vpop.f32.mrf.mxu0
      %v2282 = vadd.f32 %v2262, %v2281
      %2283 = vdwg.mxu0
      %v2284 = vadd.f32 %v626, %v2082
      %v2285 = vadd.f32 %v667, %v2122
      %v2286 = vxor.u32 %v2284, 2147483648
      %v2287 = vxor.u32 %v2285, 2147483648
      %v2288 = vmul.f32 %v2286, 1.442695
      %v2289 = vpow.pop %v2288
      %v2290 = vmul.f32 %v2287, 1.442695
      %v2291 = vpow.pop %v2290
      %v2292 = vadd.f32 %v2289, 1.0
      %v2293 = vadd.f32 %v2291, 1.0
      %v2294 = vrcp.pop %v2292
      %v2295 = vmul.f32 %v2292, %v2294
      %v2296 = vsub.f32 1.0, %v2295
      %v2297 = vmul.f32 %v2294, %v2296
      %v2298 = vadd.f32 %v2294, %v2297
      %vm2299 = vweird.f32 %v2292
      %vm2300 = vweird.f32 %v2294
      %vm2301 = vmor %vm2299, %vm2300
      %v2302 = vsel %vm2301, %v2294, %v2298
      %v2303 = vand.u32 2147483647, %v2292
      %vm2304 = vcmp.eq.f32.partialorder %v2303, 8.507059e+37
      %v2305 = vand.u32 %v2292, 2147483648
      %v2306 = vor.u32 1.1754944e-38, %v2305
      %v2307 = vsel %vm2304, %v2306, %v2302
      %v2308 = vmul.f32 1.0, %v2307
      %v2309 = vrcp.pop %v2293
      %v2310 = vmul.f32 %v2293, %v2309
      %v2311 = vsub.f32 1.0, %v2310
      %v2312 = vmul.f32 %v2309, %v2311
      %v2313 = vadd.f32 %v2309, %v2312
      %vm2314 = vweird.f32 %v2293
      %vm2315 = vweird.f32 %v2309
      %vm2316 = vmor %vm2314, %vm2315
      %v2317 = vsel %vm2316, %v2309, %v2313
      %v2318 = vand.u32 2147483647, %v2293
      %vm2319 = vcmp.eq.f32.partialorder %v2318, 8.507059e+37
      %v2320 = vand.u32 %v2293, 2147483648
      %v2321 = vor.u32 1.1754944e-38, %v2320
      %v2322 = vsel %vm2319, %v2321, %v2317
      %v2323 = vmul.f32 1.0, %v2322
      %v2324 = vadd.f32 %v708, %v2162
      %v2325 = vadd.f32 %v749, %v2202
      %v2326 = vxor.u32 %v2324, 2147483648
      %v2327 = vxor.u32 %v2325, 2147483648
      %v2328 = vmul.f32 %v2326, 1.442695
      %v2329 = vpow.pop %v2328
      %v2330 = vmul.f32 %v2327, 1.442695
      %v2331 = vpow.pop %v2330
      %v2332 = vadd.f32 %v2329, 1.0
      %v2333 = vadd.f32 %v2331, 1.0
      %v2334 = vrcp.pop %v2332
      %v2335 = vmul.f32 %v2332, %v2334
      %v2336 = vsub.f32 1.0, %v2335
      %v2337 = vmul.f32 %v2334, %v2336
      %v2338 = vadd.f32 %v2334, %v2337
      %vm2339 = vweird.f32 %v2332
      %vm2340 = vweird.f32 %v2334
      %vm2341 = vmor %vm2339, %vm2340
      %v2342 = vsel %vm2341, %v2334, %v2338
      %v2343 = vand.u32 2147483647, %v2332
      %vm2344 = vcmp.eq.f32.partialorder %v2343, 8.507059e+37
      %v2345 = vand.u32 %v2332, 2147483648
      %v2346 = vor.u32 1.1754944e-38, %v2345
      %v2347 = vsel %vm2344, %v2346, %v2342
      %v2348 = vmul.f32 1.0, %v2347
      %v2349 = vrcp.pop %v2333
      %v2350 = vmul.f32 %v2333, %v2349
      %v2351 = vsub.f32 1.0, %v2350
      %v2352 = vmul.f32 %v2349, %v2351
      %v2353 = vadd.f32 %v2349, %v2352
      %vm2354 = vweird.f32 %v2333
      %vm2355 = vweird.f32 %v2349
      %vm2356 = vmor %vm2354, %vm2355
      %v2357 = vsel %vm2356, %v2349, %v2353
      %v2358 = vand.u32 2147483647, %v2333
      %vm2359 = vcmp.eq.f32.partialorder %v2358, 8.507059e+37
      %v2360 = vand.u32 %v2333, 2147483648
      %v2361 = vor.u32 1.1754944e-38, %v2360
      %v2362 = vsel %vm2359, %v2361, %v2357
      %v2363 = vmul.f32 1.0, %v2362
      %v2364 = vmul.f32 %v2308, %v2242
      %v2365 = vmul.f32 %v2323, %v2282
      %v2366 = vadd.f32 %v790, %v2364
      %v2367 = vadd.f32 %v831, %v2365
      %v2368 = vtanh.pop %v2366
      %v2369 = vtanh.pop %v2367
      %v2370 = vsub.f32 %v2042, %v2368
      %v2371 = vsub.f32 %v2043, %v2369
      %v2372 = vmul.f32 %v2348, %v2370
      %v2373 = vmul.f32 %v2363, %v2371
      %v2374 = vadd.f32 %v2368, %v2372
      %v2375 = vadd.f32 %v2369, %v2373
      %2376 = vmatpush.msra.mxu0 %v932
      %2377 = vmatpush.msra.mxu0 %v926
      %2378 = vmatpush.msra.mxu0 %v920
      %2379 = vmatpush.msra.mxu0 %v914
      %2380 = vmatpush.msra.mxu0 %v908
      %2381 = vmatpush.msra.mxu0 %v902
      %2382 = vmatpush.msra.mxu0 %v896
      %2383 = vmatpush.msra.mxu0 %v890
      %2384 = vmatpush.msra.mxu0 %v884
      %2385 = vmatpush.msra.mxu0 %v878
      %2386 = vmatpush.msra.mxu0 %v872
      %2387 = vmatpush.msra.mxu0 %v866
      %2388 = vmatpush.msra.mxu0 %v860
      %2389 = vmatpush.msra.mxu0 %v854
      %2390 = vmatpush.msra.mxu0 %v848
      %2391 = vmatpush.msra.mxu0 %v842
      %2392 = vmatmul.f32.gmra.mxu0 %v2374
      %v2393 = vpop.f32.mrf.mxu0
      %v2394 = vadd.f32 %v1036, %v2393
      %2395 = vdwg.mxu0
      %2396 = vmatpush.msra.mxu0 %v1028
      %2397 = vmatpush.msra.mxu0 %v1022
      %2398 = vmatpush.msra.mxu0 %v1016
      %2399 = vmatpush.msra.mxu0 %v1010
      %2400 = vmatpush.msra.mxu0 %v1004
      %2401 = vmatpush.msra.mxu0 %v998
      %2402 = vmatpush.msra.mxu0 %v992
      %2403 = vmatpush.msra.mxu0 %v986
      %2404 = vmatpush.msra.mxu0 %v980
      %2405 = vmatpush.msra.mxu0 %v974
      %2406 = vmatpush.msra.mxu0 %v968
      %2407 = vmatpush.msra.mxu0 %v962
      %2408 = vmatpush.msra.mxu0 %v956
      %2409 = vmatpush.msra.mxu0 %v950
      %2410 = vmatpush.msra.mxu0 %v944
      %2411 = vmatpush.msra.mxu0 %v938
      %2412 = vmatmul.f32.gmra.mxu0 %v2375
      %v2413 = vpop.f32.mrf.mxu0
      %v2414 = vadd.f32 %v2394, %v2413
      %2415 = vdwg.mxu0
      %2416 = vmatpush.msra.mxu0 %v933
      %2417 = vmatpush.msra.mxu0 %v927
      %2418 = vmatpush.msra.mxu0 %v921
      %2419 = vmatpush.msra.mxu0 %v915
      %2420 = vmatpush.msra.mxu0 %v909
      %2421 = vmatpush.msra.mxu0 %v903
      %2422 = vmatpush.msra.mxu0 %v897
      %2423 = vmatpush.msra.mxu0 %v891
      %2424 = vmatpush.msra.mxu0 %v885
      %2425 = vmatpush.msra.mxu0 %v879
      %2426 = vmatpush.msra.mxu0 %v873
      %2427 = vmatpush.msra.mxu0 %v867
      %2428 = vmatpush.msra.mxu0 %v861
      %2429 = vmatpush.msra.mxu0 %v855
      %2430 = vmatpush.msra.mxu0 %v849
      %2431 = vmatpush.msra.mxu0 %v843
      %2432 = vmatmul.f32.gmra.mxu0 %v2374
      %v2433 = vpop.f32.mrf.mxu0
      %v2434 = vadd.f32 %v1037, %v2433
      %2435 = vdwg.mxu0
      %2436 = vmatpush.msra.mxu0 %v1029
      %2437 = vmatpush.msra.mxu0 %v1023
      %2438 = vmatpush.msra.mxu0 %v1017
      %2439 = vmatpush.msra.mxu0 %v1011
      %2440 = vmatpush.msra.mxu0 %v1005
      %2441 = vmatpush.msra.mxu0 %v999
      %2442 = vmatpush.msra.mxu0 %v993
      %2443 = vmatpush.msra.mxu0 %v987
      %2444 = vmatpush.msra.mxu0 %v981
      %2445 = vmatpush.msra.mxu0 %v975
      %2446 = vmatpush.msra.mxu0 %v969
      %2447 = vmatpush.msra.mxu0 %v963
      %2448 = vmatpush.msra.mxu0 %v957
      %2449 = vmatpush.msra.mxu0 %v951
      %2450 = vmatpush.msra.mxu0 %v945
      %2451 = vmatpush.msra.mxu0 %v939
      %2452 = vmatmul.f32.gmra.mxu0 %v2375
      %v2453 = vpop.f32.mrf.mxu0
      %v2454 = vadd.f32 %v2434, %v2453
      %2455 = vdwg.mxu0
      %2456 = vmatpush.msra.mxu0 %v934
      %2457 = vmatpush.msra.mxu0 %v928
      %2458 = vmatpush.msra.mxu0 %v922
      %2459 = vmatpush.msra.mxu0 %v916
      %2460 = vmatpush.msra.mxu0 %v910
      %2461 = vmatpush.msra.mxu0 %v904
      %2462 = vmatpush.msra.mxu0 %v898
      %2463 = vmatpush.msra.mxu0 %v892
      %2464 = vmatpush.msra.mxu0 %v886
      %2465 = vmatpush.msra.mxu0 %v880
      %2466 = vmatpush.msra.mxu0 %v874
      %2467 = vmatpush.msra.mxu0 %v868
      %2468 = vmatpush.msra.mxu0 %v862
      %2469 = vmatpush.msra.mxu0 %v856
      %2470 = vmatpush.msra.mxu0 %v850
      %2471 = vmatpush.msra.mxu0 %v844
      %2472 = vmatmul.f32.gmra.mxu0 %v2374
      %v2473 = vpop.f32.mrf.mxu0
      %v2474 = vadd.f32 %v1038, %v2473
      %2475 = vdwg.mxu0
      %2476 = vmatpush.msra.mxu0 %v1030
      %2477 = vmatpush.msra.mxu0 %v1024
      %2478 = vmatpush.msra.mxu0 %v1018
      %2479 = vmatpush.msra.mxu0 %v1012
      %2480 = vmatpush.msra.mxu0 %v1006
      %2481 = vmatpush.msra.mxu0 %v1000
      %2482 = vmatpush.msra.mxu0 %v994
      %2483 = vmatpush.msra.mxu0 %v988
      %2484 = vmatpush.msra.mxu0 %v982
      %2485 = vmatpush.msra.mxu0 %v976
      %2486 = vmatpush.msra.mxu0 %v970
      %2487 = vmatpush.msra.mxu0 %v964
      %2488 = vmatpush.msra.mxu0 %v958
      %2489 = vmatpush.msra.mxu0 %v952
      %2490 = vmatpush.msra.mxu0 %v946
      %2491 = vmatpush.msra.mxu0 %v940
      %2492 = vmatmul.f32.gmra.mxu0 %v2375
      %v2493 = vpop.f32.mrf.mxu0
      %v2494 = vadd.f32 %v2474, %v2493
      %2495 = vdwg.mxu0
      %2496 = vmatpush.msra.mxu0 %v935
      %2497 = vmatpush.msra.mxu0 %v929
      %2498 = vmatpush.msra.mxu0 %v923
      %2499 = vmatpush.msra.mxu0 %v917
      %2500 = vmatpush.msra.mxu0 %v911
      %2501 = vmatpush.msra.mxu0 %v905
      %2502 = vmatpush.msra.mxu0 %v899
      %2503 = vmatpush.msra.mxu0 %v893
      %2504 = vmatpush.msra.mxu0 %v887
      %2505 = vmatpush.msra.mxu0 %v881
      %2506 = vmatpush.msra.mxu0 %v875
      %2507 = vmatpush.msra.mxu0 %v869
      %2508 = vmatpush.msra.mxu0 %v863
      %2509 = vmatpush.msra.mxu0 %v857
      %2510 = vmatpush.msra.mxu0 %v851
      %2511 = vmatpush.msra.mxu0 %v845
      %2512 = vmatmul.f32.gmra.mxu0 %v2374
      %v2513 = vpop.f32.mrf.mxu0
      %v2514 = vadd.f32 %v1039, %v2513
      %2515 = vdwg.mxu0
      %2516 = vmatpush.msra.mxu0 %v1031
      %2517 = vmatpush.msra.mxu0 %v1025
      %2518 = vmatpush.msra.mxu0 %v1019
      %2519 = vmatpush.msra.mxu0 %v1013
      %2520 = vmatpush.msra.mxu0 %v1007
      %2521 = vmatpush.msra.mxu0 %v1001
      %2522 = vmatpush.msra.mxu0 %v995
      %2523 = vmatpush.msra.mxu0 %v989
      %2524 = vmatpush.msra.mxu0 %v983
      %2525 = vmatpush.msra.mxu0 %v977
      %2526 = vmatpush.msra.mxu0 %v971
      %2527 = vmatpush.msra.mxu0 %v965
      %2528 = vmatpush.msra.mxu0 %v959
      %2529 = vmatpush.msra.mxu0 %v953
      %2530 = vmatpush.msra.mxu0 %v947
      %2531 = vmatpush.msra.mxu0 %v941
      %2532 = vmatmul.f32.gmra.mxu0 %v2375
      %v2533 = vpop.f32.mrf.mxu0
      %v2534 = vadd.f32 %v2514, %v2533
      %2535 = vdwg.mxu0
      %2536 = vmatpush.msra.mxu0 %v936
      %2537 = vmatpush.msra.mxu0 %v930
      %2538 = vmatpush.msra.mxu0 %v924
      %2539 = vmatpush.msra.mxu0 %v918
      %2540 = vmatpush.msra.mxu0 %v912
      %2541 = vmatpush.msra.mxu0 %v906
      %2542 = vmatpush.msra.mxu0 %v900
      %2543 = vmatpush.msra.mxu0 %v894
      %2544 = vmatpush.msra.mxu0 %v888
      %2545 = vmatpush.msra.mxu0 %v882
      %2546 = vmatpush.msra.mxu0 %v876
      %2547 = vmatpush.msra.mxu0 %v870
      %2548 = vmatpush.msra.mxu0 %v864
      %2549 = vmatpush.msra.mxu0 %v858
      %2550 = vmatpush.msra.mxu0 %v852
      %2551 = vmatpush.msra.mxu0 %v846
      %2552 = vmatmul.f32.gmra.mxu0 %v2374
      %v2553 = vpop.f32.mrf.mxu0
      %v2554 = vadd.f32 %v1040, %v2553
      %2555 = vdwg.mxu0
      %2556 = vmatpush.msra.mxu0 %v1032
      %2557 = vmatpush.msra.mxu0 %v1026
      %2558 = vmatpush.msra.mxu0 %v1020
      %2559 = vmatpush.msra.mxu0 %v1014
      %2560 = vmatpush.msra.mxu0 %v1008
      %2561 = vmatpush.msra.mxu0 %v1002
      %2562 = vmatpush.msra.mxu0 %v996
      %2563 = vmatpush.msra.mxu0 %v990
      %2564 = vmatpush.msra.mxu0 %v984
      %2565 = vmatpush.msra.mxu0 %v978
      %2566 = vmatpush.msra.mxu0 %v972
      %2567 = vmatpush.msra.mxu0 %v966
      %2568 = vmatpush.msra.mxu0 %v960
      %2569 = vmatpush.msra.mxu0 %v954
      %2570 = vmatpush.msra.mxu0 %v948
      %2571 = vmatpush.msra.mxu0 %v942
      %2572 = vmatmul.f32.gmra.mxu0 %v2375
      %v2573 = vpop.f32.mrf.mxu0
      %v2574 = vadd.f32 %v2554, %v2573
      %2575 = vdwg.mxu0
      %2576 = vmatpush.msra.mxu0 %v937
      %2577 = vmatpush.msra.mxu0 %v931
      %2578 = vmatpush.msra.mxu0 %v925
      %2579 = vmatpush.msra.mxu0 %v919
      %2580 = vmatpush.msra.mxu0 %v913
      %2581 = vmatpush.msra.mxu0 %v907
      %2582 = vmatpush.msra.mxu0 %v901
      %2583 = vmatpush.msra.mxu0 %v895
      %2584 = vmatpush.msra.mxu0 %v889
      %2585 = vmatpush.msra.mxu0 %v883
      %2586 = vmatpush.msra.mxu0 %v877
      %2587 = vmatpush.msra.mxu0 %v871
      %2588 = vmatpush.msra.mxu0 %v865
      %2589 = vmatpush.msra.mxu0 %v859
      %2590 = vmatpush.msra.mxu0 %v853
      %2591 = vmatpush.msra.mxu0 %v847
      %2592 = vmatmul.f32.gmra.mxu0 %v2374
      %v2593 = vpop.f32.mrf.mxu0
      %v2594 = vadd.f32 %v1041, %v2593
      %2595 = vdwg.mxu0
      %2596 = vmatpush.msra.mxu0 %v1033
      %2597 = vmatpush.msra.mxu0 %v1027
      %2598 = vmatpush.msra.mxu0 %v1021
      %2599 = vmatpush.msra.mxu0 %v1015
      %2600 = vmatpush.msra.mxu0 %v1009
      %2601 = vmatpush.msra.mxu0 %v1003
      %2602 = vmatpush.msra.mxu0 %v997
      %2603 = vmatpush.msra.mxu0 %v991
      %2604 = vmatpush.msra.mxu0 %v985
      %2605 = vmatpush.msra.mxu0 %v979
      %2606 = vmatpush.msra.mxu0 %v973
      %2607 = vmatpush.msra.mxu0 %v967
      %2608 = vmatpush.msra.mxu0 %v961
      %2609 = vmatpush.msra.mxu0 %v955
      %2610 = vmatpush.msra.mxu0 %v949
      %2611 = vmatpush.msra.mxu0 %v943
      %2612 = vmatmul.f32.gmra.mxu0 %v2375
      %v2613 = vpop.f32.mrf.mxu0
      %v2614 = vadd.f32 %v2594, %v2613
      %2615 = vdwg.mxu0
      %v2616 = vadd.f32 %v623, %v2414
      %v2617 = vadd.f32 %v664, %v2454
      %v2618 = vxor.u32 %v2616, 2147483648
      %v2619 = vxor.u32 %v2617, 2147483648
      %v2620 = vmul.f32 %v2618, 1.442695
      %v2621 = vpow.pop %v2620
      %v2622 = vmul.f32 %v2619, 1.442695
      %v2623 = vpow.pop %v2622
      %v2624 = vadd.f32 %v2621, 1.0
      %v2625 = vadd.f32 %v2623, 1.0
      %v2626 = vrcp.pop %v2624
      %v2627 = vmul.f32 %v2624, %v2626
      %v2628 = vsub.f32 1.0, %v2627
      %v2629 = vmul.f32 %v2626, %v2628
      %v2630 = vadd.f32 %v2626, %v2629
      %vm2631 = vweird.f32 %v2624
      %vm2632 = vweird.f32 %v2626
      %vm2633 = vmor %vm2631, %vm2632
      %v2634 = vsel %vm2633, %v2626, %v2630
      %v2635 = vand.u32 2147483647, %v2624
      %vm2636 = vcmp.eq.f32.partialorder %v2635, 8.507059e+37
      %v2637 = vand.u32 %v2624, 2147483648
      %v2638 = vor.u32 1.1754944e-38, %v2637
      %v2639 = vsel %vm2636, %v2638, %v2634
      %v2640 = vmul.f32 1.0, %v2639
      %v2641 = vrcp.pop %v2625
      %v2642 = vmul.f32 %v2625, %v2641
      %v2643 = vsub.f32 1.0, %v2642
      %v2644 = vmul.f32 %v2641, %v2643
      %v2645 = vadd.f32 %v2641, %v2644
      %vm2646 = vweird.f32 %v2625
      %vm2647 = vweird.f32 %v2641
      %vm2648 = vmor %vm2646, %vm2647
      %v2649 = vsel %vm2648, %v2641, %v2645
      %v2650 = vand.u32 2147483647, %v2625
      %vm2651 = vcmp.eq.f32.partialorder %v2650, 8.507059e+37
      %v2652 = vand.u32 %v2625, 2147483648
      %v2653 = vor.u32 1.1754944e-38, %v2652
      %v2654 = vsel %vm2651, %v2653, %v2649
      %v2655 = vmul.f32 1.0, %v2654
      %v2656 = vadd.f32 %v705, %v2494
      %v2657 = vadd.f32 %v746, %v2534
      %v2658 = vxor.u32 %v2656, 2147483648
      %v2659 = vxor.u32 %v2657, 2147483648
      %v2660 = vmul.f32 %v2658, 1.442695
      %v2661 = vpow.pop %v2660
      %v2662 = vmul.f32 %v2659, 1.442695
      %v2663 = vpow.pop %v2662
      %v2664 = vadd.f32 %v2661, 1.0
      %v2665 = vadd.f32 %v2663, 1.0
      %v2666 = vrcp.pop %v2664
      %v2667 = vmul.f32 %v2664, %v2666
      %v2668 = vsub.f32 1.0, %v2667
      %v2669 = vmul.f32 %v2666, %v2668
      %v2670 = vadd.f32 %v2666, %v2669
      %vm2671 = vweird.f32 %v2664
      %vm2672 = vweird.f32 %v2666
      %vm2673 = vmor %vm2671, %vm2672
      %v2674 = vsel %vm2673, %v2666, %v2670
      %v2675 = vand.u32 2147483647, %v2664
      %vm2676 = vcmp.eq.f32.partialorder %v2675, 8.507059e+37
      %v2677 = vand.u32 %v2664, 2147483648
      %v2678 = vor.u32 1.1754944e-38, %v2677
      %v2679 = vsel %vm2676, %v2678, %v2674
      %v2680 = vmul.f32 1.0, %v2679
      %v2681 = vrcp.pop %v2665
      %v2682 = vmul.f32 %v2665, %v2681
      %v2683 = vsub.f32 1.0, %v2682
      %v2684 = vmul.f32 %v2681, %v2683
      %v2685 = vadd.f32 %v2681, %v2684
      %vm2686 = vweird.f32 %v2665
      %vm2687 = vweird.f32 %v2681
      %vm2688 = vmor %vm2686, %vm2687
      %v2689 = vsel %vm2688, %v2681, %v2685
      %v2690 = vand.u32 2147483647, %v2665
      %vm2691 = vcmp.eq.f32.partialorder %v2690, 8.507059e+37
      %v2692 = vand.u32 %v2665, 2147483648
      %v2693 = vor.u32 1.1754944e-38, %v2692
      %v2694 = vsel %vm2691, %v2693, %v2689
      %v2695 = vmul.f32 1.0, %v2694
      %v2696 = vmul.f32 %v2640, %v2574
      %v2697 = vmul.f32 %v2655, %v2614
      %v2698 = vadd.f32 %v787, %v2696
      %v2699 = vadd.f32 %v828, %v2697
      %v2700 = vtanh.pop %v2698
      %v2701 = vtanh.pop %v2699
      %v2702 = vsub.f32 %v2374, %v2700
      %v2703 = vsub.f32 %v2375, %v2701
      %v2704 = vmul.f32 %v2680, %v2702
      %v2705 = vmul.f32 %v2695, %v2703
      %v2706 = vadd.f32 %v2700, %v2704
      %v2707 = vadd.f32 %v2701, %v2705
      %2708 = vmatpush.msra.mxu0 %v932
      %2709 = vmatpush.msra.mxu0 %v926
      %2710 = vmatpush.msra.mxu0 %v920
      %2711 = vmatpush.msra.mxu0 %v914
      %2712 = vmatpush.msra.mxu0 %v908
      %2713 = vmatpush.msra.mxu0 %v902
      %2714 = vmatpush.msra.mxu0 %v896
      %2715 = vmatpush.msra.mxu0 %v890
      %2716 = vmatpush.msra.mxu0 %v884
      %2717 = vmatpush.msra.mxu0 %v878
      %2718 = vmatpush.msra.mxu0 %v872
      %2719 = vmatpush.msra.mxu0 %v866
      %2720 = vmatpush.msra.mxu0 %v860
      %2721 = vmatpush.msra.mxu0 %v854
      %2722 = vmatpush.msra.mxu0 %v848
      %2723 = vmatpush.msra.mxu0 %v842
      %2724 = vmatmul.f32.gmra.mxu0 %v2706
      %v2725 = vpop.f32.mrf.mxu0
      %v2726 = vadd.f32 %v1036, %v2725
      %2727 = vdwg.mxu0
      %2728 = vmatpush.msra.mxu0 %v1028
      %2729 = vmatpush.msra.mxu0 %v1022
      %2730 = vmatpush.msra.mxu0 %v1016
      %2731 = vmatpush.msra.mxu0 %v1010
      %2732 = vmatpush.msra.mxu0 %v1004
      %2733 = vmatpush.msra.mxu0 %v998
      %2734 = vmatpush.msra.mxu0 %v992
      %2735 = vmatpush.msra.mxu0 %v986
      %2736 = vmatpush.msra.mxu0 %v980
      %2737 = vmatpush.msra.mxu0 %v974
      %2738 = vmatpush.msra.mxu0 %v968
      %2739 = vmatpush.msra.mxu0 %v962
      %2740 = vmatpush.msra.mxu0 %v956
      %2741 = vmatpush.msra.mxu0 %v950
      %2742 = vmatpush.msra.mxu0 %v944
      %2743 = vmatpush.msra.mxu0 %v938
      %2744 = vmatmul.f32.gmra.mxu0 %v2707
      %v2745 = vpop.f32.mrf.mxu0
      %v2746 = vadd.f32 %v2726, %v2745
      %2747 = vdwg.mxu0
      %2748 = vmatpush.msra.mxu0 %v933
      %2749 = vmatpush.msra.mxu0 %v927
      %2750 = vmatpush.msra.mxu0 %v921
      %2751 = vmatpush.msra.mxu0 %v915
      %2752 = vmatpush.msra.mxu0 %v909
      %2753 = vmatpush.msra.mxu0 %v903
      %2754 = vmatpush.msra.mxu0 %v897
      %2755 = vmatpush.msra.mxu0 %v891
      %2756 = vmatpush.msra.mxu0 %v885
      %2757 = vmatpush.msra.mxu0 %v879
      %2758 = vmatpush.msra.mxu0 %v873
      %2759 = vmatpush.msra.mxu0 %v867
      %2760 = vmatpush.msra.mxu0 %v861
      %2761 = vmatpush.msra.mxu0 %v855
      %2762 = vmatpush.msra.mxu0 %v849
      %2763 = vmatpush.msra.mxu0 %v843
      %2764 = vmatmul.f32.gmra.mxu0 %v2706
      %v2765 = vpop.f32.mrf.mxu0
      %v2766 = vadd.f32 %v1037, %v2765
      %2767 = vdwg.mxu0
      %2768 = vmatpush.msra.mxu0 %v1029
      %2769 = vmatpush.msra.mxu0 %v1023
      %2770 = vmatpush.msra.mxu0 %v1017
      %2771 = vmatpush.msra.mxu0 %v1011
      %2772 = vmatpush.msra.mxu0 %v1005
      %2773 = vmatpush.msra.mxu0 %v999
      %2774 = vmatpush.msra.mxu0 %v993
      %2775 = vmatpush.msra.mxu0 %v987
      %2776 = vmatpush.msra.mxu0 %v981
      %2777 = vmatpush.msra.mxu0 %v975
      %2778 = vmatpush.msra.mxu0 %v969
      %2779 = vmatpush.msra.mxu0 %v963
      %2780 = vmatpush.msra.mxu0 %v957
      %2781 = vmatpush.msra.mxu0 %v951
      %2782 = vmatpush.msra.mxu0 %v945
      %2783 = vmatpush.msra.mxu0 %v939
      %2784 = vmatmul.f32.gmra.mxu0 %v2707
      %v2785 = vpop.f32.mrf.mxu0
      %v2786 = vadd.f32 %v2766, %v2785
      %2787 = vdwg.mxu0
      %2788 = vmatpush.msra.mxu0 %v934
      %2789 = vmatpush.msra.mxu0 %v928
      %2790 = vmatpush.msra.mxu0 %v922
      %2791 = vmatpush.msra.mxu0 %v916
      %2792 = vmatpush.msra.mxu0 %v910
      %2793 = vmatpush.msra.mxu0 %v904
      %2794 = vmatpush.msra.mxu0 %v898
      %2795 = vmatpush.msra.mxu0 %v892
      %2796 = vmatpush.msra.mxu0 %v886
      %2797 = vmatpush.msra.mxu0 %v880
      %2798 = vmatpush.msra.mxu0 %v874
      %2799 = vmatpush.msra.mxu0 %v868
      %2800 = vmatpush.msra.mxu0 %v862
      %2801 = vmatpush.msra.mxu0 %v856
      %2802 = vmatpush.msra.mxu0 %v850
      %2803 = vmatpush.msra.mxu0 %v844
      %2804 = vmatmul.f32.gmra.mxu0 %v2706
      %v2805 = vpop.f32.mrf.mxu0
      %v2806 = vadd.f32 %v1038, %v2805
      %2807 = vdwg.mxu0
      %2808 = vmatpush.msra.mxu0 %v1030
      %2809 = vmatpush.msra.mxu0 %v1024
      %2810 = vmatpush.msra.mxu0 %v1018
      %2811 = vmatpush.msra.mxu0 %v1012
      %2812 = vmatpush.msra.mxu0 %v1006
      %2813 = vmatpush.msra.mxu0 %v1000
      %2814 = vmatpush.msra.mxu0 %v994
      %2815 = vmatpush.msra.mxu0 %v988
      %2816 = vmatpush.msra.mxu0 %v982
      %2817 = vmatpush.msra.mxu0 %v976
      %2818 = vmatpush.msra.mxu0 %v970
      %2819 = vmatpush.msra.mxu0 %v964
      %2820 = vmatpush.msra.mxu0 %v958
      %2821 = vmatpush.msra.mxu0 %v952
      %2822 = vmatpush.msra.mxu0 %v946
      %2823 = vmatpush.msra.mxu0 %v940
      %2824 = vmatmul.f32.gmra.mxu0 %v2707
      %v2825 = vpop.f32.mrf.mxu0
      %v2826 = vadd.f32 %v2806, %v2825
      %2827 = vdwg.mxu0
      %2828 = vmatpush.msra.mxu0 %v935
      %2829 = vmatpush.msra.mxu0 %v929
      %2830 = vmatpush.msra.mxu0 %v923
      %2831 = vmatpush.msra.mxu0 %v917
      %2832 = vmatpush.msra.mxu0 %v911
      %2833 = vmatpush.msra.mxu0 %v905
      %2834 = vmatpush.msra.mxu0 %v899
      %2835 = vmatpush.msra.mxu0 %v893
      %2836 = vmatpush.msra.mxu0 %v887
      %2837 = vmatpush.msra.mxu0 %v881
      %2838 = vmatpush.msra.mxu0 %v875
      %2839 = vmatpush.msra.mxu0 %v869
      %2840 = vmatpush.msra.mxu0 %v863
      %2841 = vmatpush.msra.mxu0 %v857
      %2842 = vmatpush.msra.mxu0 %v851
      %2843 = vmatpush.msra.mxu0 %v845
      %2844 = vmatmul.f32.gmra.mxu0 %v2706
      %v2845 = vpop.f32.mrf.mxu0
      %v2846 = vadd.f32 %v1039, %v2845
      %2847 = vdwg.mxu0
      %2848 = vmatpush.msra.mxu0 %v1031
      %2849 = vmatpush.msra.mxu0 %v1025
      %2850 = vmatpush.msra.mxu0 %v1019
      %2851 = vmatpush.msra.mxu0 %v1013
      %2852 = vmatpush.msra.mxu0 %v1007
      %2853 = vmatpush.msra.mxu0 %v1001
      %2854 = vmatpush.msra.mxu0 %v995
      %2855 = vmatpush.msra.mxu0 %v989
      %2856 = vmatpush.msra.mxu0 %v983
      %2857 = vmatpush.msra.mxu0 %v977
      %2858 = vmatpush.msra.mxu0 %v971
      %2859 = vmatpush.msra.mxu0 %v965
      %2860 = vmatpush.msra.mxu0 %v959
      %2861 = vmatpush.msra.mxu0 %v953
      %2862 = vmatpush.msra.mxu0 %v947
      %2863 = vmatpush.msra.mxu0 %v941
      %2864 = vmatmul.f32.gmra.mxu0 %v2707
      %v2865 = vpop.f32.mrf.mxu0
      %v2866 = vadd.f32 %v2846, %v2865
      %2867 = vdwg.mxu0
      %2868 = vmatpush.msra.mxu0 %v936
      %2869 = vmatpush.msra.mxu0 %v930
      %2870 = vmatpush.msra.mxu0 %v924
      %2871 = vmatpush.msra.mxu0 %v918
      %2872 = vmatpush.msra.mxu0 %v912
      %2873 = vmatpush.msra.mxu0 %v906
      %2874 = vmatpush.msra.mxu0 %v900
      %2875 = vmatpush.msra.mxu0 %v894
      %2876 = vmatpush.msra.mxu0 %v888
      %2877 = vmatpush.msra.mxu0 %v882
      %2878 = vmatpush.msra.mxu0 %v876
      %2879 = vmatpush.msra.mxu0 %v870
      %2880 = vmatpush.msra.mxu0 %v864
      %2881 = vmatpush.msra.mxu0 %v858
      %2882 = vmatpush.msra.mxu0 %v852
      %2883 = vmatpush.msra.mxu0 %v846
      %2884 = vmatmul.f32.gmra.mxu0 %v2706
      %v2885 = vpop.f32.mrf.mxu0
      %v2886 = vadd.f32 %v1040, %v2885
      %2887 = vdwg.mxu0
      %2888 = vmatpush.msra.mxu0 %v1032
      %2889 = vmatpush.msra.mxu0 %v1026
      %2890 = vmatpush.msra.mxu0 %v1020
      %2891 = vmatpush.msra.mxu0 %v1014
      %2892 = vmatpush.msra.mxu0 %v1008
      %2893 = vmatpush.msra.mxu0 %v1002
      %2894 = vmatpush.msra.mxu0 %v996
      %2895 = vmatpush.msra.mxu0 %v990
      %2896 = vmatpush.msra.mxu0 %v984
      %2897 = vmatpush.msra.mxu0 %v978
      %2898 = vmatpush.msra.mxu0 %v972
      %2899 = vmatpush.msra.mxu0 %v966
      %2900 = vmatpush.msra.mxu0 %v960
      %2901 = vmatpush.msra.mxu0 %v954
      %2902 = vmatpush.msra.mxu0 %v948
      %2903 = vmatpush.msra.mxu0 %v942
      %2904 = vmatmul.f32.gmra.mxu0 %v2707
      %v2905 = vpop.f32.mrf.mxu0
      %v2906 = vadd.f32 %v2886, %v2905
      %2907 = vdwg.mxu0
      %2908 = vmatpush.msra.mxu0 %v937
      %2909 = vmatpush.msra.mxu0 %v931
      %2910 = vmatpush.msra.mxu0 %v925
      %2911 = vmatpush.msra.mxu0 %v919
      %2912 = vmatpush.msra.mxu0 %v913
      %2913 = vmatpush.msra.mxu0 %v907
      %2914 = vmatpush.msra.mxu0 %v901
      %2915 = vmatpush.msra.mxu0 %v895
      %2916 = vmatpush.msra.mxu0 %v889
      %2917 = vmatpush.msra.mxu0 %v883
      %2918 = vmatpush.msra.mxu0 %v877
      %2919 = vmatpush.msra.mxu0 %v871
      %2920 = vmatpush.msra.mxu0 %v865
      %2921 = vmatpush.msra.mxu0 %v859
      %2922 = vmatpush.msra.mxu0 %v853
      %2923 = vmatpush.msra.mxu0 %v847
      %2924 = vmatmul.f32.gmra.mxu0 %v2706
      %v2925 = vpop.f32.mrf.mxu0
      %v2926 = vadd.f32 %v1041, %v2925
      %2927 = vdwg.mxu0
      %2928 = vmatpush.msra.mxu0 %v1033
      %2929 = vmatpush.msra.mxu0 %v1027
      %2930 = vmatpush.msra.mxu0 %v1021
      %2931 = vmatpush.msra.mxu0 %v1015
      %2932 = vmatpush.msra.mxu0 %v1009
      %2933 = vmatpush.msra.mxu0 %v1003
      %2934 = vmatpush.msra.mxu0 %v997
      %2935 = vmatpush.msra.mxu0 %v991
      %2936 = vmatpush.msra.mxu0 %v985
      %2937 = vmatpush.msra.mxu0 %v979
      %2938 = vmatpush.msra.mxu0 %v973
      %2939 = vmatpush.msra.mxu0 %v967
      %2940 = vmatpush.msra.mxu0 %v961
      %2941 = vmatpush.msra.mxu0 %v955
      %2942 = vmatpush.msra.mxu0 %v949
      %2943 = vmatpush.msra.mxu0 %v943
      %2944 = vmatmul.f32.gmra.mxu0 %v2707
      %v2945 = vpop.f32.mrf.mxu0
      %v2946 = vadd.f32 %v2926, %v2945
      %2947 = vdwg.mxu0
      %v2948 = vadd.f32 %v620, %v2746
      %v2949 = vadd.f32 %v661, %v2786
      %v2950 = vxor.u32 %v2948, 2147483648
      %v2951 = vxor.u32 %v2949, 2147483648
      %v2952 = vmul.f32 %v2950, 1.442695
      %v2953 = vpow.pop %v2952
      %v2954 = vmul.f32 %v2951, 1.442695
      %v2955 = vpow.pop %v2954
      %v2956 = vadd.f32 %v2953, 1.0
      %v2957 = vadd.f32 %v2955, 1.0
      %v2958 = vrcp.pop %v2956
      %v2959 = vmul.f32 %v2956, %v2958
      %v2960 = vsub.f32 1.0, %v2959
      %v2961 = vmul.f32 %v2958, %v2960
      %v2962 = vadd.f32 %v2958, %v2961
      %vm2963 = vweird.f32 %v2956
      %vm2964 = vweird.f32 %v2958
      %vm2965 = vmor %vm2963, %vm2964
      %v2966 = vsel %vm2965, %v2958, %v2962
      %v2967 = vand.u32 2147483647, %v2956
      %vm2968 = vcmp.eq.f32.partialorder %v2967, 8.507059e+37
      %v2969 = vand.u32 %v2956, 2147483648
      %v2970 = vor.u32 1.1754944e-38, %v2969
      %v2971 = vsel %vm2968, %v2970, %v2966
      %v2972 = vmul.f32 1.0, %v2971
      %v2973 = vrcp.pop %v2957
      %v2974 = vmul.f32 %v2957, %v2973
      %v2975 = vsub.f32 1.0, %v2974
      %v2976 = vmul.f32 %v2973, %v2975
      %v2977 = vadd.f32 %v2973, %v2976
      %vm2978 = vweird.f32 %v2957
      %vm2979 = vweird.f32 %v2973
      %vm2980 = vmor %vm2978, %vm2979
      %v2981 = vsel %vm2980, %v2973, %v2977
      %v2982 = vand.u32 2147483647, %v2957
      %vm2983 = vcmp.eq.f32.partialorder %v2982, 8.507059e+37
      %v2984 = vand.u32 %v2957, 2147483648
      %v2985 = vor.u32 1.1754944e-38, %v2984
      %v2986 = vsel %vm2983, %v2985, %v2981
      %v2987 = vmul.f32 1.0, %v2986
      %v2988 = vadd.f32 %v702, %v2826
      %v2989 = vadd.f32 %v743, %v2866
      %v2990 = vxor.u32 %v2988, 2147483648
      %v2991 = vxor.u32 %v2989, 2147483648
      %v2992 = vmul.f32 %v2990, 1.442695
      %v2993 = vpow.pop %v2992
      %v2994 = vmul.f32 %v2991, 1.442695
      %v2995 = vpow.pop %v2994
      %v2996 = vadd.f32 %v2993, 1.0
      %v2997 = vadd.f32 %v2995, 1.0
      %v2998 = vrcp.pop %v2996
      %v2999 = vmul.f32 %v2996, %v2998
      %v3000 = vsub.f32 1.0, %v2999
      %v3001 = vmul.f32 %v2998, %v3000
      %v3002 = vadd.f32 %v2998, %v3001
      %vm3003 = vweird.f32 %v2996
      %vm3004 = vweird.f32 %v2998
      %vm3005 = vmor %vm3003, %vm3004
      %v3006 = vsel %vm3005, %v2998, %v3002
      %v3007 = vand.u32 2147483647, %v2996
      %vm3008 = vcmp.eq.f32.partialorder %v3007, 8.507059e+37
      %v3009 = vand.u32 %v2996, 2147483648
      %v3010 = vor.u32 1.1754944e-38, %v3009
      %v3011 = vsel %vm3008, %v3010, %v3006
      %v3012 = vmul.f32 1.0, %v3011
      %v3013 = vrcp.pop %v2997
      %v3014 = vmul.f32 %v2997, %v3013
      %v3015 = vsub.f32 1.0, %v3014
      %v3016 = vmul.f32 %v3013, %v3015
      %v3017 = vadd.f32 %v3013, %v3016
      %vm3018 = vweird.f32 %v2997
      %vm3019 = vweird.f32 %v3013
      %vm3020 = vmor %vm3018, %vm3019
      %v3021 = vsel %vm3020, %v3013, %v3017
      %v3022 = vand.u32 2147483647, %v2997
      %vm3023 = vcmp.eq.f32.partialorder %v3022, 8.507059e+37
      %v3024 = vand.u32 %v2997, 2147483648
      %v3025 = vor.u32 1.1754944e-38, %v3024
      %v3026 = vsel %vm3023, %v3025, %v3021
      %v3027 = vmul.f32 1.0, %v3026
      %v3028 = vmul.f32 %v2972, %v2906
      %v3029 = vmul.f32 %v2987, %v2946
      %v3030 = vadd.f32 %v784, %v3028
      %v3031 = vadd.f32 %v825, %v3029
      %v3032 = vtanh.pop %v3030
      %v3033 = vtanh.pop %v3031
      %v3034 = vsub.f32 %v2706, %v3032
      %v3035 = vsub.f32 %v2707, %v3033
      %v3036 = vmul.f32 %v3012, %v3034
      %v3037 = vmul.f32 %v3027, %v3035
      %v3038 = vadd.f32 %v3032, %v3036
      %v3039 = vadd.f32 %v3033, %v3037
      %3040 = vmatpush.msra.mxu0 %v932
      %3041 = vmatpush.msra.mxu0 %v926
      %3042 = vmatpush.msra.mxu0 %v920
      %3043 = vmatpush.msra.mxu0 %v914
      %3044 = vmatpush.msra.mxu0 %v908
      %3045 = vmatpush.msra.mxu0 %v902
      %3046 = vmatpush.msra.mxu0 %v896
      %3047 = vmatpush.msra.mxu0 %v890
      %3048 = vmatpush.msra.mxu0 %v884
      %3049 = vmatpush.msra.mxu0 %v878
      %3050 = vmatpush.msra.mxu0 %v872
      %3051 = vmatpush.msra.mxu0 %v866
      %3052 = vmatpush.msra.mxu0 %v860
      %3053 = vmatpush.msra.mxu0 %v854
      %3054 = vmatpush.msra.mxu0 %v848
      %3055 = vmatpush.msra.mxu0 %v842
      %3056 = vmatmul.f32.gmra.mxu0 %v3038
      %v3057 = vpop.f32.mrf.mxu0
      %v3058 = vadd.f32 %v1036, %v3057
      %3059 = vdwg.mxu0
      %3060 = vmatpush.msra.mxu0 %v1028
      %3061 = vmatpush.msra.mxu0 %v1022
      %3062 = vmatpush.msra.mxu0 %v1016
      %3063 = vmatpush.msra.mxu0 %v1010
      %3064 = vmatpush.msra.mxu0 %v1004
      %3065 = vmatpush.msra.mxu0 %v998
      %3066 = vmatpush.msra.mxu0 %v992
      %3067 = vmatpush.msra.mxu0 %v986
      %3068 = vmatpush.msra.mxu0 %v980
      %3069 = vmatpush.msra.mxu0 %v974
      %3070 = vmatpush.msra.mxu0 %v968
      %3071 = vmatpush.msra.mxu0 %v962
      %3072 = vmatpush.msra.mxu0 %v956
      %3073 = vmatpush.msra.mxu0 %v950
      %3074 = vmatpush.msra.mxu0 %v944
      %3075 = vmatpush.msra.mxu0 %v938
      %3076 = vmatmul.f32.gmra.mxu0 %v3039
      %v3077 = vpop.f32.mrf.mxu0
      %v3078 = vadd.f32 %v3058, %v3077
      %3079 = vdwg.mxu0
      %3080 = vmatpush.msra.mxu0 %v933
      %3081 = vmatpush.msra.mxu0 %v927
      %3082 = vmatpush.msra.mxu0 %v921
      %3083 = vmatpush.msra.mxu0 %v915
      %3084 = vmatpush.msra.mxu0 %v909
      %3085 = vmatpush.msra.mxu0 %v903
      %3086 = vmatpush.msra.mxu0 %v897
      %3087 = vmatpush.msra.mxu0 %v891
      %3088 = vmatpush.msra.mxu0 %v885
      %3089 = vmatpush.msra.mxu0 %v879
      %3090 = vmatpush.msra.mxu0 %v873
      %3091 = vmatpush.msra.mxu0 %v867
      %3092 = vmatpush.msra.mxu0 %v861
      %3093 = vmatpush.msra.mxu0 %v855
      %3094 = vmatpush.msra.mxu0 %v849
      %3095 = vmatpush.msra.mxu0 %v843
      %3096 = vmatmul.f32.gmra.mxu0 %v3038
      %v3097 = vpop.f32.mrf.mxu0
      %v3098 = vadd.f32 %v1037, %v3097
      %3099 = vdwg.mxu0
      %3100 = vmatpush.msra.mxu0 %v1029
      %3101 = vmatpush.msra.mxu0 %v1023
      %3102 = vmatpush.msra.mxu0 %v1017
      %3103 = vmatpush.msra.mxu0 %v1011
      %3104 = vmatpush.msra.mxu0 %v1005
      %3105 = vmatpush.msra.mxu0 %v999
      %3106 = vmatpush.msra.mxu0 %v993
      %3107 = vmatpush.msra.mxu0 %v987
      %3108 = vmatpush.msra.mxu0 %v981
      %3109 = vmatpush.msra.mxu0 %v975
      %3110 = vmatpush.msra.mxu0 %v969
      %3111 = vmatpush.msra.mxu0 %v963
      %3112 = vmatpush.msra.mxu0 %v957
      %3113 = vmatpush.msra.mxu0 %v951
      %3114 = vmatpush.msra.mxu0 %v945
      %3115 = vmatpush.msra.mxu0 %v939
      %3116 = vmatmul.f32.gmra.mxu0 %v3039
      %v3117 = vpop.f32.mrf.mxu0
      %v3118 = vadd.f32 %v3098, %v3117
      %3119 = vdwg.mxu0
      %3120 = vmatpush.msra.mxu0 %v934
      %3121 = vmatpush.msra.mxu0 %v928
      %3122 = vmatpush.msra.mxu0 %v922
      %3123 = vmatpush.msra.mxu0 %v916
      %3124 = vmatpush.msra.mxu0 %v910
      %3125 = vmatpush.msra.mxu0 %v904
      %3126 = vmatpush.msra.mxu0 %v898
      %3127 = vmatpush.msra.mxu0 %v892
      %3128 = vmatpush.msra.mxu0 %v886
      %3129 = vmatpush.msra.mxu0 %v880
      %3130 = vmatpush.msra.mxu0 %v874
      %3131 = vmatpush.msra.mxu0 %v868
      %3132 = vmatpush.msra.mxu0 %v862
      %3133 = vmatpush.msra.mxu0 %v856
      %3134 = vmatpush.msra.mxu0 %v850
      %3135 = vmatpush.msra.mxu0 %v844
      %3136 = vmatmul.f32.gmra.mxu0 %v3038
      %v3137 = vpop.f32.mrf.mxu0
      %v3138 = vadd.f32 %v1038, %v3137
      %3139 = vdwg.mxu0
      %3140 = vmatpush.msra.mxu0 %v1030
      %3141 = vmatpush.msra.mxu0 %v1024
      %3142 = vmatpush.msra.mxu0 %v1018
      %3143 = vmatpush.msra.mxu0 %v1012
      %3144 = vmatpush.msra.mxu0 %v1006
      %3145 = vmatpush.msra.mxu0 %v1000
      %3146 = vmatpush.msra.mxu0 %v994
      %3147 = vmatpush.msra.mxu0 %v988
      %3148 = vmatpush.msra.mxu0 %v982
      %3149 = vmatpush.msra.mxu0 %v976
      %3150 = vmatpush.msra.mxu0 %v970
      %3151 = vmatpush.msra.mxu0 %v964
      %3152 = vmatpush.msra.mxu0 %v958
      %3153 = vmatpush.msra.mxu0 %v952
      %3154 = vmatpush.msra.mxu0 %v946
      %3155 = vmatpush.msra.mxu0 %v940
      %3156 = vmatmul.f32.gmra.mxu0 %v3039
      %v3157 = vpop.f32.mrf.mxu0
      %v3158 = vadd.f32 %v3138, %v3157
      %3159 = vdwg.mxu0
      %3160 = vmatpush.msra.mxu0 %v935
      %3161 = vmatpush.msra.mxu0 %v929
      %3162 = vmatpush.msra.mxu0 %v923
      %3163 = vmatpush.msra.mxu0 %v917
      %3164 = vmatpush.msra.mxu0 %v911
      %3165 = vmatpush.msra.mxu0 %v905
      %3166 = vmatpush.msra.mxu0 %v899
      %3167 = vmatpush.msra.mxu0 %v893
      %3168 = vmatpush.msra.mxu0 %v887
      %3169 = vmatpush.msra.mxu0 %v881
      %3170 = vmatpush.msra.mxu0 %v875
      %3171 = vmatpush.msra.mxu0 %v869
      %3172 = vmatpush.msra.mxu0 %v863
      %3173 = vmatpush.msra.mxu0 %v857
      %3174 = vmatpush.msra.mxu0 %v851
      %3175 = vmatpush.msra.mxu0 %v845
      %3176 = vmatmul.f32.gmra.mxu0 %v3038
      %v3177 = vpop.f32.mrf.mxu0
      %v3178 = vadd.f32 %v1039, %v3177
      %3179 = vdwg.mxu0
      %3180 = vmatpush.msra.mxu0 %v1031
      %3181 = vmatpush.msra.mxu0 %v1025
      %3182 = vmatpush.msra.mxu0 %v1019
      %3183 = vmatpush.msra.mxu0 %v1013
      %3184 = vmatpush.msra.mxu0 %v1007
      %3185 = vmatpush.msra.mxu0 %v1001
      %3186 = vmatpush.msra.mxu0 %v995
      %3187 = vmatpush.msra.mxu0 %v989
      %3188 = vmatpush.msra.mxu0 %v983
      %3189 = vmatpush.msra.mxu0 %v977
      %3190 = vmatpush.msra.mxu0 %v971
      %3191 = vmatpush.msra.mxu0 %v965
      %3192 = vmatpush.msra.mxu0 %v959
      %3193 = vmatpush.msra.mxu0 %v953
      %3194 = vmatpush.msra.mxu0 %v947
      %3195 = vmatpush.msra.mxu0 %v941
      %3196 = vmatmul.f32.gmra.mxu0 %v3039
      %v3197 = vpop.f32.mrf.mxu0
      %v3198 = vadd.f32 %v3178, %v3197
      %3199 = vdwg.mxu0
      %3200 = vmatpush.msra.mxu0 %v936
      %3201 = vmatpush.msra.mxu0 %v930
      %3202 = vmatpush.msra.mxu0 %v924
      %3203 = vmatpush.msra.mxu0 %v918
      %3204 = vmatpush.msra.mxu0 %v912
      %3205 = vmatpush.msra.mxu0 %v906
      %3206 = vmatpush.msra.mxu0 %v900
      %3207 = vmatpush.msra.mxu0 %v894
      %3208 = vmatpush.msra.mxu0 %v888
      %3209 = vmatpush.msra.mxu0 %v882
      %3210 = vmatpush.msra.mxu0 %v876
      %3211 = vmatpush.msra.mxu0 %v870
      %3212 = vmatpush.msra.mxu0 %v864
      %3213 = vmatpush.msra.mxu0 %v858
      %3214 = vmatpush.msra.mxu0 %v852
      %3215 = vmatpush.msra.mxu0 %v846
      %3216 = vmatmul.f32.gmra.mxu0 %v3038
      %v3217 = vpop.f32.mrf.mxu0
      %v3218 = vadd.f32 %v1040, %v3217
      %3219 = vdwg.mxu0
      %3220 = vmatpush.msra.mxu0 %v1032
      %3221 = vmatpush.msra.mxu0 %v1026
      %3222 = vmatpush.msra.mxu0 %v1020
      %3223 = vmatpush.msra.mxu0 %v1014
      %3224 = vmatpush.msra.mxu0 %v1008
      %3225 = vmatpush.msra.mxu0 %v1002
      %3226 = vmatpush.msra.mxu0 %v996
      %3227 = vmatpush.msra.mxu0 %v990
      %3228 = vmatpush.msra.mxu0 %v984
      %3229 = vmatpush.msra.mxu0 %v978
      %3230 = vmatpush.msra.mxu0 %v972
      %3231 = vmatpush.msra.mxu0 %v966
      %3232 = vmatpush.msra.mxu0 %v960
      %3233 = vmatpush.msra.mxu0 %v954
      %3234 = vmatpush.msra.mxu0 %v948
      %3235 = vmatpush.msra.mxu0 %v942
      %3236 = vmatmul.f32.gmra.mxu0 %v3039
      %v3237 = vpop.f32.mrf.mxu0
      %v3238 = vadd.f32 %v3218, %v3237
      %3239 = vdwg.mxu0
      %3240 = vmatpush.msra.mxu0 %v937
      %3241 = vmatpush.msra.mxu0 %v931
      %3242 = vmatpush.msra.mxu0 %v925
      %3243 = vmatpush.msra.mxu0 %v919
      %3244 = vmatpush.msra.mxu0 %v913
      %3245 = vmatpush.msra.mxu0 %v907
      %3246 = vmatpush.msra.mxu0 %v901
      %3247 = vmatpush.msra.mxu0 %v895
      %3248 = vmatpush.msra.mxu0 %v889
      %3249 = vmatpush.msra.mxu0 %v883
      %3250 = vmatpush.msra.mxu0 %v877
      %3251 = vmatpush.msra.mxu0 %v871
      %3252 = vmatpush.msra.mxu0 %v865
      %3253 = vmatpush.msra.mxu0 %v859
      %3254 = vmatpush.msra.mxu0 %v853
      %3255 = vmatpush.msra.mxu0 %v847
      %3256 = vmatmul.f32.gmra.mxu0 %v3038
      %v3257 = vpop.f32.mrf.mxu0
      %v3258 = vadd.f32 %v1041, %v3257
      %3259 = vdwg.mxu0
      %3260 = vmatpush.msra.mxu0 %v1033
      %3261 = vmatpush.msra.mxu0 %v1027
      %3262 = vmatpush.msra.mxu0 %v1021
      %3263 = vmatpush.msra.mxu0 %v1015
      %3264 = vmatpush.msra.mxu0 %v1009
      %3265 = vmatpush.msra.mxu0 %v1003
      %3266 = vmatpush.msra.mxu0 %v997
      %3267 = vmatpush.msra.mxu0 %v991
      %3268 = vmatpush.msra.mxu0 %v985
      %3269 = vmatpush.msra.mxu0 %v979
      %3270 = vmatpush.msra.mxu0 %v973
      %3271 = vmatpush.msra.mxu0 %v967
      %3272 = vmatpush.msra.mxu0 %v961
      %3273 = vmatpush.msra.mxu0 %v955
      %3274 = vmatpush.msra.mxu0 %v949
      %3275 = vmatpush.msra.mxu0 %v943
      %3276 = vmatmul.f32.gmra.mxu0 %v3039
      %v3277 = vpop.f32.mrf.mxu0
      %v3278 = vadd.f32 %v3258, %v3277
      %3279 = vdwg.mxu0
      %v3280 = vadd.f32 %v617, %v3078
      %v3281 = vadd.f32 %v658, %v3118
      %v3282 = vxor.u32 %v3280, 2147483648
      %v3283 = vxor.u32 %v3281, 2147483648
      %v3284 = vmul.f32 %v3282, 1.442695
      %v3285 = vpow.pop %v3284
      %v3286 = vmul.f32 %v3283, 1.442695
      %v3287 = vpow.pop %v3286
      %v3288 = vadd.f32 %v3285, 1.0
      %v3289 = vadd.f32 %v3287, 1.0
      %v3290 = vrcp.pop %v3288
      %v3291 = vmul.f32 %v3288, %v3290
      %v3292 = vsub.f32 1.0, %v3291
      %v3293 = vmul.f32 %v3290, %v3292
      %v3294 = vadd.f32 %v3290, %v3293
      %vm3295 = vweird.f32 %v3288
      %vm3296 = vweird.f32 %v3290
      %vm3297 = vmor %vm3295, %vm3296
      %v3298 = vsel %vm3297, %v3290, %v3294
      %v3299 = vand.u32 2147483647, %v3288
      %vm3300 = vcmp.eq.f32.partialorder %v3299, 8.507059e+37
      %v3301 = vand.u32 %v3288, 2147483648
      %v3302 = vor.u32 1.1754944e-38, %v3301
      %v3303 = vsel %vm3300, %v3302, %v3298
      %v3304 = vmul.f32 1.0, %v3303
      %v3305 = vrcp.pop %v3289
      %v3306 = vmul.f32 %v3289, %v3305
      %v3307 = vsub.f32 1.0, %v3306
      %v3308 = vmul.f32 %v3305, %v3307
      %v3309 = vadd.f32 %v3305, %v3308
      %vm3310 = vweird.f32 %v3289
      %vm3311 = vweird.f32 %v3305
      %vm3312 = vmor %vm3310, %vm3311
      %v3313 = vsel %vm3312, %v3305, %v3309
      %v3314 = vand.u32 2147483647, %v3289
      %vm3315 = vcmp.eq.f32.partialorder %v3314, 8.507059e+37
      %v3316 = vand.u32 %v3289, 2147483648
      %v3317 = vor.u32 1.1754944e-38, %v3316
      %v3318 = vsel %vm3315, %v3317, %v3313
      %v3319 = vmul.f32 1.0, %v3318
      %v3320 = vadd.f32 %v699, %v3158
      %v3321 = vadd.f32 %v740, %v3198
      %v3322 = vxor.u32 %v3320, 2147483648
      %v3323 = vxor.u32 %v3321, 2147483648
      %v3324 = vmul.f32 %v3322, 1.442695
      %v3325 = vpow.pop %v3324
      %v3326 = vmul.f32 %v3323, 1.442695
      %v3327 = vpow.pop %v3326
      %v3328 = vadd.f32 %v3325, 1.0
      %v3329 = vadd.f32 %v3327, 1.0
      %v3330 = vrcp.pop %v3328
      %v3331 = vmul.f32 %v3328, %v3330
      %v3332 = vsub.f32 1.0, %v3331
      %v3333 = vmul.f32 %v3330, %v3332
      %v3334 = vadd.f32 %v3330, %v3333
      %vm3335 = vweird.f32 %v3328
      %vm3336 = vweird.f32 %v3330
      %vm3337 = vmor %vm3335, %vm3336
      %v3338 = vsel %vm3337, %v3330, %v3334
      %v3339 = vand.u32 2147483647, %v3328
      %vm3340 = vcmp.eq.f32.partialorder %v3339, 8.507059e+37
      %v3341 = vand.u32 %v3328, 2147483648
      %v3342 = vor.u32 1.1754944e-38, %v3341
      %v3343 = vsel %vm3340, %v3342, %v3338
      %v3344 = vmul.f32 1.0, %v3343
      %v3345 = vrcp.pop %v3329
      %v3346 = vmul.f32 %v3329, %v3345
      %v3347 = vsub.f32 1.0, %v3346
      %v3348 = vmul.f32 %v3345, %v3347
      %v3349 = vadd.f32 %v3345, %v3348
      %vm3350 = vweird.f32 %v3329
      %vm3351 = vweird.f32 %v3345
      %vm3352 = vmor %vm3350, %vm3351
      %v3353 = vsel %vm3352, %v3345, %v3349
      %v3354 = vand.u32 2147483647, %v3329
      %vm3355 = vcmp.eq.f32.partialorder %v3354, 8.507059e+37
      %v3356 = vand.u32 %v3329, 2147483648
      %v3357 = vor.u32 1.1754944e-38, %v3356
      %v3358 = vsel %vm3355, %v3357, %v3353
      %v3359 = vmul.f32 1.0, %v3358
      %v3360 = vmul.f32 %v3304, %v3238
      %v3361 = vmul.f32 %v3319, %v3278
      %v3362 = vadd.f32 %v781, %v3360
      %v3363 = vadd.f32 %v822, %v3361
      %v3364 = vtanh.pop %v3362
      %v3365 = vtanh.pop %v3363
      %v3366 = vsub.f32 %v3038, %v3364
      %v3367 = vsub.f32 %v3039, %v3365
      %v3368 = vmul.f32 %v3344, %v3366
      %v3369 = vmul.f32 %v3359, %v3367
      %v3370 = vadd.f32 %v3364, %v3368
      %v3371 = vadd.f32 %v3365, %v3369
      %3372 = vmatpush.msra.mxu0 %v932
      %3373 = vmatpush.msra.mxu0 %v926
      %3374 = vmatpush.msra.mxu0 %v920
      %3375 = vmatpush.msra.mxu0 %v914
      %3376 = vmatpush.msra.mxu0 %v908
      %3377 = vmatpush.msra.mxu0 %v902
      %3378 = vmatpush.msra.mxu0 %v896
      %3379 = vmatpush.msra.mxu0 %v890
      %3380 = vmatpush.msra.mxu0 %v884
      %3381 = vmatpush.msra.mxu0 %v878
      %3382 = vmatpush.msra.mxu0 %v872
      %3383 = vmatpush.msra.mxu0 %v866
      %3384 = vmatpush.msra.mxu0 %v860
      %3385 = vmatpush.msra.mxu0 %v854
      %3386 = vmatpush.msra.mxu0 %v848
      %3387 = vmatpush.msra.mxu0 %v842
      %3388 = vmatmul.f32.gmra.mxu0 %v3370
      %v3389 = vpop.f32.mrf.mxu0
      %v3390 = vadd.f32 %v1036, %v3389
      %3391 = vdwg.mxu0
      %3392 = vmatpush.msra.mxu0 %v1028
      %3393 = vmatpush.msra.mxu0 %v1022
      %3394 = vmatpush.msra.mxu0 %v1016
      %3395 = vmatpush.msra.mxu0 %v1010
      %3396 = vmatpush.msra.mxu0 %v1004
      %3397 = vmatpush.msra.mxu0 %v998
      %3398 = vmatpush.msra.mxu0 %v992
      %3399 = vmatpush.msra.mxu0 %v986
      %3400 = vmatpush.msra.mxu0 %v980
      %3401 = vmatpush.msra.mxu0 %v974
      %3402 = vmatpush.msra.mxu0 %v968
      %3403 = vmatpush.msra.mxu0 %v962
      %3404 = vmatpush.msra.mxu0 %v956
      %3405 = vmatpush.msra.mxu0 %v950
      %3406 = vmatpush.msra.mxu0 %v944
      %3407 = vmatpush.msra.mxu0 %v938
      %3408 = vmatmul.f32.gmra.mxu0 %v3371
      %v3409 = vpop.f32.mrf.mxu0
      %v3410 = vadd.f32 %v3390, %v3409
      %3411 = vdwg.mxu0
      %3412 = vmatpush.msra.mxu0 %v933
      %3413 = vmatpush.msra.mxu0 %v927
      %3414 = vmatpush.msra.mxu0 %v921
      %3415 = vmatpush.msra.mxu0 %v915
      %3416 = vmatpush.msra.mxu0 %v909
      %3417 = vmatpush.msra.mxu0 %v903
      %3418 = vmatpush.msra.mxu0 %v897
      %3419 = vmatpush.msra.mxu0 %v891
      %3420 = vmatpush.msra.mxu0 %v885
      %3421 = vmatpush.msra.mxu0 %v879
      %3422 = vmatpush.msra.mxu0 %v873
      %3423 = vmatpush.msra.mxu0 %v867
      %3424 = vmatpush.msra.mxu0 %v861
      %3425 = vmatpush.msra.mxu0 %v855
      %3426 = vmatpush.msra.mxu0 %v849
      %3427 = vmatpush.msra.mxu0 %v843
      %3428 = vmatmul.f32.gmra.mxu0 %v3370
      %v3429 = vpop.f32.mrf.mxu0
      %v3430 = vadd.f32 %v1037, %v3429
      %3431 = vdwg.mxu0
      %3432 = vmatpush.msra.mxu0 %v1029
      %3433 = vmatpush.msra.mxu0 %v1023
      %3434 = vmatpush.msra.mxu0 %v1017
      %3435 = vmatpush.msra.mxu0 %v1011
      %3436 = vmatpush.msra.mxu0 %v1005
      %3437 = vmatpush.msra.mxu0 %v999
      %3438 = vmatpush.msra.mxu0 %v993
      %3439 = vmatpush.msra.mxu0 %v987
      %3440 = vmatpush.msra.mxu0 %v981
      %3441 = vmatpush.msra.mxu0 %v975
      %3442 = vmatpush.msra.mxu0 %v969
      %3443 = vmatpush.msra.mxu0 %v963
      %3444 = vmatpush.msra.mxu0 %v957
      %3445 = vmatpush.msra.mxu0 %v951
      %3446 = vmatpush.msra.mxu0 %v945
      %3447 = vmatpush.msra.mxu0 %v939
      %3448 = vmatmul.f32.gmra.mxu0 %v3371
      %v3449 = vpop.f32.mrf.mxu0
      %v3450 = vadd.f32 %v3430, %v3449
      %3451 = vdwg.mxu0
      %3452 = vmatpush.msra.mxu0 %v934
      %3453 = vmatpush.msra.mxu0 %v928
      %3454 = vmatpush.msra.mxu0 %v922
      %3455 = vmatpush.msra.mxu0 %v916
      %3456 = vmatpush.msra.mxu0 %v910
      %3457 = vmatpush.msra.mxu0 %v904
      %3458 = vmatpush.msra.mxu0 %v898
      %3459 = vmatpush.msra.mxu0 %v892
      %3460 = vmatpush.msra.mxu0 %v886
      %3461 = vmatpush.msra.mxu0 %v880
      %3462 = vmatpush.msra.mxu0 %v874
      %3463 = vmatpush.msra.mxu0 %v868
      %3464 = vmatpush.msra.mxu0 %v862
      %3465 = vmatpush.msra.mxu0 %v856
      %3466 = vmatpush.msra.mxu0 %v850
      %3467 = vmatpush.msra.mxu0 %v844
      %3468 = vmatmul.f32.gmra.mxu0 %v3370
      %v3469 = vpop.f32.mrf.mxu0
      %v3470 = vadd.f32 %v1038, %v3469
      %3471 = vdwg.mxu0
      %3472 = vmatpush.msra.mxu0 %v1030
      %3473 = vmatpush.msra.mxu0 %v1024
      %3474 = vmatpush.msra.mxu0 %v1018
      %3475 = vmatpush.msra.mxu0 %v1012
      %3476 = vmatpush.msra.mxu0 %v1006
      %3477 = vmatpush.msra.mxu0 %v1000
      %3478 = vmatpush.msra.mxu0 %v994
      %3479 = vmatpush.msra.mxu0 %v988
      %3480 = vmatpush.msra.mxu0 %v982
      %3481 = vmatpush.msra.mxu0 %v976
      %3482 = vmatpush.msra.mxu0 %v970
      %3483 = vmatpush.msra.mxu0 %v964
      %3484 = vmatpush.msra.mxu0 %v958
      %3485 = vmatpush.msra.mxu0 %v952
      %3486 = vmatpush.msra.mxu0 %v946
      %3487 = vmatpush.msra.mxu0 %v940
      %3488 = vmatmul.f32.gmra.mxu0 %v3371
      %v3489 = vpop.f32.mrf.mxu0
      %v3490 = vadd.f32 %v3470, %v3489
      %3491 = vdwg.mxu0
      %3492 = vmatpush.msra.mxu0 %v935
      %3493 = vmatpush.msra.mxu0 %v929
      %3494 = vmatpush.msra.mxu0 %v923
      %3495 = vmatpush.msra.mxu0 %v917
      %3496 = vmatpush.msra.mxu0 %v911
      %3497 = vmatpush.msra.mxu0 %v905
      %3498 = vmatpush.msra.mxu0 %v899
      %3499 = vmatpush.msra.mxu0 %v893
      %3500 = vmatpush.msra.mxu0 %v887
      %3501 = vmatpush.msra.mxu0 %v881
      %3502 = vmatpush.msra.mxu0 %v875
      %3503 = vmatpush.msra.mxu0 %v869
      %3504 = vmatpush.msra.mxu0 %v863
      %3505 = vmatpush.msra.mxu0 %v857
      %3506 = vmatpush.msra.mxu0 %v851
      %3507 = vmatpush.msra.mxu0 %v845
      %3508 = vmatmul.f32.gmra.mxu0 %v3370
      %v3509 = vpop.f32.mrf.mxu0
      %v3510 = vadd.f32 %v1039, %v3509
      %3511 = vdwg.mxu0
      %3512 = vmatpush.msra.mxu0 %v1031
      %3513 = vmatpush.msra.mxu0 %v1025
      %3514 = vmatpush.msra.mxu0 %v1019
      %3515 = vmatpush.msra.mxu0 %v1013
      %3516 = vmatpush.msra.mxu0 %v1007
      %3517 = vmatpush.msra.mxu0 %v1001
      %3518 = vmatpush.msra.mxu0 %v995
      %3519 = vmatpush.msra.mxu0 %v989
      %3520 = vmatpush.msra.mxu0 %v983
      %3521 = vmatpush.msra.mxu0 %v977
      %3522 = vmatpush.msra.mxu0 %v971
      %3523 = vmatpush.msra.mxu0 %v965
      %3524 = vmatpush.msra.mxu0 %v959
      %3525 = vmatpush.msra.mxu0 %v953
      %3526 = vmatpush.msra.mxu0 %v947
      %3527 = vmatpush.msra.mxu0 %v941
      %3528 = vmatmul.f32.gmra.mxu0 %v3371
      %v3529 = vpop.f32.mrf.mxu0
      %v3530 = vadd.f32 %v3510, %v3529
      %3531 = vdwg.mxu0
      %3532 = vmatpush.msra.mxu0 %v936
      %3533 = vmatpush.msra.mxu0 %v930
      %3534 = vmatpush.msra.mxu0 %v924
      %3535 = vmatpush.msra.mxu0 %v918
      %3536 = vmatpush.msra.mxu0 %v912
      %3537 = vmatpush.msra.mxu0 %v906
      %3538 = vmatpush.msra.mxu0 %v900
      %3539 = vmatpush.msra.mxu0 %v894
      %3540 = vmatpush.msra.mxu0 %v888
      %3541 = vmatpush.msra.mxu0 %v882
      %3542 = vmatpush.msra.mxu0 %v876
      %3543 = vmatpush.msra.mxu0 %v870
      %3544 = vmatpush.msra.mxu0 %v864
      %3545 = vmatpush.msra.mxu0 %v858
      %3546 = vmatpush.msra.mxu0 %v852
      %3547 = vmatpush.msra.mxu0 %v846
      %3548 = vmatmul.f32.gmra.mxu0 %v3370
      %v3549 = vpop.f32.mrf.mxu0
      %v3550 = vadd.f32 %v1040, %v3549
      %3551 = vdwg.mxu0
      %3552 = vmatpush.msra.mxu0 %v1032
      %3553 = vmatpush.msra.mxu0 %v1026
      %3554 = vmatpush.msra.mxu0 %v1020
      %3555 = vmatpush.msra.mxu0 %v1014
      %3556 = vmatpush.msra.mxu0 %v1008
      %3557 = vmatpush.msra.mxu0 %v1002
      %3558 = vmatpush.msra.mxu0 %v996
      %3559 = vmatpush.msra.mxu0 %v990
      %3560 = vmatpush.msra.mxu0 %v984
      %3561 = vmatpush.msra.mxu0 %v978
      %3562 = vmatpush.msra.mxu0 %v972
      %3563 = vmatpush.msra.mxu0 %v966
      %3564 = vmatpush.msra.mxu0 %v960
      %3565 = vmatpush.msra.mxu0 %v954
      %3566 = vmatpush.msra.mxu0 %v948
      %3567 = vmatpush.msra.mxu0 %v942
      %3568 = vmatmul.f32.gmra.mxu0 %v3371
      %v3569 = vpop.f32.mrf.mxu0
      %v3570 = vadd.f32 %v3550, %v3569
      %3571 = vdwg.mxu0
      %3572 = vmatpush.msra.mxu0 %v937
      %3573 = vmatpush.msra.mxu0 %v931
      %3574 = vmatpush.msra.mxu0 %v925
      %3575 = vmatpush.msra.mxu0 %v919
      %3576 = vmatpush.msra.mxu0 %v913
      %3577 = vmatpush.msra.mxu0 %v907
      %3578 = vmatpush.msra.mxu0 %v901
      %3579 = vmatpush.msra.mxu0 %v895
      %3580 = vmatpush.msra.mxu0 %v889
      %3581 = vmatpush.msra.mxu0 %v883
      %3582 = vmatpush.msra.mxu0 %v877
      %3583 = vmatpush.msra.mxu0 %v871
      %3584 = vmatpush.msra.mxu0 %v865
      %3585 = vmatpush.msra.mxu0 %v859
      %3586 = vmatpush.msra.mxu0 %v853
      %3587 = vmatpush.msra.mxu0 %v847
      %3588 = vmatmul.f32.gmra.mxu0 %v3370
      %v3589 = vpop.f32.mrf.mxu0
      %v3590 = vadd.f32 %v1041, %v3589
      %3591 = vdwg.mxu0
      %3592 = vmatpush.msra.mxu0 %v1033
      %3593 = vmatpush.msra.mxu0 %v1027
      %3594 = vmatpush.msra.mxu0 %v1021
      %3595 = vmatpush.msra.mxu0 %v1015
      %3596 = vmatpush.msra.mxu0 %v1009
      %3597 = vmatpush.msra.mxu0 %v1003
      %3598 = vmatpush.msra.mxu0 %v997
      %3599 = vmatpush.msra.mxu0 %v991
      %3600 = vmatpush.msra.mxu0 %v985
      %3601 = vmatpush.msra.mxu0 %v979
      %3602 = vmatpush.msra.mxu0 %v973
      %3603 = vmatpush.msra.mxu0 %v967
      %3604 = vmatpush.msra.mxu0 %v961
      %3605 = vmatpush.msra.mxu0 %v955
      %3606 = vmatpush.msra.mxu0 %v949
      %3607 = vmatpush.msra.mxu0 %v943
      %3608 = vmatmul.f32.gmra.mxu0 %v3371
      %v3609 = vpop.f32.mrf.mxu0
      %v3610 = vadd.f32 %v3590, %v3609
      %3611 = vdwg.mxu0
      %v3612 = vadd.f32 %v614, %v3410
      %v3613 = vadd.f32 %v655, %v3450
      %v3614 = vxor.u32 %v3612, 2147483648
      %v3615 = vxor.u32 %v3613, 2147483648
      %v3616 = vmul.f32 %v3614, 1.442695
      %v3617 = vpow.pop %v3616
      %v3618 = vmul.f32 %v3615, 1.442695
      %v3619 = vpow.pop %v3618
      %v3620 = vadd.f32 %v3617, 1.0
      %v3621 = vadd.f32 %v3619, 1.0
      %v3622 = vrcp.pop %v3620
      %v3623 = vmul.f32 %v3620, %v3622
      %v3624 = vsub.f32 1.0, %v3623
      %v3625 = vmul.f32 %v3622, %v3624
      %v3626 = vadd.f32 %v3622, %v3625
      %vm3627 = vweird.f32 %v3620
      %vm3628 = vweird.f32 %v3622
      %vm3629 = vmor %vm3627, %vm3628
      %v3630 = vsel %vm3629, %v3622, %v3626
      %v3631 = vand.u32 2147483647, %v3620
      %vm3632 = vcmp.eq.f32.partialorder %v3631, 8.507059e+37
      %v3633 = vand.u32 %v3620, 2147483648
      %v3634 = vor.u32 1.1754944e-38, %v3633
      %v3635 = vsel %vm3632, %v3634, %v3630
      %v3636 = vmul.f32 1.0, %v3635
      %v3637 = vrcp.pop %v3621
      %v3638 = vmul.f32 %v3621, %v3637
      %v3639 = vsub.f32 1.0, %v3638
      %v3640 = vmul.f32 %v3637, %v3639
      %v3641 = vadd.f32 %v3637, %v3640
      %vm3642 = vweird.f32 %v3621
      %vm3643 = vweird.f32 %v3637
      %vm3644 = vmor %vm3642, %vm3643
      %v3645 = vsel %vm3644, %v3637, %v3641
      %v3646 = vand.u32 2147483647, %v3621
      %vm3647 = vcmp.eq.f32.partialorder %v3646, 8.507059e+37
      %v3648 = vand.u32 %v3621, 2147483648
      %v3649 = vor.u32 1.1754944e-38, %v3648
      %v3650 = vsel %vm3647, %v3649, %v3645
      %v3651 = vmul.f32 1.0, %v3650
      %v3652 = vadd.f32 %v696, %v3490
      %v3653 = vadd.f32 %v737, %v3530
      %v3654 = vxor.u32 %v3652, 2147483648
      %v3655 = vxor.u32 %v3653, 2147483648
      %v3656 = vmul.f32 %v3654, 1.442695
      %v3657 = vpow.pop %v3656
      %v3658 = vmul.f32 %v3655, 1.442695
      %v3659 = vpow.pop %v3658
      %v3660 = vadd.f32 %v3657, 1.0
      %v3661 = vadd.f32 %v3659, 1.0
      %v3662 = vrcp.pop %v3660
      %v3663 = vmul.f32 %v3660, %v3662
      %v3664 = vsub.f32 1.0, %v3663
      %v3665 = vmul.f32 %v3662, %v3664
      %v3666 = vadd.f32 %v3662, %v3665
      %vm3667 = vweird.f32 %v3660
      %vm3668 = vweird.f32 %v3662
      %vm3669 = vmor %vm3667, %vm3668
      %v3670 = vsel %vm3669, %v3662, %v3666
      %v3671 = vand.u32 2147483647, %v3660
      %vm3672 = vcmp.eq.f32.partialorder %v3671, 8.507059e+37
      %v3673 = vand.u32 %v3660, 2147483648
      %v3674 = vor.u32 1.1754944e-38, %v3673
      %v3675 = vsel %vm3672, %v3674, %v3670
      %v3676 = vmul.f32 1.0, %v3675
      %v3677 = vrcp.pop %v3661
      %v3678 = vmul.f32 %v3661, %v3677
      %v3679 = vsub.f32 1.0, %v3678
      %v3680 = vmul.f32 %v3677, %v3679
      %v3681 = vadd.f32 %v3677, %v3680
      %vm3682 = vweird.f32 %v3661
      %vm3683 = vweird.f32 %v3677
      %vm3684 = vmor %vm3682, %vm3683
      %v3685 = vsel %vm3684, %v3677, %v3681
      %v3686 = vand.u32 2147483647, %v3661
      %vm3687 = vcmp.eq.f32.partialorder %v3686, 8.507059e+37
      %v3688 = vand.u32 %v3661, 2147483648
      %v3689 = vor.u32 1.1754944e-38, %v3688
      %v3690 = vsel %vm3687, %v3689, %v3685
      %v3691 = vmul.f32 1.0, %v3690
      %v3692 = vmul.f32 %v3636, %v3570
      %v3693 = vmul.f32 %v3651, %v3610
      %v3694 = vadd.f32 %v778, %v3692
      %v3695 = vadd.f32 %v819, %v3693
      %v3696 = vtanh.pop %v3694
      %v3697 = vtanh.pop %v3695
      %v3698 = vsub.f32 %v3370, %v3696
      %v3699 = vsub.f32 %v3371, %v3697
      %v3700 = vmul.f32 %v3676, %v3698
      %v3701 = vmul.f32 %v3691, %v3699
      %v3702 = vadd.f32 %v3696, %v3700
      %v3703 = vadd.f32 %v3697, %v3701
      %v3704 = vld [vmem:[%s6] sm:$0x1]
      %v3706 = vperm.slane %v3704, 0
      %v3708 = vmul.f32 %v3702, %v3706
      %v3709 = vmul.f32 %v3370, %v3706
      %v3710 = vmul.f32 %v3038, %v3706
      %v3711 = vmul.f32 %v2706, %v3706
      %v3712 = vmul.f32 %v2374, %v3706
      %v3713 = vmul.f32 %v2042, %v3706
      %v3714 = vmul.f32 %v1710, %v3706
      %v3715 = vmul.f32 %v1378, %v3706
      %3716 = vadd.xlane.f32.xlu0 %v3708
      %v3717 = vpop.xlane.xlu0 %3716
      %3718 = vadd.xlane.f32.xlu0 %v3709
      %v3719 = vpop.xlane.xlu0 %3718
      %3720 = vadd.xlane.f32.xlu0 %v3710
      %v3721 = vpop.xlane.xlu0 %3720
      %3722 = vadd.xlane.f32.xlu0 %v3711
      %v3723 = vpop.xlane.xlu0 %3722
      %3724 = vadd.xlane.f32.xlu0 %v3712
      %v3725 = vpop.xlane.xlu0 %3724
      %3726 = vadd.xlane.f32.xlu0 %v3713
      %v3727 = vpop.xlane.xlu0 %3726
      %3728 = vadd.xlane.f32.xlu0 %v3714
      %v3729 = vpop.xlane.xlu0 %3728
      %3730 = vadd.xlane.f32.xlu0 %v3715
      %v3731 = vpop.xlane.xlu0 %3730
      %v3732 = vld [vmem:[#allocation2] sm:$0x1]
      %v3734 = vperm.slane %v3732, 0
      %v3736 = vadd.f32 %v3717, %v3734
      %v3737 = vadd.f32 %v3719, %v3734
      %v3738 = vadd.f32 %v3721, %v3734
      %v3739 = vadd.f32 %v3723, %v3734
      %v3740 = vadd.f32 %v3725, %v3734
      %v3741 = vadd.f32 %v3727, %v3734
      %v3742 = vadd.f32 %v3729, %v3734
      %v3743 = vadd.f32 %v3731, %v3734
      %v3744 = vmax.f32 %v3736, %v3737
      %v3745 = vmax.f32 %v3744, %v3738
      %v3746 = vmax.f32 %v3745, %v3739
      %v3747 = vmax.f32 %v3746, %v3740
      %v3748 = vmax.f32 %v3747, %v3741
      %v3749 = vmax.f32 %v3748, %v3742
      %v3750 = vmax.f32 %v3749, %v3743
      %v3751 = vsub.f32 %v3736, %v3750
      %v3752 = vmul.f32 %v3751, 1.442695
      %v3753 = vpow.pop %v3752
      %v3754 = vsub.f32 %v3737, %v3750
      %v3755 = vmul.f32 %v3754, 1.442695
      %v3756 = vpow.pop %v3755
      %v3757 = vsub.f32 %v3738, %v3750
      %v3758 = vmul.f32 %v3757, 1.442695
      %v3759 = vpow.pop %v3758
      %v3760 = vsub.f32 %v3739, %v3750
      %v3761 = vmul.f32 %v3760, 1.442695
      %v3762 = vpow.pop %v3761
      %v3763 = vsub.f32 %v3740, %v3750
      %v3764 = vmul.f32 %v3763, 1.442695
      %v3765 = vpow.pop %v3764
      %v3766 = vsub.f32 %v3741, %v3750
      %v3767 = vmul.f32 %v3766, 1.442695
      %v3768 = vpow.pop %v3767
      %v3769 = vsub.f32 %v3742, %v3750
      %v3770 = vmul.f32 %v3769, 1.442695
      %v3771 = vpow.pop %v3770
      %v3772 = vsub.f32 %v3743, %v3750
      %v3773 = vmul.f32 %v3772, 1.442695
      %v3774 = vpow.pop %v3773
      %v3775 = vadd.f32 %v3753, %v3756
      %v3776 = vadd.f32 %v3775, %v3759
      %v3777 = vadd.f32 %v3776, %v3762
      %v3778 = vadd.f32 %v3777, %v3765
      %v3779 = vadd.f32 %v3778, %v3768
      %v3780 = vadd.f32 %v3779, %v3771
      %v3781 = vadd.f32 %v3780, %v3774
      %v3782 = vrcp.pop %v3781
      %v3783 = vmul.f32 %v3781, %v3782
      %v3784 = vsub.f32 1.0, %v3783
      %v3785 = vmul.f32 %v3782, %v3784
      %v3786 = vadd.f32 %v3782, %v3785
      %vm3787 = vweird.f32 %v3781
      %vm3788 = vweird.f32 %v3782
      %vm3789 = vmor %vm3787, %vm3788
      %v3790 = vsel %vm3789, %v3782, %v3786
      %v3791 = vand.u32 2147483647, %v3781
      %vm3792 = vcmp.eq.f32.partialorder %v3791, 8.507059e+37
      %v3793 = vand.u32 %v3781, 2147483648
      %v3794 = vor.u32 1.1754944e-38, %v3793
      %v3795 = vsel %vm3792, %v3794, %v3790
      %v3796 = vmul.f32 %v3753, %v3795
      %v3797 = vmul.f32 %v3756, %v3795
      %v3798 = vmul.f32 %v3759, %v3795
      %v3799 = vmul.f32 %v3762, %v3795
      %v3800 = vmul.f32 %v3765, %v3795
      %v3801 = vmul.f32 %v3768, %v3795
      %v3802 = vmul.f32 %v3771, %v3795
      %v3803 = vmul.f32 %v3774, %v3795
      %v3804 = vld [vmem:[%s8] sm:$0xff]
      %v3805 = vld [vmem:[%s8 + $0x8] sm:$0xff]
      %v3806 = vld [vmem:[%s8 + $0x10] sm:$0xff]
      %v3807 = vld [vmem:[%s8 + $0x18] sm:$0xff]
      %v3808 = vld [vmem:[%s8 + $0x20] sm:$0xff]
      %v3809 = vld [vmem:[%s8 + $0x28] sm:$0xff]
      %v3810 = vld [vmem:[%s8 + $0x30] sm:$0xff]
      %v3811 = vld [vmem:[%s8 + $0x38] sm:$0xff]
      %v3812 = vld [vmem:[%s8 + $0x40] sm:$0xff]
      %v3813 = vld [vmem:[%s8 + $0x48] sm:$0xff]
      %v3814 = vld [vmem:[%s8 + $0x50] sm:$0xff]
      %v3815 = vld [vmem:[%s8 + $0x58] sm:$0xff]
      %v3816 = vld [vmem:[%s8 + $0x60] sm:$0xff]
      %v3817 = vld [vmem:[%s8 + $0x68] sm:$0xff]
      %v3818 = vld [vmem:[%s8 + $0x70] sm:$0xff]
      %v3819 = vld [vmem:[%s8 + $0x78] sm:$0xff]
      %v3820 = vld [vmem:[%s9] sm:$0x1]
      %v3822 = vperm.slane %v3820, 0
      %3824 = vmatpush.msra.mxu0 %v3819
      %3825 = vmatpush.msra.mxu0 %v3818
      %3826 = vmatpush.msra.mxu0 %v3817
      %3827 = vmatpush.msra.mxu0 %v3816
      %3828 = vmatpush.msra.mxu0 %v3815
      %3829 = vmatpush.msra.mxu0 %v3814
      %3830 = vmatpush.msra.mxu0 %v3813
      %3831 = vmatpush.msra.mxu0 %v3812
      %3832 = vmatpush.msra.mxu0 %v3811
      %3833 = vmatpush.msra.mxu0 %v3810
      %3834 = vmatpush.msra.mxu0 %v3809
      %3835 = vmatpush.msra.mxu0 %v3808
      %3836 = vmatpush.msra.mxu0 %v3807
      %3837 = vmatpush.msra.mxu0 %v3806
      %3838 = vmatpush.msra.mxu0 %v3805
      %3839 = vmatpush.msra.mxu0 %v3804
      %3840 = vmatmul.f32.gmra.mxu0 %v3703
      %v3841 = vpop.f32.mrf.mxu0
      %v3842 = vadd.f32 %v3822, %v3841
      %3843 = vmatmul.f32.gmra.mxu0 %v3371
      %v3844 = vpop.f32.mrf.mxu0
      %v3845 = vadd.f32 %v3822, %v3844
      %3846 = vmatmul.f32.gmra.mxu0 %v3039
      %v3847 = vpop.f32.mrf.mxu0
      %v3848 = vadd.f32 %v3822, %v3847
      %3849 = vmatmul.f32.gmra.mxu0 %v2707
      %v3850 = vpop.f32.mrf.mxu0
      %v3851 = vadd.f32 %v3822, %v3850
      %3852 = vmatmul.f32.gmra.mxu0 %v2375
      %v3853 = vpop.f32.mrf.mxu0
      %v3854 = vadd.f32 %v3822, %v3853
      %3855 = vmatmul.f32.gmra.mxu0 %v2043
      %v3856 = vpop.f32.mrf.mxu0
      %v3857 = vadd.f32 %v3822, %v3856
      %3858 = vmatmul.f32.gmra.mxu0 %v1711
      %v3859 = vpop.f32.mrf.mxu0
      %v3860 = vadd.f32 %v3822, %v3859
      %3861 = vmatmul.f32.gmra.mxu0 %v1379
      %v3862 = vpop.f32.mrf.mxu0
      %v3863 = vadd.f32 %v3822, %v3862
      %3864 = vdwg.mxu0
      %v3865 = vtanh.pop %v3842
      %v3866 = vtanh.pop %v3845
      %v3867 = vtanh.pop %v3848
      %v3868 = vtanh.pop %v3851
      %v3869 = vtanh.pop %v3854
      %v3870 = vtanh.pop %v3857
      %v3871 = vtanh.pop %v3860
      %v3872 = vtanh.pop %v3863
      %v3873 = vadd.f32 %v463, %v466
      %v3874 = vadd.f32 %v3873, %v469
      %v3875 = vadd.f32 %v3874, %v472
      %v3876 = vadd.f32 %v3875, %v475
      %v3877 = vadd.f32 %v3876, %v478
      %v3878 = vadd.f32 %v3877, %v481
      %v3879 = vadd.f32 %v3878, %v484
      %v3880 = vld [vmem:[%s10] sm:$0x1]
      %v3882 = vperm.slane %v3880, 0
      %v3884 = vmul.f32 %v3879, %v3882
      %v3885 = vmul.f32 %v3865, %v3884
      %3886 = vadd.xlane.f32.xlu0 %v3885
      %v3887 = vpop.xlane.xlu0 %3886
      %v3888 = vmul.f32 %v3866, %v3884
      %3889 = vadd.xlane.f32.xlu0 %v3888
      %v3890 = vpop.xlane.xlu0 %3889
      %v3891 = vmul.f32 %v3867, %v3884
      %3892 = vadd.xlane.f32.xlu0 %v3891
      %v3893 = vpop.xlane.xlu0 %3892
      %v3894 = vmul.f32 %v3868, %v3884
      %3895 = vadd.xlane.f32.xlu0 %v3894
      %v3896 = vpop.xlane.xlu0 %3895
      %v3897 = vmul.f32 %v3869, %v3884
      %3898 = vadd.xlane.f32.xlu0 %v3897
      %v3899 = vpop.xlane.xlu0 %3898
      %v3900 = vmul.f32 %v3870, %v3884
      %3901 = vadd.xlane.f32.xlu0 %v3900
      %v3902 = vpop.xlane.xlu0 %3901
      %v3903 = vmul.f32 %v3871, %v3884
      %3904 = vadd.xlane.f32.xlu0 %v3903
      %v3905 = vpop.xlane.xlu0 %3904
      %v3906 = vmul.f32 %v3872, %v3884
      %3907 = vadd.xlane.f32.xlu0 %v3906
      %v3908 = vpop.xlane.xlu0 %3907
      %v3909 = vmul.f32 %v3796, %v3887
      %v3910 = vmul.f32 %v3797, %v3890
      %v3911 = vmul.f32 %v3798, %v3893
      %v3912 = vmul.f32 %v3799, %v3896
      %v3913 = vmul.f32 %v3800, %v3899
      %v3914 = vmul.f32 %v3801, %v3902
      %v3915 = vmul.f32 %v3802, %v3905
      %v3916 = vmul.f32 %v3803, %v3908
      %v3917 = vld [vmem:[#allocation3] sm:$0x1]
      %v3919 = vperm.slane %v3917, 0
      %v3921 = vadd.f32 %v3909, %v3919
      %v3922 = vadd.f32 %v3910, %v3919
      %v3923 = vadd.f32 %v3911, %v3919
      %v3924 = vadd.f32 %v3912, %v3919
      %v3925 = vadd.f32 %v3913, %v3919
      %v3926 = vadd.f32 %v3914, %v3919
      %v3927 = vadd.f32 %v3915, %v3919
      %v3928 = vadd.f32 %v3916, %v3919
      %v3929 = vxor.u32 %v3921, 2147483648
      %v3930 = vxor.u32 %v3922, 2147483648
      %v3931 = vxor.u32 %v3923, 2147483648
      %v3932 = vxor.u32 %v3924, 2147483648
      %v3933 = vxor.u32 %v3925, 2147483648
      %v3934 = vxor.u32 %v3926, 2147483648
      %v3935 = vxor.u32 %v3927, 2147483648
      %v3936 = vxor.u32 %v3928, 2147483648
      %v3937 = vmul.f32 %v3929, 1.442695
      %v3938 = vpow.pop %v3937
      %v3939 = vmul.f32 %v3930, 1.442695
      %v3940 = vpow.pop %v3939
      %v3941 = vmul.f32 %v3931, 1.442695
      %v3942 = vpow.pop %v3941
      %v3943 = vmul.f32 %v3932, 1.442695
      %v3944 = vpow.pop %v3943
      %v3945 = vmul.f32 %v3933, 1.442695
      %v3946 = vpow.pop %v3945
      %v3947 = vmul.f32 %v3934, 1.442695
      %v3948 = vpow.pop %v3947
      %v3949 = vmul.f32 %v3935, 1.442695
      %v3950 = vpow.pop %v3949
      %v3951 = vmul.f32 %v3936, 1.442695
      %v3952 = vpow.pop %v3951
      %v3953 = vadd.f32 %v3938, 1.0
      %v3954 = vadd.f32 %v3940, 1.0
      %v3955 = vadd.f32 %v3942, 1.0
      %v3956 = vadd.f32 %v3944, 1.0
      %v3957 = vadd.f32 %v3946, 1.0
      %v3958 = vadd.f32 %v3948, 1.0
      %v3959 = vadd.f32 %v3950, 1.0
      %v3960 = vadd.f32 %v3952, 1.0
      %v3961 = vrcp.pop %v3953
      %v3962 = vmul.f32 %v3953, %v3961
      %v3963 = vsub.f32 1.0, %v3962
      %v3964 = vmul.f32 %v3961, %v3963
      %v3965 = vadd.f32 %v3961, %v3964
      %vm3966 = vweird.f32 %v3953
      %vm3967 = vweird.f32 %v3961
      %vm3968 = vmor %vm3966, %vm3967
      %v3969 = vsel %vm3968, %v3961, %v3965
      %v3970 = vand.u32 2147483647, %v3953
      %vm3971 = vcmp.eq.f32.partialorder %v3970, 8.507059e+37
      %v3972 = vand.u32 %v3953, 2147483648
      %v3973 = vor.u32 1.1754944e-38, %v3972
      %v3974 = vsel %vm3971, %v3973, %v3969
      %v3975 = vmul.f32 1.0, %v3974
      %v3976 = vrcp.pop %v3954
      %v3977 = vmul.f32 %v3954, %v3976
      %v3978 = vsub.f32 1.0, %v3977
      %v3979 = vmul.f32 %v3976, %v3978
      %v3980 = vadd.f32 %v3976, %v3979
      %vm3981 = vweird.f32 %v3954
      %vm3982 = vweird.f32 %v3976
      %vm3983 = vmor %vm3981, %vm3982
      %v3984 = vsel %vm3983, %v3976, %v3980
      %v3985 = vand.u32 2147483647, %v3954
      %vm3986 = vcmp.eq.f32.partialorder %v3985, 8.507059e+37
      %v3987 = vand.u32 %v3954, 2147483648
      %v3988 = vor.u32 1.1754944e-38, %v3987
      %v3989 = vsel %vm3986, %v3988, %v3984
      %v3990 = vmul.f32 1.0, %v3989
      %v3991 = vrcp.pop %v3955
      %v3992 = vmul.f32 %v3955, %v3991
      %v3993 = vsub.f32 1.0, %v3992
      %v3994 = vmul.f32 %v3991, %v3993
      %v3995 = vadd.f32 %v3991, %v3994
      %vm3996 = vweird.f32 %v3955
      %vm3997 = vweird.f32 %v3991
      %vm3998 = vmor %vm3996, %vm3997
      %v3999 = vsel %vm3998, %v3991, %v3995
      %v4000 = vand.u32 2147483647, %v3955
      %vm4001 = vcmp.eq.f32.partialorder %v4000, 8.507059e+37
      %v4002 = vand.u32 %v3955, 2147483648
      %v4003 = vor.u32 1.1754944e-38, %v4002
      %v4004 = vsel %vm4001, %v4003, %v3999
      %v4005 = vmul.f32 1.0, %v4004
      %v4006 = vrcp.pop %v3956
      %v4007 = vmul.f32 %v3956, %v4006
      %v4008 = vsub.f32 1.0, %v4007
      %v4009 = vmul.f32 %v4006, %v4008
      %v4010 = vadd.f32 %v4006, %v4009
      %vm4011 = vweird.f32 %v3956
      %vm4012 = vweird.f32 %v4006
      %vm4013 = vmor %vm4011, %vm4012
      %v4014 = vsel %vm4013, %v4006, %v4010
      %v4015 = vand.u32 2147483647, %v3956
      %vm4016 = vcmp.eq.f32.partialorder %v4015, 8.507059e+37
      %v4017 = vand.u32 %v3956, 2147483648
      %v4018 = vor.u32 1.1754944e-38, %v4017
      %v4019 = vsel %vm4016, %v4018, %v4014
      %v4020 = vmul.f32 1.0, %v4019
      %v4021 = vrcp.pop %v3957
      %v4022 = vmul.f32 %v3957, %v4021
      %v4023 = vsub.f32 1.0, %v4022
      %v4024 = vmul.f32 %v4021, %v4023
      %v4025 = vadd.f32 %v4021, %v4024
      %vm4026 = vweird.f32 %v3957
      %vm4027 = vweird.f32 %v4021
      %vm4028 = vmor %vm4026, %vm4027
      %v4029 = vsel %vm4028, %v4021, %v4025
      %v4030 = vand.u32 2147483647, %v3957
      %vm4031 = vcmp.eq.f32.partialorder %v4030, 8.507059e+37
      %v4032 = vand.u32 %v3957, 2147483648
      %v4033 = vor.u32 1.1754944e-38, %v4032
      %v4034 = vsel %vm4031, %v4033, %v4029
      %v4035 = vmul.f32 1.0, %v4034
      %v4036 = vrcp.pop %v3958
      %v4037 = vmul.f32 %v3958, %v4036
      %v4038 = vsub.f32 1.0, %v4037
      %v4039 = vmul.f32 %v4036, %v4038
      %v4040 = vadd.f32 %v4036, %v4039
      %vm4041 = vweird.f32 %v3958
      %vm4042 = vweird.f32 %v4036
      %vm4043 = vmor %vm4041, %vm4042
      %v4044 = vsel %vm4043, %v4036, %v4040
      %v4045 = vand.u32 2147483647, %v3958
      %vm4046 = vcmp.eq.f32.partialorder %v4045, 8.507059e+37
      %v4047 = vand.u32 %v3958, 2147483648
      %v4048 = vor.u32 1.1754944e-38, %v4047
      %v4049 = vsel %vm4046, %v4048, %v4044
      %v4050 = vmul.f32 1.0, %v4049
      %v4051 = vrcp.pop %v3959
      %v4052 = vmul.f32 %v3959, %v4051
      %v4053 = vsub.f32 1.0, %v4052
      %v4054 = vmul.f32 %v4051, %v4053
      %v4055 = vadd.f32 %v4051, %v4054
      %vm4056 = vweird.f32 %v3959
      %vm4057 = vweird.f32 %v4051
      %vm4058 = vmor %vm4056, %vm4057
      %v4059 = vsel %vm4058, %v4051, %v4055
      %v4060 = vand.u32 2147483647, %v3959
      %vm4061 = vcmp.eq.f32.partialorder %v4060, 8.507059e+37
      %v4062 = vand.u32 %v3959, 2147483648
      %v4063 = vor.u32 1.1754944e-38, %v4062
      %v4064 = vsel %vm4061, %v4063, %v4059
      %v4065 = vmul.f32 1.0, %v4064
      %v4066 = vrcp.pop %v3960
      %v4067 = vmul.f32 %v3960, %v4066
      %v4068 = vsub.f32 1.0, %v4067
      %v4069 = vmul.f32 %v4066, %v4068
      %v4070 = vadd.f32 %v4066, %v4069
      %vm4071 = vweird.f32 %v3960
      %vm4072 = vweird.f32 %v4066
      %vm4073 = vmor %vm4071, %vm4072
      %v4074 = vsel %vm4073, %v4066, %v4070
      %v4075 = vand.u32 2147483647, %v3960
      %vm4076 = vcmp.eq.f32.partialorder %v4075, 8.507059e+37
      %v4077 = vand.u32 %v3960, 2147483648
      %v4078 = vor.u32 1.1754944e-38, %v4077
      %v4079 = vsel %vm4076, %v4078, %v4074
      %v4080 = vmul.f32 1.0, %v4079
      %vm4081 = vcmask 7168
      %4082 = vst.msk [vmem:[%s419] sm:$0xff] %vm4081, %v3975
      %4083 = vst.msk [vmem:[%s419 + $0x8] sm:$0xff] %vm4081, %v3990
      %4084 = vst.msk [vmem:[%s419 + $0x10] sm:$0xff] %vm4081, %v4005
      %4085 = vst.msk [vmem:[%s419 + $0x18] sm:$0xff] %vm4081, %v4020
      %4086 = vst.msk [vmem:[%s419 + $0x20] sm:$0xff] %vm4081, %v4035
      %4087 = vst.msk [vmem:[%s419 + $0x28] sm:$0xff] %vm4081, %v4050
      %4088 = vst.msk [vmem:[%s419 + $0x30] sm:$0xff] %vm4081, %v4065
      %4089 = vst.msk [vmem:[%s419 + $0x38] sm:$0xff] %vm4081, %v4080
      %s4090 = smul.u32 8, %s27
      %p4091 = scmp.lt.s32.totalorder %s4090, 15
      %s4092 = scalar_select %p4091, %s4090, 15
      %s4093 = smul.addr %s4092, 8
      %s4094 = scalar_lea.vmem %s12, %s4093
      // Predicated region
      $region69: #{retain_forward.1} parent=67 // pred_check
        %p4095 = pneg %p302
      $region70: #{retain_forward.1} parent=67 // pred_check_branch
        %4097 = sbr.rel (%p4095) target = $region72
      $region71: #{retain_forward.1} parent=67 // pred_region
        %s4098 = smul.u32 8, %s27
      $region72: #{retain_forward.1} parent=67 // pred_fallthru
        _
    $region68: #{retain_forward.1} parent=5 // pred_fallthru
      _
    %p4099 = scmp.le.s32.totalorder 2, %s22
    // Predicated region
    $region73: #{retain_forward.1} parent=5 // pred_check
      %p4100 = pneg %p4099
    $region74: #{retain_forward.1} parent=5 // pred_check_branch
      %4102 = sbr.rel (%p4100) target = $region76
    $region75: #{retain_forward.1} parent=5 // pred_region
      %s4103 = ssub.s32 %s22, 2
      // Predicated region
      $region77: #{retain_forward.1} parent=75 // pred_check
        %p4104 = pneg %p308
      $region78: #{retain_forward.1} parent=75 // pred_check_branch
        %4106 = sbr.rel (%p4104) target = $region80
      $region79: #{retain_forward.1} parent=75 // pred_region
        %s4107 = smul.u32 8, %s28
        %p4108 = scmp.lt.s32.totalorder %s4107, 15
        %s4109 = scalar_select %p4108, %s4107, 15
        %s4110 = smul.addr %s4109, 8
        %s4111 = scalar_lea.vmem %s12, %s4110
      $region80: #{retain_forward.1} parent=75 // pred_fallthru
        _
    $region76: #{retain_forward.1} parent=5 // pred_fallthru
      _
  $region6: #{retain_forward.1} parent=0 // loop_footer
    %s26 = sadd.s32 1, %s22
  $region7: #{retain_forward.1} parent=0 // loop_footer_branch
    %21 = sbr.rel target = $region3
  $region8: #{retain_forward.1} parent=0 // loop_exit
    _

</llo_original>
